<compile_context>
chip_gen: v7x
topology: tpu7x:2x2x1
jax: 0.10.0
libtpu: 0.0.40
codegen_flags: <defaults>
</compile_context>

<pallas_src>
import functools
import math

import jax
import jax.numpy as jnp
from jax.experimental import pallas as pl
from jax.experimental.pallas import tpu as pltpu

VMEM = pltpu.MemorySpace.VMEM
BN_EPS = 1e-5
LOG2 = math.log(2.0)
PAD = 128            # lane width: hidden / feature dims are zero-padded to this


def _softplus(z):
    # F.softplus(z) = log(1 + exp(z)), numerically stable.
    return jnp.logaddexp(z, 0.0)


# ------------------------------ fused kernel --------------------------------

def gcn_infomax_fused_kernel(
        x_ref, a_ref, p_ref, pos_ref,
        w1s_ref, b1s_ref, w2s_ref, b2s_ref, gammas_ref, betas_ref,
        lw_ref, lb_ref, gw_ref, gb_ref,
        out_ref):
    """Whole GcnInfomax forward: encoder (GIN+BN+pool) -> FFs -> JSD loss."""
    num_layers = w1s_ref.shape[0]
    num_nodes = x_ref.shape[0]
    num_graphs = pos_ref.shape[0]

    a = a_ref[...]                       # [N, N]  bf16 (exact 0/1 counts)
    p = p_ref[...]                       # [G, N]  bf16 one-hot pooling matrix
    h = x_ref[...]                       # [N, PAD] f32 (zero-padded features)

    xs, ys = [], []
    for i in range(num_layers):
        w1 = w1s_ref[i]                  # [PAD, PAD] bf16
        w2 = w2s_ref[i]                  # [PAD, PAD] bf16
        b1 = b1s_ref[i]                  # [1, PAD]   f32
        b2 = b2s_ref[i]
        gamma = gammas_ref[i]
        beta = betas_ref[i]

        # GINConv (eps=0): MLP((1+eps)*h + sum_{j in N(i)} h_j), reassociated as
        # (A@h + h) @ W1 = A @ (h@W1) + h@W1  (N^2 matmul runs at width PAD).
        hw = jnp.dot(h.astype(jnp.bfloat16), w1,
                     preferred_element_type=jnp.float32)
        z = (jnp.dot(a, hw.astype(jnp.bfloat16),
                     preferred_element_type=jnp.float32) + hw + b1)
        z = jnp.maximum(z, 0.0)                           # MLP inner ReLU
        z = jnp.dot(z.astype(jnp.bfloat16), w2,
                    preferred_element_type=jnp.float32) + b2
        z = jnp.maximum(z, 0.0)                           # x = relu(conv(x))

        # BatchNorm1d training mode: batch statistics, biased variance (f32).
        mean = jnp.mean(z, axis=0, keepdims=True)
        var = jnp.mean((z - mean) ** 2, axis=0, keepdims=True)
        h = (z - mean) * jax.lax.rsqrt(var + BN_EPS) * gamma + beta

        xs.append(h)
        # global_add_pool fused into the same launch ([G, N] one-hot matmul).
        ys.append(jnp.dot(p, h.astype(jnp.bfloat16),
                          preferred_element_type=jnp.float32))

    m = jnp.concatenate(xs, axis=1)      # [N, L*PAD]  node embeddings (M)
    y = jnp.concatenate(ys, axis=1)      # [G, L*PAD]  graph embeddings (y)

    def ff(x, w_ref, b_ref):
        """FF module: (Linear->ReLU) x3 block + linear shortcut."""
        xb = x.astype(jnp.bfloat16)
        h1 = jnp.maximum(
            jnp.dot(xb, w_ref[0], preferred_element_type=jnp.float32)
            + b_ref[0], 0.0)
        h2 = jnp.maximum(
            jnp.dot(h1.astype(jnp.bfloat16), w_ref[1],
                    preferred_element_type=jnp.float32) + b_ref[1], 0.0)
        h3 = jnp.maximum(
            jnp.dot(h2.astype(jnp.bfloat16), w_ref[2],
                    preferred_element_type=jnp.float32) + b_ref[2], 0.0)
        sc = jnp.dot(xb, w_ref[3], preferred_element_type=jnp.float32) + b_ref[3]
        return h3 + sc

    l_enc = ff(m, lw_ref, lb_ref)        # [N, L*PAD]  local_d
    g_enc = ff(y, gw_ref, gb_ref)        # [G, L*PAD]  global_d

    # JSD local/global loss.  Scores as g_enc . l_enc contracted over D so the
    # large dimension N sits on the lane axis ([G, N]); no transposes needed.
    res = jax.lax.dot_general(
        g_enc.astype(jnp.bfloat16), l_enc.astype(jnp.bfloat16),
        (((1,), (1,)), ((), ())), preferred_element_type=jnp.float32)   # [G, N]
    pos = pos_ref[...]                   # [G, N] positive mask
    rp = res * pos
    rn = res * (1.0 - pos)
    # get_positive/negative_expectation('JSD', average=False); masked-out
    # entries contribute exactly 0 to both sums.
    e_pos = jnp.sum(LOG2 - _softplus(-rp), keepdims=True)               # (1, 1)
    e_neg = jnp.sum(_softplus(-rn) + rn - LOG2, keepdims=True)          # (1, 1)
    out_ref[...] = (e_neg / (num_nodes * (num_graphs - 1))
                    - e_pos / num_nodes)


# ----------------------------- padding helpers -------------------------------

def _pad2d(w, rows, cols):
    return jnp.pad(w, ((0, rows - w.shape[0]), (0, cols - w.shape[1])))


def _pad_ff_params(p, hidden, num_layers):
    """Block-embed FF weights from the real [L*H, L*H] layout into the
    lane-padded [L*PAD, L*PAD] layout used by the kernel's concatenated
    embeddings (layer i occupies padded columns [i*PAD, i*PAD + H))."""
    def pad_w(w):
        wp = jnp.zeros((num_layers * PAD, num_layers * PAD), w.dtype)
        for i in range(num_layers):
            for j in range(num_layers):
                wp = wp.at[i * PAD:i * PAD + hidden,
                           j * PAD:j * PAD + hidden].set(
                    w[i * hidden:(i + 1) * hidden,
                      j * hidden:(j + 1) * hidden])
        return wp

    def pad_b(b):
        bp = jnp.zeros((1, num_layers * PAD), b.dtype)
        for i in range(num_layers):
            bp = bp.at[:, i * PAD:i * PAD + hidden].set(
                b[:, i * hidden:(i + 1) * hidden])
        return bp

    w = jnp.stack([pad_w(p["w1"]), pad_w(p["w2"]),
                   pad_w(p["w3"]), pad_w(p["ws"])]).astype(jnp.bfloat16)
    b = jnp.stack([pad_b(p["b1"]), pad_b(p["b2"]),
                   pad_b(p["b3"]), pad_b(p["bs"])])
    return w, b


# ----------------------------- parameter init --------------------------------

def xavier_uniform(key, fan_in, fan_out):
    a = math.sqrt(6.0 / (fan_in + fan_out))
    return jax.random.uniform(key, (fan_in, fan_out), jnp.float32, -a, a)


def init_params(key, num_features, hidden_dim, num_gc_layers):
    D = hidden_dim * num_gc_layers
    keys = jax.random.split(key, 2 * num_gc_layers + 8)
    it = iter(range(len(keys)))

    gin = []
    for i in range(num_gc_layers):
        fin = num_features if i == 0 else hidden_dim
        gin.append(dict(
            w1=xavier_uniform(keys[next(it)], fin, hidden_dim),
            b1=jnp.zeros((1, hidden_dim), jnp.float32),
            w2=xavier_uniform(keys[next(it)], hidden_dim, hidden_dim),
            b2=jnp.zeros((1, hidden_dim), jnp.float32),
            gamma=jnp.ones((1, hidden_dim), jnp.float32),
            beta=jnp.zeros((1, hidden_dim), jnp.float32),
        ))

    def ff_params():
        return dict(
            w1=xavier_uniform(keys[next(it)], D, D), b1=jnp.zeros((1, D), jnp.float32),
            w2=xavier_uniform(keys[next(it)], D, D), b2=jnp.zeros((1, D), jnp.float32),
            w3=xavier_uniform(keys[next(it)], D, D), b3=jnp.zeros((1, D), jnp.float32),
            ws=xavier_uniform(keys[next(it)], D, D), bs=jnp.zeros((1, D), jnp.float32),
        )

    return dict(gin=gin, local_d=ff_params(), global_d=ff_params())


# -------------------------------- forward ------------------------------------

@functools.partial(jax.jit,
                   static_argnames=("num_graphs", "hidden_dim", "num_gc_layers"))
def gcn_infomax_forward(params, x, edge_index, batch, num_graphs,
                        hidden_dim, num_gc_layers):
    N, num_features = x.shape
    assert num_features <= PAD and hidden_dim <= PAD   # TODO(synk): tile wider dims
    L = num_gc_layers
    Dc = L * PAD
    G = num_graphs

    # glue: dense adjacency A[dst, src]=1, pooling matrix, positive mask [G, N]
    A = (jnp.zeros((N, N), jnp.float32)
         .at[edge_index[1], edge_index[0]].add(1.0)).astype(jnp.bfloat16)
    onehot = batch[None, :] == jnp.arange(G, dtype=batch.dtype)[:, None]
    P = onehot.astype(jnp.bfloat16)          # [G, N] global_add_pool matrix
    pos_mask = onehot.astype(jnp.float32)    # [G, N] JSD positive mask

    x_pad = jnp.pad(x, ((0, 0), (0, PAD - num_features)))

    gin = params["gin"]
    w1s = jnp.stack([_pad2d(lp["w1"], PAD, PAD) for lp in gin]).astype(jnp.bfloat16)
    w2s = jnp.stack([_pad2d(lp["w2"], PAD, PAD) for lp in gin]).astype(jnp.bfloat16)
    b1s = jnp.stack([_pad2d(lp["b1"], 1, PAD) for lp in gin])
    b2s = jnp.stack([_pad2d(lp["b2"], 1, PAD) for lp in gin])
    gammas = jnp.stack([_pad2d(lp["gamma"], 1, PAD) for lp in gin])
    betas = jnp.stack([_pad2d(lp["beta"], 1, PAD) for lp in gin])
    lw, lb = _pad_ff_params(params["local_d"], hidden_dim, L)
    gw, gb = _pad_ff_params(params["global_d"], hidden_dim, L)

    args = (x_pad, A, P, pos_mask, w1s, b1s, w2s, b2s, gammas, betas,
            lw, lb, gw, gb)

    # Advisory cost estimate so XLA schedules the fused call sensibly.
    flops = L * (2 * N * PAD * PAD            # h @ W1
                 + 2 * N * N * PAD            # A @ (h @ W1)
                 + 2 * N * PAD * PAD          # @ W2
                 + 2 * G * N * PAD)           # pooling
    flops += 8 * N * Dc * Dc                  # local_d FF (4 matmuls)
    flops += 8 * G * Dc * Dc                  # global_d FF (4 matmuls)
    flops += 2 * G * N * Dc                   # JSD score matrix
    bytes_accessed = sum(int(a.size) * a.dtype.itemsize for a in args) + 4
    cost = pl.CostEstimate(flops=int(flops),
                           transcendentals=int(2 * G * N + L * PAD),
                           bytes_accessed=int(bytes_accessed))

    loss = pl.pallas_call(
        gcn_infomax_fused_kernel,
        out_shape=jax.ShapeDtypeStruct((1, 1), jnp.float32),
        in_specs=[pl.BlockSpec(memory_space=VMEM)] * len(args),
        out_specs=pl.BlockSpec(memory_space=VMEM),
        compiler_params=pltpu.CompilerParams(vmem_limit_bytes=32 * 1024 * 1024),
        cost_estimate=cost,
    )(*args)

    # self.prior (args.prior) assumed False -> PRIOR = 0
    return loss[0, 0]


# ---------------------------------- main --------------------------------------

if __name__ == "__main__":
    key = jax.random.PRNGKey(0)
    num_features, hidden_dim, num_gc_layers = 8, 32, 3
    nodes_per_graph, num_graphs = 8, 2
    N = nodes_per_graph * num_graphs

    k_x, k_p = jax.random.split(key)
    x = jax.random.normal(k_x, (N, num_features), jnp.float32)
    batch = jnp.repeat(jnp.arange(num_graphs, dtype=jnp.int32), nodes_per_graph)

    # undirected ring within each graph (edges stored in both directions)
    src, dst = [], []
    for g in range(num_graphs):
        base = g * nodes_per_graph
        for i in range(nodes_per_graph):
            a_, b_ = base + i, base + (i + 1) % nodes_per_graph
            src += [a_, b_]
            dst += [b_, a_]
    edge_index = jnp.array([src, dst], dtype=jnp.int32)

    params = init_params(k_p, num_features, hidden_dim, num_gc_layers)
    loss = gcn_infomax_forward(params, x, edge_index, batch,
                               num_graphs=num_graphs,
                               hidden_dim=hidden_dim,
                               num_gc_layers=num_gc_layers)
    jax.block_until_ready(loss)
    assert loss.shape == () and jnp.isfinite(loss)
    print("KERNEL_OK")
</pallas_src>

<mosaic_0001>
module attributes {stable_mosaic.version = 11 : i64} {
  func.func private @main(%arg0: i32) attributes {dimension_semantics = [#tpu.dimension_semantics<core_parallel>], iteration_bounds = array<i64: 2>, tpu.core_type = #tpu.core_type<sc_scalar_subcore>, window_params = []} {
    return
  }
}

module attributes {stable_mosaic.version = 11 : i64} {
  func.func private @main(%arg0: i32) attributes {dimension_semantics = [#tpu.dimension_semantics<core_parallel>], iteration_bounds = array<i64: 2>, tpu.core_type = #tpu.core_type<sc_scalar_subcore>, window_params = []} {
    return
  }
}

module attributes {stable_mosaic.version = 11 : i64} {
  func.func @gcn_infomax_fused_kernel(%arg0: memref<16x128xf32, #tpu.memory_space<vmem>>, %arg1: memref<16x16xbf16, #tpu.memory_space<vmem>>, %arg2: memref<2x16xbf16, #tpu.memory_space<vmem>>, %arg3: memref<2x16xf32, #tpu.memory_space<vmem>>, %arg4: memref<3x128x128xbf16, #tpu.memory_space<vmem>>, %arg5: memref<3x1x128xf32, #tpu.memory_space<vmem>>, %arg6: memref<3x128x128xbf16, #tpu.memory_space<vmem>>, %arg7: memref<3x1x128xf32, #tpu.memory_space<vmem>>, %arg8: memref<3x1x128xf32, #tpu.memory_space<vmem>>, %arg9: memref<3x1x128xf32, #tpu.memory_space<vmem>>, %arg10: memref<4x384x384xbf16, #tpu.memory_space<vmem>>, %arg11: memref<4x1x384xf32, #tpu.memory_space<vmem>>, %arg12: memref<4x384x384xbf16, #tpu.memory_space<vmem>>, %arg13: memref<4x1x384xf32, #tpu.memory_space<vmem>>, %arg14: memref<1x1xf32, #tpu.memory_space<vmem>>) attributes {dimension_semantics = [], scalar_prefetch = 0 : i64, scratch_operands = 0 : i64, tpu.core_type = #tpu.core_type<tc>} {
    %c0 = arith.constant 0 : index
    %c0_0 = arith.constant 0 : index
    %0 = vector.load %arg1[%c0, %c0_0] : memref<16x16xbf16, #tpu.memory_space<vmem>>, vector<16x16xbf16>
    %c0_1 = arith.constant 0 : index
    %c0_2 = arith.constant 0 : index
    %1 = vector.load %arg2[%c0_1, %c0_2] : memref<2x16xbf16, #tpu.memory_space<vmem>>, vector<2x16xbf16>
    %c0_3 = arith.constant 0 : index
    %c0_4 = arith.constant 0 : index
    %2 = vector.load %arg0[%c0_3, %c0_4] : memref<16x128xf32, #tpu.memory_space<vmem>>, vector<16x128xf32>
    %c0_5 = arith.constant 0 : index
    %c0_6 = arith.constant 0 : index
    %c0_7 = arith.constant 0 : index
    %3 = vector.load %arg4[%c0_5, %c0_6, %c0_7] : memref<3x128x128xbf16, #tpu.memory_space<vmem>>, vector<1x128x128xbf16>
    %4 = vector.shape_cast %3 : vector<1x128x128xbf16> to vector<128x128xbf16>
    %c0_8 = arith.constant 0 : index
    %c0_9 = arith.constant 0 : index
    %c0_10 = arith.constant 0 : index
    %5 = vector.load %arg6[%c0_8, %c0_9, %c0_10] : memref<3x128x128xbf16, #tpu.memory_space<vmem>>, vector<1x128x128xbf16>
    %6 = vector.shape_cast %5 : vector<1x128x128xbf16> to vector<128x128xbf16>
    %c0_11 = arith.constant 0 : index
    %c0_12 = arith.constant 0 : index
    %c0_13 = arith.constant 0 : index
    %7 = vector.load %arg5[%c0_11, %c0_12, %c0_13] : memref<3x1x128xf32, #tpu.memory_space<vmem>>, vector<1x1x128xf32>
    %8 = vector.shape_cast %7 : vector<1x1x128xf32> to vector<1x128xf32>
    %c0_14 = arith.constant 0 : index
    %c0_15 = arith.constant 0 : index
    %c0_16 = arith.constant 0 : index
    %9 = vector.load %arg7[%c0_14, %c0_15, %c0_16] : memref<3x1x128xf32, #tpu.memory_space<vmem>>, vector<1x1x128xf32>
    %10 = vector.shape_cast %9 : vector<1x1x128xf32> to vector<1x128xf32>
    %c0_17 = arith.constant 0 : index
    %c0_18 = arith.constant 0 : index
    %c0_19 = arith.constant 0 : index
    %11 = vector.load %arg8[%c0_17, %c0_18, %c0_19] : memref<3x1x128xf32, #tpu.memory_space<vmem>>, vector<1x1x128xf32>
    %12 = vector.shape_cast %11 : vector<1x1x128xf32> to vector<1x128xf32>
    %c0_20 = arith.constant 0 : index
    %c0_21 = arith.constant 0 : index
    %c0_22 = arith.constant 0 : index
    %13 = vector.load %arg9[%c0_20, %c0_21, %c0_22] : memref<3x1x128xf32, #tpu.memory_space<vmem>>, vector<1x1x128xf32>
    %14 = vector.shape_cast %13 : vector<1x1x128xf32> to vector<1x128xf32>
    %15 = arith.truncf %2 : vector<16x128xf32> to vector<16x128xbf16>
    %cst = arith.constant dense<0.000000e+00> : vector<16x128xf32>
    %16 = tpu.matmul %15, %4, %cst {dimension_numbers = #tpu.dot_dimension_numbers<[1], [0], [0], [1], [0, 0, 1, 1], [], []>} : vector<16x128xbf16>, vector<128x128xbf16>, vector<16x128xf32> -> vector<16x128xf32>
    %17 = arith.truncf %16 : vector<16x128xf32> to vector<16x128xbf16>
    %cst_23 = arith.constant dense<0.000000e+00> : vector<16x128xf32>
    %18 = tpu.matmul %0, %17, %cst_23 {dimension_numbers = #tpu.dot_dimension_numbers<[1], [0], [0], [1], [0, 0, 1, 1], [], []>} : vector<16x16xbf16>, vector<16x128xbf16>, vector<16x128xf32> -> vector<16x128xf32>
    %19 = arith.addf %18, %16 : vector<16x128xf32>
    %20 = vector.broadcast %8 : vector<1x128xf32> to vector<16x128xf32>
    %21 = arith.addf %19, %20 : vector<16x128xf32>
    %cst_24 = arith.constant 0.000000e+00 : f32
    %22 = vector.broadcast %cst_24 : f32 to vector<16x128xf32>
    %23 = arith.maximumf %21, %22 : vector<16x128xf32>
    %24 = arith.truncf %23 : vector<16x128xf32> to vector<16x128xbf16>
    %cst_25 = arith.constant dense<0.000000e+00> : vector<16x128xf32>
    %25 = tpu.matmul %24, %6, %cst_25 {dimension_numbers = #tpu.dot_dimension_numbers<[1], [0], [0], [1], [0, 0, 1, 1], [], []>} : vector<16x128xbf16>, vector<128x128xbf16>, vector<16x128xf32> -> vector<16x128xf32>
    %26 = vector.broadcast %10 : vector<1x128xf32> to vector<16x128xf32>
    %27 = arith.addf %25, %26 : vector<16x128xf32>
    %cst_26 = arith.constant 0.000000e+00 : f32
    %28 = vector.broadcast %cst_26 : f32 to vector<16x128xf32>
    %29 = arith.maximumf %27, %28 : vector<16x128xf32>
    %cst_27 = arith.constant dense<0.000000e+00> : vector<128xf32>
    %30 = vector.multi_reduction <add>, %29, %cst_27 [0] : vector<16x128xf32> to vector<128xf32>
    %31 = vector.shape_cast %30 : vector<128xf32> to vector<1x128xf32>
    %cst_28 = arith.constant 1.600000e+01 : f32
    %32 = vector.broadcast %cst_28 : f32 to vector<1x128xf32>
    %33 = arith.divf %31, %32 : vector<1x128xf32>
    %34 = vector.broadcast %33 : vector<1x128xf32> to vector<16x128xf32>
    %35 = arith.subf %29, %34 : vector<16x128xf32>
    %36 = arith.mulf %35, %35 : vector<16x128xf32>
    %cst_29 = arith.constant dense<0.000000e+00> : vector<128xf32>
    %37 = vector.multi_reduction <add>, %36, %cst_29 [0] : vector<16x128xf32> to vector<128xf32>
    %38 = vector.shape_cast %37 : vector<128xf32> to vector<1x128xf32>
    %cst_30 = arith.constant 1.600000e+01 : f32
    %39 = vector.broadcast %cst_30 : f32 to vector<1x128xf32>
    %40 = arith.divf %38, %39 : vector<1x128xf32>
    %41 = vector.broadcast %33 : vector<1x128xf32> to vector<16x128xf32>
    %42 = arith.subf %29, %41 : vector<16x128xf32>
    %cst_31 = arith.constant 9.99999974E-6 : f32
    %43 = vector.broadcast %cst_31 : f32 to vector<1x128xf32>
    %44 = arith.addf %40, %43 : vector<1x128xf32>
    %45 = math.rsqrt %44 : vector<1x128xf32>
    %46 = vector.broadcast %45 : vector<1x128xf32> to vector<16x128xf32>
    %47 = arith.mulf %42, %46 : vector<16x128xf32>
    %48 = vector.broadcast %12 : vector<1x128xf32> to vector<16x128xf32>
    %49 = arith.mulf %47, %48 : vector<16x128xf32>
    %50 = vector.broadcast %14 : vector<1x128xf32> to vector<16x128xf32>
    %51 = arith.addf %49, %50 : vector<16x128xf32>
    %52 = arith.truncf %51 : vector<16x128xf32> to vector<16x128xbf16>
    %cst_32 = arith.constant dense<0.000000e+00> : vector<2x128xf32>
    %53 = tpu.matmul %1, %52, %cst_32 {dimension_numbers = #tpu.dot_dimension_numbers<[1], [0], [0], [1], [0, 0, 1, 1], [], []>} : vector<2x16xbf16>, vector<16x128xbf16>, vector<2x128xf32> -> vector<2x128xf32>
    %c1 = arith.constant 1 : index
    %c0_33 = arith.constant 0 : index
    %c0_34 = arith.constant 0 : index
    %54 = vector.load %arg4[%c1, %c0_33, %c0_34] : memref<3x128x128xbf16, #tpu.memory_space<vmem>>, vector<1x128x128xbf16>
    %55 = vector.shape_cast %54 : vector<1x128x128xbf16> to vector<128x128xbf16>
    %c1_35 = arith.constant 1 : index
    %c0_36 = arith.constant 0 : index
    %c0_37 = arith.constant 0 : index
    %56 = vector.load %arg6[%c1_35, %c0_36, %c0_37] : memref<3x128x128xbf16, #tpu.memory_space<vmem>>, vector<1x128x128xbf16>
    %57 = vector.shape_cast %56 : vector<1x128x128xbf16> to vector<128x128xbf16>
    %c1_38 = arith.constant 1 : index
    %c0_39 = arith.constant 0 : index
    %c0_40 = arith.constant 0 : index
    %58 = vector.load %arg5[%c1_38, %c0_39, %c0_40] : memref<3x1x128xf32, #tpu.memory_space<vmem>>, vector<1x1x128xf32>
    %59 = vector.shape_cast %58 : vector<1x1x128xf32> to vector<1x128xf32>
    %c1_41 = arith.constant 1 : index
    %c0_42 = arith.constant 0 : index
    %c0_43 = arith.constant 0 : index
    %60 = vector.load %arg7[%c1_41, %c0_42, %c0_43] : memref<3x1x128xf32, #tpu.memory_space<vmem>>, vector<1x1x128xf32>
    %61 = vector.shape_cast %60 : vector<1x1x128xf32> to vector<1x128xf32>
    %c1_44 = arith.constant 1 : index
    %c0_45 = arith.constant 0 : index
    %c0_46 = arith.constant 0 : index
    %62 = vector.load %arg8[%c1_44, %c0_45, %c0_46] : memref<3x1x128xf32, #tpu.memory_space<vmem>>, vector<1x1x128xf32>
    %63 = vector.shape_cast %62 : vector<1x1x128xf32> to vector<1x128xf32>
    %c1_47 = arith.constant 1 : index
    %c0_48 = arith.constant 0 : index
    %c0_49 = arith.constant 0 : index
    %64 = vector.load %arg9[%c1_47, %c0_48, %c0_49] : memref<3x1x128xf32, #tpu.memory_space<vmem>>, vector<1x1x128xf32>
    %65 = vector.shape_cast %64 : vector<1x1x128xf32> to vector<1x128xf32>
    %66 = arith.truncf %51 : vector<16x128xf32> to vector<16x128xbf16>
    %cst_50 = arith.constant dense<0.000000e+00> : vector<16x128xf32>
    %67 = tpu.matmul %66, %55, %cst_50 {dimension_numbers = #tpu.dot_dimension_numbers<[1], [0], [0], [1], [0, 0, 1, 1], [], []>} : vector<16x128xbf16>, vector<128x128xbf16>, vector<16x128xf32> -> vector<16x128xf32>
    %68 = arith.truncf %67 : vector<16x128xf32> to vector<16x128xbf16>
    %cst_51 = arith.constant dense<0.000000e+00> : vector<16x128xf32>
    %69 = tpu.matmul %0, %68, %cst_51 {dimension_numbers = #tpu.dot_dimension_numbers<[1], [0], [0], [1], [0, 0, 1, 1], [], []>} : vector<16x16xbf16>, vector<16x128xbf16>, vector<16x128xf32> -> vector<16x128xf32>
    %70 = arith.addf %69, %67 : vector<16x128xf32>
    %71 = vector.broadcast %59 : vector<1x128xf32> to vector<16x128xf32>
    %72 = arith.addf %70, %71 : vector<16x128xf32>
    %cst_52 = arith.constant 0.000000e+00 : f32
    %73 = vector.broadcast %cst_52 : f32 to vector<16x128xf32>
    %74 = arith.maximumf %72, %73 : vector<16x128xf32>
    %75 = arith.truncf %74 : vector<16x128xf32> to vector<16x128xbf16>
    %cst_53 = arith.constant dense<0.000000e+00> : vector<16x128xf32>
    %76 = tpu.matmul %75, %57, %cst_53 {dimension_numbers = #tpu.dot_dimension_numbers<[1], [0], [0], [1], [0, 0, 1, 1], [], []>} : vector<16x128xbf16>, vector<128x128xbf16>, vector<16x128xf32> -> vector<16x128xf32>
    %77 = vector.broadcast %61 : vector<1x128xf32> to vector<16x128xf32>
    %78 = arith.addf %76, %77 : vector<16x128xf32>
    %cst_54 = arith.constant 0.000000e+00 : f32
    %79 = vector.broadcast %cst_54 : f32 to vector<16x128xf32>
    %80 = arith.maximumf %78, %79 : vector<16x128xf32>
    %cst_55 = arith.constant dense<0.000000e+00> : vector<128xf32>
    %81 = vector.multi_reduction <add>, %80, %cst_55 [0] : vector<16x128xf32> to vector<128xf32>
    %82 = vector.shape_cast %81 : vector<128xf32> to vector<1x128xf32>
    %cst_56 = arith.constant 1.600000e+01 : f32
    %83 = vector.broadcast %cst_56 : f32 to vector<1x128xf32>
    %84 = arith.divf %82, %83 : vector<1x128xf32>
    %85 = vector.broadcast %84 : vector<1x128xf32> to vector<16x128xf32>
    %86 = arith.subf %80, %85 : vector<16x128xf32>
    %87 = arith.mulf %86, %86 : vector<16x128xf32>
    %cst_57 = arith.constant dense<0.000000e+00> : vector<128xf32>
    %88 = vector.multi_reduction <add>, %87, %cst_57 [0] : vector<16x128xf32> to vector<128xf32>
    %89 = vector.shape_cast %88 : vector<128xf32> to vector<1x128xf32>
    %cst_58 = arith.constant 1.600000e+01 : f32
    %90 = vector.broadcast %cst_58 : f32 to vector<1x128xf32>
    %91 = arith.divf %89, %90 : vector<1x128xf32>
    %92 = vector.broadcast %84 : vector<1x128xf32> to vector<16x128xf32>
    %93 = arith.subf %80, %92 : vector<16x128xf32>
    %cst_59 = arith.constant 9.99999974E-6 : f32
    %94 = vector.broadcast %cst_59 : f32 to vector<1x128xf32>
    %95 = arith.addf %91, %94 : vector<1x128xf32>
    %96 = math.rsqrt %95 : vector<1x128xf32>
    %97 = vector.broadcast %96 : vector<1x128xf32> to vector<16x128xf32>
    %98 = arith.mulf %93, %97 : vector<16x128xf32>
    %99 = vector.broadcast %63 : vector<1x128xf32> to vector<16x128xf32>
    %100 = arith.mulf %98, %99 : vector<16x128xf32>
    %101 = vector.broadcast %65 : vector<1x128xf32> to vector<16x128xf32>
    %102 = arith.addf %100, %101 : vector<16x128xf32>
    %103 = arith.truncf %102 : vector<16x128xf32> to vector<16x128xbf16>
    %cst_60 = arith.constant dense<0.000000e+00> : vector<2x128xf32>
    %104 = tpu.matmul %1, %103, %cst_60 {dimension_numbers = #tpu.dot_dimension_numbers<[1], [0], [0], [1], [0, 0, 1, 1], [], []>} : vector<2x16xbf16>, vector<16x128xbf16>, vector<2x128xf32> -> vector<2x128xf32>
    %c2 = arith.constant 2 : index
    %c0_61 = arith.constant 0 : index
    %c0_62 = arith.constant 0 : index
    %105 = vector.load %arg4[%c2, %c0_61, %c0_62] : memref<3x128x128xbf16, #tpu.memory_space<vmem>>, vector<1x128x128xbf16>
    %106 = vector.shape_cast %105 : vector<1x128x128xbf16> to vector<128x128xbf16>
    %c2_63 = arith.constant 2 : index
    %c0_64 = arith.constant 0 : index
    %c0_65 = arith.constant 0 : index
    %107 = vector.load %arg6[%c2_63, %c0_64, %c0_65] : memref<3x128x128xbf16, #tpu.memory_space<vmem>>, vector<1x128x128xbf16>
    %108 = vector.shape_cast %107 : vector<1x128x128xbf16> to vector<128x128xbf16>
    %c2_66 = arith.constant 2 : index
    %c0_67 = arith.constant 0 : index
    %c0_68 = arith.constant 0 : index
    %109 = vector.load %arg5[%c2_66, %c0_67, %c0_68] : memref<3x1x128xf32, #tpu.memory_space<vmem>>, vector<1x1x128xf32>
    %110 = vector.shape_cast %109 : vector<1x1x128xf32> to vector<1x128xf32>
    %c2_69 = arith.constant 2 : index
    %c0_70 = arith.constant 0 : index
    %c0_71 = arith.constant 0 : index
    %111 = vector.load %arg7[%c2_69, %c0_70, %c0_71] : memref<3x1x128xf32, #tpu.memory_space<vmem>>, vector<1x1x128xf32>
    %112 = vector.shape_cast %111 : vector<1x1x128xf32> to vector<1x128xf32>
    %c2_72 = arith.constant 2 : index
    %c0_73 = arith.constant 0 : index
    %c0_74 = arith.constant 0 : index
    %113 = vector.load %arg8[%c2_72, %c0_73, %c0_74] : memref<3x1x128xf32, #tpu.memory_space<vmem>>, vector<1x1x128xf32>
    %114 = vector.shape_cast %113 : vector<1x1x128xf32> to vector<1x128xf32>
    %c2_75 = arith.constant 2 : index
    %c0_76 = arith.constant 0 : index
    %c0_77 = arith.constant 0 : index
    %115 = vector.load %arg9[%c2_75, %c0_76, %c0_77] : memref<3x1x128xf32, #tpu.memory_space<vmem>>, vector<1x1x128xf32>
    %116 = vector.shape_cast %115 : vector<1x1x128xf32> to vector<1x128xf32>
    %117 = arith.truncf %102 : vector<16x128xf32> to vector<16x128xbf16>
    %cst_78 = arith.constant dense<0.000000e+00> : vector<16x128xf32>
    %118 = tpu.matmul %117, %106, %cst_78 {dimension_numbers = #tpu.dot_dimension_numbers<[1], [0], [0], [1], [0, 0, 1, 1], [], []>} : vector<16x128xbf16>, vector<128x128xbf16>, vector<16x128xf32> -> vector<16x128xf32>
    %119 = arith.truncf %118 : vector<16x128xf32> to vector<16x128xbf16>
    %cst_79 = arith.constant dense<0.000000e+00> : vector<16x128xf32>
    %120 = tpu.matmul %0, %119, %cst_79 {dimension_numbers = #tpu.dot_dimension_numbers<[1], [0], [0], [1], [0, 0, 1, 1], [], []>} : vector<16x16xbf16>, vector<16x128xbf16>, vector<16x128xf32> -> vector<16x128xf32>
    %121 = arith.addf %120, %118 : vector<16x128xf32>
    %122 = vector.broadcast %110 : vector<1x128xf32> to vector<16x128xf32>
    %123 = arith.addf %121, %122 : vector<16x128xf32>
    %cst_80 = arith.constant 0.000000e+00 : f32
    %124 = vector.broadcast %cst_80 : f32 to vector<16x128xf32>
    %125 = arith.maximumf %123, %124 : vector<16x128xf32>
    %126 = arith.truncf %125 : vector<16x128xf32> to vector<16x128xbf16>
    %cst_81 = arith.constant dense<0.000000e+00> : vector<16x128xf32>
    %127 = tpu.matmul %126, %108, %cst_81 {dimension_numbers = #tpu.dot_dimension_numbers<[1], [0], [0], [1], [0, 0, 1, 1], [], []>} : vector<16x128xbf16>, vector<128x128xbf16>, vector<16x128xf32> -> vector<16x128xf32>
    %128 = vector.broadcast %112 : vector<1x128xf32> to vector<16x128xf32>
    %129 = arith.addf %127, %128 : vector<16x128xf32>
    %cst_82 = arith.constant 0.000000e+00 : f32
    %130 = vector.broadcast %cst_82 : f32 to vector<16x128xf32>
    %131 = arith.maximumf %129, %130 : vector<16x128xf32>
    %cst_83 = arith.constant dense<0.000000e+00> : vector<128xf32>
    %132 = vector.multi_reduction <add>, %131, %cst_83 [0] : vector<16x128xf32> to vector<128xf32>
    %133 = vector.shape_cast %132 : vector<128xf32> to vector<1x128xf32>
    %cst_84 = arith.constant 1.600000e+01 : f32
    %134 = vector.broadcast %cst_84 : f32 to vector<1x128xf32>
    %135 = arith.divf %133, %134 : vector<1x128xf32>
    %136 = vector.broadcast %135 : vector<1x128xf32> to vector<16x128xf32>
    %137 = arith.subf %131, %136 : vector<16x128xf32>
    %138 = arith.mulf %137, %137 : vector<16x128xf32>
    %cst_85 = arith.constant dense<0.000000e+00> : vector<128xf32>
    %139 = vector.multi_reduction <add>, %138, %cst_85 [0] : vector<16x128xf32> to vector<128xf32>
    %140 = vector.shape_cast %139 : vector<128xf32> to vector<1x128xf32>
    %cst_86 = arith.constant 1.600000e+01 : f32
    %141 = vector.broadcast %cst_86 : f32 to vector<1x128xf32>
    %142 = arith.divf %140, %141 : vector<1x128xf32>
    %143 = vector.broadcast %135 : vector<1x128xf32> to vector<16x128xf32>
    %144 = arith.subf %131, %143 : vector<16x128xf32>
    %cst_87 = arith.constant 9.99999974E-6 : f32
    %145 = vector.broadcast %cst_87 : f32 to vector<1x128xf32>
    %146 = arith.addf %142, %145 : vector<1x128xf32>
    %147 = math.rsqrt %146 : vector<1x128xf32>
    %148 = vector.broadcast %147 : vector<1x128xf32> to vector<16x128xf32>
    %149 = arith.mulf %144, %148 : vector<16x128xf32>
    %150 = vector.broadcast %114 : vector<1x128xf32> to vector<16x128xf32>
    %151 = arith.mulf %149, %150 : vector<16x128xf32>
    %152 = vector.broadcast %116 : vector<1x128xf32> to vector<16x128xf32>
    %153 = arith.addf %151, %152 : vector<16x128xf32>
    %154 = arith.truncf %153 : vector<16x128xf32> to vector<16x128xbf16>
    %cst_88 = arith.constant dense<0.000000e+00> : vector<2x128xf32>
    %155 = tpu.matmul %1, %154, %cst_88 {dimension_numbers = #tpu.dot_dimension_numbers<[1], [0], [0], [1], [0, 0, 1, 1], [], []>} : vector<2x16xbf16>, vector<16x128xbf16>, vector<2x128xf32> -> vector<2x128xf32>
    %156 = tpu.concatenate %51, %102, %153 in 1 : vector<16x128xf32>, vector<16x128xf32>, vector<16x128xf32> -> vector<16x384xf32>
    %157 = tpu.concatenate %53, %104, %155 in 1 : vector<2x128xf32>, vector<2x128xf32>, vector<2x128xf32> -> vector<2x384xf32>
    %158 = arith.truncf %156 : vector<16x384xf32> to vector<16x384xbf16>
    %c0_89 = arith.constant 0 : index
    %c0_90 = arith.constant 0 : index
    %c0_91 = arith.constant 0 : index
    %159 = vector.load %arg10[%c0_89, %c0_90, %c0_91] : memref<4x384x384xbf16, #tpu.memory_space<vmem>>, vector<1x384x384xbf16>
    %160 = vector.shape_cast %159 : vector<1x384x384xbf16> to vector<384x384xbf16>
    %cst_92 = arith.constant dense<0.000000e+00> : vector<16x384xf32>
    %161 = tpu.matmul %158, %160, %cst_92 {dimension_numbers = #tpu.dot_dimension_numbers<[1], [0], [0], [1], [0, 0, 1, 1], [], []>} : vector<16x384xbf16>, vector<384x384xbf16>, vector<16x384xf32> -> vector<16x384xf32>
    %c0_93 = arith.constant 0 : index
    %c0_94 = arith.constant 0 : index
    %c0_95 = arith.constant 0 : index
    %162 = vector.load %arg11[%c0_93, %c0_94, %c0_95] : memref<4x1x384xf32, #tpu.memory_space<vmem>>, vector<1x1x384xf32>
    %163 = vector.shape_cast %162 : vector<1x1x384xf32> to vector<1x384xf32>
    %164 = vector.broadcast %163 : vector<1x384xf32> to vector<16x384xf32>
    %165 = arith.addf %161, %164 : vector<16x384xf32>
    %cst_96 = arith.constant 0.000000e+00 : f32
    %166 = vector.broadcast %cst_96 : f32 to vector<16x384xf32>
    %167 = arith.maximumf %165, %166 : vector<16x384xf32>
    %168 = arith.truncf %167 : vector<16x384xf32> to vector<16x384xbf16>
    %c1_97 = arith.constant 1 : index
    %c0_98 = arith.constant 0 : index
    %c0_99 = arith.constant 0 : index
    %169 = vector.load %arg10[%c1_97, %c0_98, %c0_99] : memref<4x384x384xbf16, #tpu.memory_space<vmem>>, vector<1x384x384xbf16>
    %170 = vector.shape_cast %169 : vector<1x384x384xbf16> to vector<384x384xbf16>
    %cst_100 = arith.constant dense<0.000000e+00> : vector<16x384xf32>
    %171 = tpu.matmul %168, %170, %cst_100 {dimension_numbers = #tpu.dot_dimension_numbers<[1], [0], [0], [1], [0, 0, 1, 1], [], []>} : vector<16x384xbf16>, vector<384x384xbf16>, vector<16x384xf32> -> vector<16x384xf32>
    %c1_101 = arith.constant 1 : index
    %c0_102 = arith.constant 0 : index
    %c0_103 = arith.constant 0 : index
    %172 = vector.load %arg11[%c1_101, %c0_102, %c0_103] : memref<4x1x384xf32, #tpu.memory_space<vmem>>, vector<1x1x384xf32>
    %173 = vector.shape_cast %172 : vector<1x1x384xf32> to vector<1x384xf32>
    %174 = vector.broadcast %173 : vector<1x384xf32> to vector<16x384xf32>
    %175 = arith.addf %171, %174 : vector<16x384xf32>
    %cst_104 = arith.constant 0.000000e+00 : f32
    %176 = vector.broadcast %cst_104 : f32 to vector<16x384xf32>
    %177 = arith.maximumf %175, %176 : vector<16x384xf32>
    %178 = arith.truncf %177 : vector<16x384xf32> to vector<16x384xbf16>
    %c2_105 = arith.constant 2 : index
    %c0_106 = arith.constant 0 : index
    %c0_107 = arith.constant 0 : index
    %179 = vector.load %arg10[%c2_105, %c0_106, %c0_107] : memref<4x384x384xbf16, #tpu.memory_space<vmem>>, vector<1x384x384xbf16>
    %180 = vector.shape_cast %179 : vector<1x384x384xbf16> to vector<384x384xbf16>
    %cst_108 = arith.constant dense<0.000000e+00> : vector<16x384xf32>
    %181 = tpu.matmul %178, %180, %cst_108 {dimension_numbers = #tpu.dot_dimension_numbers<[1], [0], [0], [1], [0, 0, 1, 1], [], []>} : vector<16x384xbf16>, vector<384x384xbf16>, vector<16x384xf32> -> vector<16x384xf32>
    %c2_109 = arith.constant 2 : index
    %c0_110 = arith.constant 0 : index
    %c0_111 = arith.constant 0 : index
    %182 = vector.load %arg11[%c2_109, %c0_110, %c0_111] : memref<4x1x384xf32, #tpu.memory_space<vmem>>, vector<1x1x384xf32>
    %183 = vector.shape_cast %182 : vector<1x1x384xf32> to vector<1x384xf32>
    %184 = vector.broadcast %183 : vector<1x384xf32> to vector<16x384xf32>
    %185 = arith.addf %181, %184 : vector<16x384xf32>
    %cst_112 = arith.constant 0.000000e+00 : f32
    %186 = vector.broadcast %cst_112 : f32 to vector<16x384xf32>
    %187 = arith.maximumf %185, %186 : vector<16x384xf32>
    %c3 = arith.constant 3 : index
    %c0_113 = arith.constant 0 : index
    %c0_114 = arith.constant 0 : index
    %188 = vector.load %arg10[%c3, %c0_113, %c0_114] : memref<4x384x384xbf16, #tpu.memory_space<vmem>>, vector<1x384x384xbf16>
    %189 = vector.shape_cast %188 : vector<1x384x384xbf16> to vector<384x384xbf16>
    %cst_115 = arith.constant dense<0.000000e+00> : vector<16x384xf32>
    %190 = tpu.matmul %158, %189, %cst_115 {dimension_numbers = #tpu.dot_dimension_numbers<[1], [0], [0], [1], [0, 0, 1, 1], [], []>} : vector<16x384xbf16>, vector<384x384xbf16>, vector<16x384xf32> -> vector<16x384xf32>
    %c3_116 = arith.constant 3 : index
    %c0_117 = arith.constant 0 : index
    %c0_118 = arith.constant 0 : index
    %191 = vector.load %arg11[%c3_116, %c0_117, %c0_118] : memref<4x1x384xf32, #tpu.memory_space<vmem>>, vector<1x1x384xf32>
    %192 = vector.shape_cast %191 : vector<1x1x384xf32> to vector<1x384xf32>
    %193 = vector.broadcast %192 : vector<1x384xf32> to vector<16x384xf32>
    %194 = arith.addf %190, %193 : vector<16x384xf32>
    %195 = arith.addf %187, %194 : vector<16x384xf32>
    %196 = arith.truncf %157 : vector<2x384xf32> to vector<2x384xbf16>
    %c0_119 = arith.constant 0 : index
    %c0_120 = arith.constant 0 : index
    %c0_121 = arith.constant 0 : index
    %197 = vector.load %arg12[%c0_119, %c0_120, %c0_121] : memref<4x384x384xbf16, #tpu.memory_space<vmem>>, vector<1x384x384xbf16>
    %198 = vector.shape_cast %197 : vector<1x384x384xbf16> to vector<384x384xbf16>
    %cst_122 = arith.constant dense<0.000000e+00> : vector<2x384xf32>
    %199 = tpu.matmul %196, %198, %cst_122 {dimension_numbers = #tpu.dot_dimension_numbers<[1], [0], [0], [1], [0, 0, 1, 1], [], []>} : vector<2x384xbf16>, vector<384x384xbf16>, vector<2x384xf32> -> vector<2x384xf32>
    %c0_123 = arith.constant 0 : index
    %c0_124 = arith.constant 0 : index
    %c0_125 = arith.constant 0 : index
    %200 = vector.load %arg13[%c0_123, %c0_124, %c0_125] : memref<4x1x384xf32, #tpu.memory_space<vmem>>, vector<1x1x384xf32>
    %201 = vector.shape_cast %200 : vector<1x1x384xf32> to vector<1x384xf32>
    %202 = vector.broadcast %201 : vector<1x384xf32> to vector<2x384xf32>
    %203 = arith.addf %199, %202 : vector<2x384xf32>
    %cst_126 = arith.constant 0.000000e+00 : f32
    %204 = vector.broadcast %cst_126 : f32 to vector<2x384xf32>
    %205 = arith.maximumf %203, %204 : vector<2x384xf32>
    %206 = arith.truncf %205 : vector<2x384xf32> to vector<2x384xbf16>
    %c1_127 = arith.constant 1 : index
    %c0_128 = arith.constant 0 : index
    %c0_129 = arith.constant 0 : index
    %207 = vector.load %arg12[%c1_127, %c0_128, %c0_129] : memref<4x384x384xbf16, #tpu.memory_space<vmem>>, vector<1x384x384xbf16>
    %208 = vector.shape_cast %207 : vector<1x384x384xbf16> to vector<384x384xbf16>
    %cst_130 = arith.constant dense<0.000000e+00> : vector<2x384xf32>
    %209 = tpu.matmul %206, %208, %cst_130 {dimension_numbers = #tpu.dot_dimension_numbers<[1], [0], [0], [1], [0, 0, 1, 1], [], []>} : vector<2x384xbf16>, vector<384x384xbf16>, vector<2x384xf32> -> vector<2x384xf32>
    %c1_131 = arith.constant 1 : index
    %c0_132 = arith.constant 0 : index
    %c0_133 = arith.constant 0 : index
    %210 = vector.load %arg13[%c1_131, %c0_132, %c0_133] : memref<4x1x384xf32, #tpu.memory_space<vmem>>, vector<1x1x384xf32>
    %211 = vector.shape_cast %210 : vector<1x1x384xf32> to vector<1x384xf32>
    %212 = vector.broadcast %211 : vector<1x384xf32> to vector<2x384xf32>
    %213 = arith.addf %209, %212 : vector<2x384xf32>
    %cst_134 = arith.constant 0.000000e+00 : f32
    %214 = vector.broadcast %cst_134 : f32 to vector<2x384xf32>
    %215 = arith.maximumf %213, %214 : vector<2x384xf32>
    %216 = arith.truncf %215 : vector<2x384xf32> to vector<2x384xbf16>
    %c2_135 = arith.constant 2 : index
    %c0_136 = arith.constant 0 : index
    %c0_137 = arith.constant 0 : index
    %217 = vector.load %arg12[%c2_135, %c0_136, %c0_137] : memref<4x384x384xbf16, #tpu.memory_space<vmem>>, vector<1x384x384xbf16>
    %218 = vector.shape_cast %217 : vector<1x384x384xbf16> to vector<384x384xbf16>
    %cst_138 = arith.constant dense<0.000000e+00> : vector<2x384xf32>
    %219 = tpu.matmul %216, %218, %cst_138 {dimension_numbers = #tpu.dot_dimension_numbers<[1], [0], [0], [1], [0, 0, 1, 1], [], []>} : vector<2x384xbf16>, vector<384x384xbf16>, vector<2x384xf32> -> vector<2x384xf32>
    %c2_139 = arith.constant 2 : index
    %c0_140 = arith.constant 0 : index
    %c0_141 = arith.constant 0 : index
    %220 = vector.load %arg13[%c2_139, %c0_140, %c0_141] : memref<4x1x384xf32, #tpu.memory_space<vmem>>, vector<1x1x384xf32>
    %221 = vector.shape_cast %220 : vector<1x1x384xf32> to vector<1x384xf32>
    %222 = vector.broadcast %221 : vector<1x384xf32> to vector<2x384xf32>
    %223 = arith.addf %219, %222 : vector<2x384xf32>
    %cst_142 = arith.constant 0.000000e+00 : f32
    %224 = vector.broadcast %cst_142 : f32 to vector<2x384xf32>
    %225 = arith.maximumf %223, %224 : vector<2x384xf32>
    %c3_143 = arith.constant 3 : index
    %c0_144 = arith.constant 0 : index
    %c0_145 = arith.constant 0 : index
    %226 = vector.load %arg12[%c3_143, %c0_144, %c0_145] : memref<4x384x384xbf16, #tpu.memory_space<vmem>>, vector<1x384x384xbf16>
    %227 = vector.shape_cast %226 : vector<1x384x384xbf16> to vector<384x384xbf16>
    %cst_146 = arith.constant dense<0.000000e+00> : vector<2x384xf32>
    %228 = tpu.matmul %196, %227, %cst_146 {dimension_numbers = #tpu.dot_dimension_numbers<[1], [0], [0], [1], [0, 0, 1, 1], [], []>} : vector<2x384xbf16>, vector<384x384xbf16>, vector<2x384xf32> -> vector<2x384xf32>
    %c3_147 = arith.constant 3 : index
    %c0_148 = arith.constant 0 : index
    %c0_149 = arith.constant 0 : index
    %229 = vector.load %arg13[%c3_147, %c0_148, %c0_149] : memref<4x1x384xf32, #tpu.memory_space<vmem>>, vector<1x1x384xf32>
    %230 = vector.shape_cast %229 : vector<1x1x384xf32> to vector<1x384xf32>
    %231 = vector.broadcast %230 : vector<1x384xf32> to vector<2x384xf32>
    %232 = arith.addf %228, %231 : vector<2x384xf32>
    %233 = arith.addf %225, %232 : vector<2x384xf32>
    %234 = arith.truncf %233 : vector<2x384xf32> to vector<2x384xbf16>
    %235 = arith.truncf %195 : vector<16x384xf32> to vector<16x384xbf16>
    %cst_150 = arith.constant dense<0.000000e+00> : vector<2x16xf32>
    %236 = tpu.matmul %234, %235, %cst_150 {dimension_numbers = #tpu.dot_dimension_numbers<[1], [1], [0], [0], [0, 0, 1, 0], [], []>} : vector<2x384xbf16>, vector<16x384xbf16>, vector<2x16xf32> -> vector<2x16xf32>
    %c0_151 = arith.constant 0 : index
    %c0_152 = arith.constant 0 : index
    %237 = vector.load %arg3[%c0_151, %c0_152] : memref<2x16xf32, #tpu.memory_space<vmem>>, vector<2x16xf32>
    %238 = arith.mulf %236, %237 : vector<2x16xf32>
    %cst_153 = arith.constant 1.000000e+00 : f32
    %239 = vector.broadcast %cst_153 : f32 to vector<2x16xf32>
    %240 = arith.subf %239, %237 : vector<2x16xf32>
    %241 = arith.mulf %236, %240 : vector<2x16xf32>
    %cst_154 = arith.constant 0.000000e+00 : f32
    %242 = vector.broadcast %cst_154 : f32 to vector<2x16xf32>
    %243 = arith.subf %242, %238 : vector<2x16xf32>
    %cst_155 = arith.constant 0.000000e+00 : f32
    %244 = vector.broadcast %cst_155 : f32 to vector<2x16xf32>
    %245 = arith.maximumf %243, %244 : vector<2x16xf32>
    %246 = vector.broadcast %cst_155 : f32 to vector<2x16xf32>
    %247 = arith.subf %243, %246 : vector<2x16xf32>
    %248 = arith.cmpf one, %247, %247 : vector<2x16xf32>
    %249 = vector.broadcast %cst_155 : f32 to vector<2x16xf32>
    %250 = arith.addf %243, %249 : vector<2x16xf32>
    %251 = math.absf %247 : vector<2x16xf32>
    %cst_156 = arith.constant 0.000000e+00 : f32
    %252 = vector.broadcast %cst_156 : f32 to vector<2x16xf32>
    %253 = arith.subf %252, %251 : vector<2x16xf32>
    %254 = math.exp %253 : vector<2x16xf32>
    %255 = math.log1p %254 : vector<2x16xf32>
    %256 = arith.addf %245, %255 : vector<2x16xf32>
    %257 = arith.select %248, %250, %256 : vector<2x16xi1>, vector<2x16xf32>
    %cst_157 = arith.constant 0.693147182 : f32
    %258 = vector.broadcast %cst_157 : f32 to vector<2x16xf32>
    %259 = arith.subf %258, %257 : vector<2x16xf32>
    %260 = vector.shape_cast %259 : vector<2x16xf32> to vector<1x2x16xf32>
    %cst_158 = arith.constant dense<0.000000e+00> : vector<1xf32>
    %261 = vector.multi_reduction <add>, %260, %cst_158 [1, 2] : vector<1x2x16xf32> to vector<1xf32>
    %262 = vector.shape_cast %261 : vector<1xf32> to vector<1x1x1xf32>
    %263 = vector.extract %262[0, 0, 0] : f32 from vector<1x1x1xf32>
    %264 = vector.broadcast %263 : f32 to vector<1x1xf32>
    %cst_159 = arith.constant 0.000000e+00 : f32
    %265 = vector.broadcast %cst_159 : f32 to vector<2x16xf32>
    %266 = arith.subf %265, %241 : vector<2x16xf32>
    %cst_160 = arith.constant 0.000000e+00 : f32
    %267 = vector.broadcast %cst_160 : f32 to vector<2x16xf32>
    %268 = arith.maximumf %266, %267 : vector<2x16xf32>
    %269 = vector.broadcast %cst_160 : f32 to vector<2x16xf32>
    %270 = arith.subf %266, %269 : vector<2x16xf32>
    %271 = arith.cmpf one, %270, %270 : vector<2x16xf32>
    %272 = vector.broadcast %cst_160 : f32 to vector<2x16xf32>
    %273 = arith.addf %266, %272 : vector<2x16xf32>
    %274 = math.absf %270 : vector<2x16xf32>
    %cst_161 = arith.constant 0.000000e+00 : f32
    %275 = vector.broadcast %cst_161 : f32 to vector<2x16xf32>
    %276 = arith.subf %275, %274 : vector<2x16xf32>
    %277 = math.exp %276 : vector<2x16xf32>
    %278 = math.log1p %277 : vector<2x16xf32>
    %279 = arith.addf %268, %278 : vector<2x16xf32>
    %280 = arith.select %271, %273, %279 : vector<2x16xi1>, vector<2x16xf32>
    %281 = arith.addf %280, %241 : vector<2x16xf32>
    %cst_162 = arith.constant 0.693147182 : f32
    %282 = vector.broadcast %cst_162 : f32 to vector<2x16xf32>
    %283 = arith.subf %281, %282 : vector<2x16xf32>
    %284 = vector.shape_cast %283 : vector<2x16xf32> to vector<1x2x16xf32>
    %cst_163 = arith.constant dense<0.000000e+00> : vector<1xf32>
    %285 = vector.multi_reduction <add>, %284, %cst_163 [1, 2] : vector<1x2x16xf32> to vector<1xf32>
    %286 = vector.shape_cast %285 : vector<1xf32> to vector<1x1x1xf32>
    %287 = vector.extract %286[0, 0, 0] : f32 from vector<1x1x1xf32>
    %288 = vector.broadcast %287 : f32 to vector<1x1xf32>
    %cst_164 = arith.constant 1.600000e+01 : f32
    %289 = vector.broadcast %cst_164 : f32 to vector<1x1xf32>
    %290 = arith.divf %288, %289 : vector<1x1xf32>
    %cst_165 = arith.constant 1.600000e+01 : f32
    %291 = vector.broadcast %cst_165 : f32 to vector<1x1xf32>
    %292 = arith.divf %264, %291 : vector<1x1xf32>
    %293 = arith.subf %290, %292 : vector<1x1xf32>
    %c0_166 = arith.constant 0 : index
    %c0_167 = arith.constant 0 : index
    %294 = vector.load %arg14[%c0_166, %c0_167] : memref<1x1xf32, #tpu.memory_space<vmem>>, vector<1x1xf32>
    tpu.vector_store %arg14[%c0_166, %c0_167], %293 {strides = array<i32>} : memref<1x1xf32, #tpu.memory_space<vmem>>, vector<1x1xf32>,
    return
  }
}

</mosaic_0001>

<llo_original>
// kernel: gcn_infomax_forward.1
$region0: #{gcn_infomax_forward.1}
  #allocation0 [shape = 'u32[]', space=smem, size = 0x4, offset = 0x4, fixed_abs, tag = 'smem constant byte address 0x4 - core index']
  #allocation1 [shape = 'u32[144,128]{1,0:T(1,128)}', space=vmem, size = 0x12000, scoped, tag = 'internal scratch']
  %s0 = inlined_call_operand.vmem [shape: f32[16,128], index: 0, kind: input, shape index: {}]
  %s1 = inlined_call_operand.vmem [shape: bf16[16,16], index: 1, kind: input, shape index: {}]
  %s2 = inlined_call_operand.vmem [shape: bf16[2,16], index: 2, kind: input, shape index: {}]
  %s3 = inlined_call_operand.vmem [shape: f32[2,16], index: 3, kind: input, shape index: {}]
  %s4 = inlined_call_operand.vmem [shape: bf16[3,128,128], index: 4, kind: input, shape index: {}]
  %s5 = inlined_call_operand.vmem [shape: f32[3,1,128], index: 5, kind: input, shape index: {}]
  %s6 = inlined_call_operand.vmem [shape: bf16[3,128,128], index: 6, kind: input, shape index: {}]
  %s7 = inlined_call_operand.vmem [shape: f32[3,1,128], index: 7, kind: input, shape index: {}]
  %s8 = inlined_call_operand.vmem [shape: f32[3,1,128], index: 8, kind: input, shape index: {}]
  %s9 = inlined_call_operand.vmem [shape: f32[3,1,128], index: 9, kind: input, shape index: {}]
  %s10 = inlined_call_operand.vmem [shape: bf16[4,384,384], index: 10, kind: input, shape index: {}]
  %s11 = inlined_call_operand.vmem [shape: f32[4,1,384], index: 11, kind: input, shape index: {}]
  %s12 = inlined_call_operand.vmem [shape: bf16[4,384,384], index: 12, kind: input, shape index: {}]
  %s13 = inlined_call_operand.vmem [shape: f32[4,1,384], index: 13, kind: input, shape index: {}]
  %s14 = inlined_call_operand.hbm [shape: f32[1,1], index: 14, kind: output, shape index: {}]
  %s15 = sld [smem:[#allocation0]]
  $region66: #{gcn_infomax_forward.1} parent=0
    _
  %s17 = ssub.s32 1, %s15
  %s18 = scalar_select 0, %s17, %s15
  $region1: #{gcn_infomax_forward.1} parent=0
    #allocation2 [shape = 'u8[512]{0}', space=vmem, size = 0x400, scoped, tag = 'output window, operand 0, single buffered']
    #allocation3 [shape = 's32[1]{0}', space=sflag, size = 0x4, scoped, tag = 'scoped memory for gcn_infomax_forward.1']
    %19 = vsyncpa [#allocation3], 0
    // Predicated region
    $region2: #{gcn_infomax_forward.1} parent=1 // pred_check
      _
    $region3: #{gcn_infomax_forward.1} parent=1 // pred_check_branch
      %21 = sbr.rel (0) target = $region5
    $region4: #{gcn_infomax_forward.1} parent=1 // pred_region
      _
    $region5: #{gcn_infomax_forward.1} parent=1 // pred_fallthru
      _
    // Predicated region
    $region6: #{gcn_infomax_forward.1} parent=1 // pred_check
      _
    $region7: #{gcn_infomax_forward.1} parent=1 // pred_check_branch
      %23 = sbr.rel (0) target = $region9
    $region8: #{gcn_infomax_forward.1} parent=1 // pred_region
      _
    $region9: #{gcn_infomax_forward.1} parent=1 // pred_fallthru
      _
    // Predicated region
    $region10: #{gcn_infomax_forward.1} parent=1 // pred_check
      _
    $region11: #{gcn_infomax_forward.1} parent=1 // pred_check_branch
      %25 = sbr.rel (0) target = $region13
    $region12: #{gcn_infomax_forward.1} parent=1 // pred_region
      _
    $region13: #{gcn_infomax_forward.1} parent=1 // pred_fallthru
      _
    // Predicated region
    $region14: #{gcn_infomax_forward.1} parent=1 // pred_check
      _
    $region15: #{gcn_infomax_forward.1} parent=1 // pred_check_branch
      %27 = sbr.rel (0) target = $region17
    $region16: #{gcn_infomax_forward.1} parent=1 // pred_region
      _
    $region17: #{gcn_infomax_forward.1} parent=1 // pred_fallthru
      _
    // Predicated region
    $region18: #{gcn_infomax_forward.1} parent=1 // pred_check
      _
    $region19: #{gcn_infomax_forward.1} parent=1 // pred_check_branch
      %29 = sbr.rel (0) target = $region21
    $region20: #{gcn_infomax_forward.1} parent=1 // pred_region
      _
    $region21: #{gcn_infomax_forward.1} parent=1 // pred_fallthru
      _
    // Predicated region
    $region22: #{gcn_infomax_forward.1} parent=1 // pred_check
      _
    $region23: #{gcn_infomax_forward.1} parent=1 // pred_check_branch
      %31 = sbr.rel (0) target = $region25
    $region24: #{gcn_infomax_forward.1} parent=1 // pred_region
      _
    $region25: #{gcn_infomax_forward.1} parent=1 // pred_fallthru
      _
    // Predicated region
    $region26: #{gcn_infomax_forward.1} parent=1 // pred_check
      _
    $region27: #{gcn_infomax_forward.1} parent=1 // pred_check_branch
      %33 = sbr.rel (0) target = $region29
    $region28: #{gcn_infomax_forward.1} parent=1 // pred_region
      _
    $region29: #{gcn_infomax_forward.1} parent=1 // pred_fallthru
      _
    // Predicated region
    $region30: #{gcn_infomax_forward.1} parent=1 // pred_check
      _
    $region31: #{gcn_infomax_forward.1} parent=1 // pred_check_branch
      %35 = sbr.rel (0) target = $region33
    $region32: #{gcn_infomax_forward.1} parent=1 // pred_region
      _
    $region33: #{gcn_infomax_forward.1} parent=1 // pred_fallthru
      _
    // Predicated region
    $region34: #{gcn_infomax_forward.1} parent=1 // pred_check
      _
    $region35: #{gcn_infomax_forward.1} parent=1 // pred_check_branch
      %37 = sbr.rel (0) target = $region37
    $region36: #{gcn_infomax_forward.1} parent=1 // pred_region
      _
    $region37: #{gcn_infomax_forward.1} parent=1 // pred_fallthru
      _
    // Predicated region
    $region38: #{gcn_infomax_forward.1} parent=1 // pred_check
      _
    $region39: #{gcn_infomax_forward.1} parent=1 // pred_check_branch
      %39 = sbr.rel (0) target = $region41
    $region40: #{gcn_infomax_forward.1} parent=1 // pred_region
      _
    $region41: #{gcn_infomax_forward.1} parent=1 // pred_fallthru
      _
    // Predicated region
    $region42: #{gcn_infomax_forward.1} parent=1 // pred_check
      _
    $region43: #{gcn_infomax_forward.1} parent=1 // pred_check_branch
      %41 = sbr.rel (0) target = $region45
    $region44: #{gcn_infomax_forward.1} parent=1 // pred_region
      _
    $region45: #{gcn_infomax_forward.1} parent=1 // pred_fallthru
      _
    // Predicated region
    $region46: #{gcn_infomax_forward.1} parent=1 // pred_check
      _
    $region47: #{gcn_infomax_forward.1} parent=1 // pred_check_branch
      %43 = sbr.rel (0) target = $region49
    $region48: #{gcn_infomax_forward.1} parent=1 // pred_region
      _
    $region49: #{gcn_infomax_forward.1} parent=1 // pred_fallthru
      _
    // Predicated region
    $region50: #{gcn_infomax_forward.1} parent=1 // pred_check
      _
    $region51: #{gcn_infomax_forward.1} parent=1 // pred_check_branch
      %45 = sbr.rel (0) target = $region53
    $region52: #{gcn_infomax_forward.1} parent=1 // pred_region
      _
    $region53: #{gcn_infomax_forward.1} parent=1 // pred_fallthru
      _
    // Predicated region
    $region54: #{gcn_infomax_forward.1} parent=1 // pred_check
      _
    $region55: #{gcn_infomax_forward.1} parent=1 // pred_check_branch
      %47 = sbr.rel (0) target = $region57
    $region56: #{gcn_infomax_forward.1} parent=1 // pred_region
      _
    $region57: #{gcn_infomax_forward.1} parent=1 // pred_fallthru
      _
    %v49 = vld [vmem:[%s1] sm:$0xf]
    %v50 = vld [vmem:[%s1 + $0x4] sm:$0xf]
    %v51 = vld [vmem:[%s2] sm:$0x1]
    %v52 = vld [vmem:[%s0] sm:$0xff]
    %v53 = vld [vmem:[%s0 + $0x8] sm:$0xff]
    %v54 = vld [vmem:[%s4] sm:$0xf]
    %v55 = vld [vmem:[%s4 + $0x4] sm:$0xf]
    %v56 = vld [vmem:[%s4 + $0x8] sm:$0xf]
    %v57 = vld [vmem:[%s4 + $0xc] sm:$0xf]
    %v58 = vld [vmem:[%s4 + $0x10] sm:$0xf]
    %v59 = vld [vmem:[%s4 + $0x14] sm:$0xf]
    %v60 = vld [vmem:[%s4 + $0x18] sm:$0xf]
    %v61 = vld [vmem:[%s4 + $0x1c] sm:$0xf]
    %v62 = vld [vmem:[%s4 + $0x20] sm:$0xf]
    %v63 = vld [vmem:[%s4 + $0x24] sm:$0xf]
    %v64 = vld [vmem:[%s4 + $0x28] sm:$0xf]
    %v65 = vld [vmem:[%s4 + $0x2c] sm:$0xf]
    %v66 = vld [vmem:[%s4 + $0x30] sm:$0xf]
    %v67 = vld [vmem:[%s4 + $0x34] sm:$0xf]
    %v68 = vld [vmem:[%s4 + $0x38] sm:$0xf]
    %v69 = vld [vmem:[%s4 + $0x3c] sm:$0xf]
    %v70 = vld [vmem:[%s6] sm:$0xf]
    %v71 = vld [vmem:[%s6 + $0x4] sm:$0xf]
    %v72 = vld [vmem:[%s6 + $0x8] sm:$0xf]
    %v73 = vld [vmem:[%s6 + $0xc] sm:$0xf]
    %v74 = vld [vmem:[%s6 + $0x10] sm:$0xf]
    %v75 = vld [vmem:[%s6 + $0x14] sm:$0xf]
    %v76 = vld [vmem:[%s6 + $0x18] sm:$0xf]
    %v77 = vld [vmem:[%s6 + $0x1c] sm:$0xf]
    %v78 = vld [vmem:[%s6 + $0x20] sm:$0xf]
    %v79 = vld [vmem:[%s6 + $0x24] sm:$0xf]
    %v80 = vld [vmem:[%s6 + $0x28] sm:$0xf]
    %v81 = vld [vmem:[%s6 + $0x2c] sm:$0xf]
    %v82 = vld [vmem:[%s6 + $0x30] sm:$0xf]
    %v83 = vld [vmem:[%s6 + $0x34] sm:$0xf]
    %v84 = vld [vmem:[%s6 + $0x38] sm:$0xf]
    %v85 = vld [vmem:[%s6 + $0x3c] sm:$0xf]
    %v86 = vld [vmem:[%s5] sm:$0x1]
    %v87 = vld [vmem:[%s7] sm:$0x1]
    %v88 = vld [vmem:[%s8] sm:$0x1]
    %v89 = vld [vmem:[%s9] sm:$0x1]
    %v90 = vpack.c.bf16 %v53, %v52
    %v107 = vunpack.c.l.b16 %v54
    %v108 = vunpack.c.l.b16 %v55
    %v109 = vunpack.c.l.b16 %v56
    %v110 = vunpack.c.l.b16 %v57
    %v111 = vunpack.c.l.b16 %v58
    %v112 = vunpack.c.l.b16 %v59
    %v113 = vunpack.c.l.b16 %v60
    %v114 = vunpack.c.l.b16 %v61
    %v115 = vunpack.c.l.b16 %v62
    %v116 = vunpack.c.l.b16 %v63
    %v117 = vunpack.c.l.b16 %v64
    %v118 = vunpack.c.l.b16 %v65
    %v119 = vunpack.c.l.b16 %v66
    %v120 = vunpack.c.l.b16 %v67
    %v121 = vunpack.c.l.b16 %v68
    %v122 = vunpack.c.l.b16 %v69
    %v123 = vpack.c.b16 %v108, %v107
    %v124 = vpack.c.b16 %v110, %v109
    %v125 = vpack.c.b16 %v112, %v111
    %v126 = vpack.c.b16 %v114, %v113
    %v127 = vpack.c.b16 %v116, %v115
    %v128 = vpack.c.b16 %v118, %v117
    %v129 = vpack.c.b16 %v120, %v119
    %v130 = vpack.c.b16 %v122, %v121
    %139 = vmatprep.subr.bf16.mxu0 0
    %140 = vmatpush1.bf16.msra.mxu0 %v123
    %141 = vmatprep.subr.bf16.mxu0 0
    %142 = vmatpush1.bf16.msra.mxu0 %v124
    %143 = vmatprep.subr.bf16.mxu0 0
    %144 = vmatpush1.bf16.msra.mxu0 %v125
    %145 = vmatprep.subr.bf16.mxu0 0
    %146 = vmatpush1.bf16.msra.mxu0 %v126
    %147 = vmatprep.subr.bf16.mxu0 0
    %148 = vmatpush1.bf16.msra.mxu0 %v127
    %149 = vmatprep.subr.bf16.mxu0 0
    %150 = vmatpush1.bf16.msra.mxu0 %v128
    %151 = vmatprep.subr.bf16.mxu0 0
    %152 = vmatpush1.bf16.msra.mxu0 %v129
    %153 = vmatprep.subr.bf16.mxu0 0
    %154 = vmatpush1.bf16.msra.mxu0 %v130
    %155 = vmatprep.subr.bf16.mxu0 0
    %156 = vmatpush1.bf16.msra.mxu0 0
    %157 = vmatprep.subr.bf16.mxu0 0
    %158 = vmatpush1.bf16.msra.mxu0 0
    %159 = vmatprep.subr.bf16.mxu0 0
    %160 = vmatpush1.bf16.msra.mxu0 0
    %161 = vmatprep.subr.bf16.mxu0 0
    %162 = vmatpush1.bf16.msra.mxu0 0
    %163 = vmatprep.subr.bf16.mxu0 0
    %164 = vmatpush1.bf16.msra.mxu0 0
    %165 = vmatprep.subr.bf16.mxu0 0
    %166 = vmatpush1.bf16.msra.mxu0 0
    %167 = vmatprep.subr.bf16.mxu0 0
    %168 = vmatpush1.bf16.msra.mxu0 0
    %169 = vmatprep.subr.bf16.mxu0 0
    %170 = vmatpush1.bf16.msra.mxu0 0
    %171 = vmatprep.mubr.bf16.mxu0 0
    %172 = vmatmul.mubr.bf16.gmra.mrb[0].mxu0 %v90
    %v173 = vpop.f32.mrb[0].mxu0
    %v174 = vadd.f32 0.0, %v173
    %v175 = vpop.f32.mrb[0].mxu0
    %v176 = vpop.f32.mrb[0].mxu0
    %v177 = vadd.f32 0.0, %v176
    %v178 = vpop.f32.mrb[0].mxu0
    %179 = vdwg.mxu0
    %v180 = vpack.c.bf16 %v177, %v174
    %v183 = vunpack.c.l.b16 %v49
    %v184 = vunpack.c.l.b16 %v50
    %v185 = vpack.c.b16 %v184, %v183
    %vm186 = vcmask 130048
    %v188 = vsel %vm186, %v185, 0
    %190 = vmatprep.subr.bf16.mxu0 0
    %191 = vmatpush1.bf16.msra.mxu0 %v180
    %192 = vmatprep.subr.bf16.mxu0 0
    %193 = vmatpush1.bf16.msra.mxu0 0
    %194 = vmatprep.subr.bf16.mxu0 0
    %195 = vmatpush1.bf16.msra.mxu0 0
    %196 = vmatprep.subr.bf16.mxu0 0
    %197 = vmatpush1.bf16.msra.mxu0 0
    %198 = vmatprep.subr.bf16.mxu0 0
    %199 = vmatpush1.bf16.msra.mxu0 0
    %200 = vmatprep.subr.bf16.mxu0 0
    %201 = vmatpush1.bf16.msra.mxu0 0
    %202 = vmatprep.subr.bf16.mxu0 0
    %203 = vmatpush1.bf16.msra.mxu0 0
    %204 = vmatprep.subr.bf16.mxu0 0
    %205 = vmatpush1.bf16.msra.mxu0 0
    %206 = vmatprep.subr.bf16.mxu0 0
    %207 = vmatpush1.bf16.msra.mxu0 0
    %208 = vmatprep.subr.bf16.mxu0 0
    %209 = vmatpush1.bf16.msra.mxu0 0
    %210 = vmatprep.subr.bf16.mxu0 0
    %211 = vmatpush1.bf16.msra.mxu0 0
    %212 = vmatprep.subr.bf16.mxu0 0
    %213 = vmatpush1.bf16.msra.mxu0 0
    %214 = vmatprep.subr.bf16.mxu0 0
    %215 = vmatpush1.bf16.msra.mxu0 0
    %216 = vmatprep.subr.bf16.mxu0 0
    %217 = vmatpush1.bf16.msra.mxu0 0
    %218 = vmatprep.subr.bf16.mxu0 0
    %219 = vmatpush1.bf16.msra.mxu0 0
    %220 = vmatprep.subr.bf16.mxu0 0
    %221 = vmatpush1.bf16.msra.mxu0 0
    %222 = vmatprep.mubr.bf16.mxu0 0
    %223 = vmatmul.mubr.bf16.gmra.mrb[0].mxu0 %v188
    %v224 = vpop.f32.mrb[0].mxu0
    %v225 = vadd.f32 %v174, %v224
    %v226 = vpop.f32.mrb[0].mxu0
    %v227 = vpop.f32.mrb[0].mxu0
    %v228 = vadd.f32 %v177, %v227
    %v229 = vpop.f32.mrb[0].mxu0
    %230 = vdwg.mxu0
    %v232 = vlaneseq
    %v233 = vshrl.u32 %v232, 7
    %v234 = vsub.s32 0, %v233
    %v235 = vrot.slane %v86, %v234
    %v237 = vadd.f32 %v225, %v235
    %v238 = vadd.f32 %v228, %v235
    %v239 = vmax.f32 %v237, 0.0
    %v240 = vmax.f32 %v238, 0.0
    %v241 = vpack.c.bf16 %v240, %v239
    %v243 = vlaneseq
    %v244 = vshrl.u32 %v243, 7
    %v245 = vsub.s32 0, %v244
    %v246 = vrot.slane %v87, %v245
    %v264 = vunpack.c.l.b16 %v70
    %v265 = vunpack.c.l.b16 %v71
    %v266 = vunpack.c.l.b16 %v72
    %v267 = vunpack.c.l.b16 %v73
    %v268 = vunpack.c.l.b16 %v74
    %v269 = vunpack.c.l.b16 %v75
    %v270 = vunpack.c.l.b16 %v76
    %v271 = vunpack.c.l.b16 %v77
    %v272 = vunpack.c.l.b16 %v78
    %v273 = vunpack.c.l.b16 %v79
    %v274 = vunpack.c.l.b16 %v80
    %v275 = vunpack.c.l.b16 %v81
    %v276 = vunpack.c.l.b16 %v82
    %v277 = vunpack.c.l.b16 %v83
    %v278 = vunpack.c.l.b16 %v84
    %v279 = vunpack.c.l.b16 %v85
    %v280 = vpack.c.b16 %v265, %v264
    %v281 = vpack.c.b16 %v267, %v266
    %v282 = vpack.c.b16 %v269, %v268
    %v283 = vpack.c.b16 %v271, %v270
    %v284 = vpack.c.b16 %v273, %v272
    %v285 = vpack.c.b16 %v275, %v274
    %v286 = vpack.c.b16 %v277, %v276
    %v287 = vpack.c.b16 %v279, %v278
    %296 = vmatprep.subr.bf16.mxu0 0
    %297 = vmatpush1.bf16.msra.mxu0 %v280
    %298 = vmatprep.subr.bf16.mxu0 0
    %299 = vmatpush1.bf16.msra.mxu0 %v281
    %300 = vmatprep.subr.bf16.mxu0 0
    %301 = vmatpush1.bf16.msra.mxu0 %v282
    %302 = vmatprep.subr.bf16.mxu0 0
    %303 = vmatpush1.bf16.msra.mxu0 %v283
    %304 = vmatprep.subr.bf16.mxu0 0
    %305 = vmatpush1.bf16.msra.mxu0 %v284
    %306 = vmatprep.subr.bf16.mxu0 0
    %307 = vmatpush1.bf16.msra.mxu0 %v285
    %308 = vmatprep.subr.bf16.mxu0 0
    %309 = vmatpush1.bf16.msra.mxu0 %v286
    %310 = vmatprep.subr.bf16.mxu0 0
    %311 = vmatpush1.bf16.msra.mxu0 %v287
    %312 = vmatprep.subr.bf16.mxu0 0
    %313 = vmatpush1.bf16.msra.mxu0 0
    %314 = vmatprep.subr.bf16.mxu0 0
    %315 = vmatpush1.bf16.msra.mxu0 0
    %316 = vmatprep.subr.bf16.mxu0 0
    %317 = vmatpush1.bf16.msra.mxu0 0
    %318 = vmatprep.subr.bf16.mxu0 0
    %319 = vmatpush1.bf16.msra.mxu0 0
    %320 = vmatprep.subr.bf16.mxu0 0
    %321 = vmatpush1.bf16.msra.mxu0 0
    %322 = vmatprep.subr.bf16.mxu0 0
    %323 = vmatpush1.bf16.msra.mxu0 0
    %324 = vmatprep.subr.bf16.mxu0 0
    %325 = vmatpush1.bf16.msra.mxu0 0
    %326 = vmatprep.subr.bf16.mxu0 0
    %327 = vmatpush1.bf16.msra.mxu0 0
    %328 = vmatprep.mubr.bf16.mxu0 0
    %329 = vmatmul.mubr.bf16.gmra.mrb[0].mxu0 %v241
    %v330 = vpop.f32.mrb[0].mxu0
    %v331 = vadd.f32 %v246, %v330
    %v332 = vpop.f32.mrb[0].mxu0
    %v333 = vpop.f32.mrb[0].mxu0
    %v334 = vadd.f32 %v246, %v333
    %v335 = vpop.f32.mrb[0].mxu0
    %336 = vdwg.mxu0
    %v337 = vmax.f32 %v331, 0.0
    %v338 = vmax.f32 %v334, 0.0
    %v339 = vadd.f32 %v337, %v338
    %v340 = vrot.slane %v339, 4
    %v341 = vadd.f32 %v339, %v340
    %v342 = vrot.slane %v341, 2
    %v343 = vadd.f32 %v341, %v342
    %v344 = vrot.slane %v343, 1
    %v345 = vadd.f32 %v343, %v344
    %v346 = vrcp.pop 16.0
    %v347 = vmul.f32 %v345, %v346
    %v348 = vsub.f32 %v337, %v347
    %v349 = vsub.f32 %v338, %v347
    %v350 = vmul.f32 %v348, %v348
    %v351 = vmul.f32 %v349, %v349
    %v352 = vadd.f32 %v350, %v351
    %v353 = vrot.slane %v352, 4
    %v354 = vadd.f32 %v352, %v353
    %v355 = vrot.slane %v354, 2
    %v356 = vadd.f32 %v354, %v355
    %v357 = vrot.slane %v356, 1
    %v358 = vadd.f32 %v356, %v357
    %v359 = vmul.f32 %v358, %v346
    %v360 = vadd.f32 %v359, 1e-05
    %v361 = vrsqrt.pop %v360
    %v362 = vmul.f32 %v348, %v361
    %v363 = vmul.f32 %v349, %v361
    %v365 = vlaneseq
    %v366 = vshrl.u32 %v365, 7
    %v367 = vsub.s32 0, %v366
    %v368 = vrot.slane %v88, %v367
    %v370 = vmul.f32 %v362, %v368
    %v371 = vmul.f32 %v363, %v368
    %v373 = vlaneseq
    %v374 = vshrl.u32 %v373, 7
    %v375 = vsub.s32 0, %v374
    %v376 = vrot.slane %v89, %v375
    %v378 = vadd.f32 %v370, %v376
    %v379 = vadd.f32 %v371, %v376
    %v380 = vpack.c.bf16 %v379, %v378
    %v382 = vsel %vm186, %v51, 0
    %384 = vmatprep.subr.bf16.mxu0 0
    %385 = vmatpush1.bf16.msra.mxu0 %v380
    %386 = vmatprep.subr.bf16.mxu0 0
    %387 = vmatpush1.bf16.msra.mxu0 0
    %388 = vmatprep.subr.bf16.mxu0 0
    %389 = vmatpush1.bf16.msra.mxu0 0
    %390 = vmatprep.subr.bf16.mxu0 0
    %391 = vmatpush1.bf16.msra.mxu0 0
    %392 = vmatprep.subr.bf16.mxu0 0
    %393 = vmatpush1.bf16.msra.mxu0 0
    %394 = vmatprep.subr.bf16.mxu0 0
    %395 = vmatpush1.bf16.msra.mxu0 0
    %396 = vmatprep.subr.bf16.mxu0 0
    %397 = vmatpush1.bf16.msra.mxu0 0
    %398 = vmatprep.subr.bf16.mxu0 0
    %399 = vmatpush1.bf16.msra.mxu0 0
    %400 = vmatprep.subr.bf16.mxu0 0
    %401 = vmatpush1.bf16.msra.mxu0 0
    %402 = vmatprep.subr.bf16.mxu0 0
    %403 = vmatpush1.bf16.msra.mxu0 0
    %404 = vmatprep.subr.bf16.mxu0 0
    %405 = vmatpush1.bf16.msra.mxu0 0
    %406 = vmatprep.subr.bf16.mxu0 0
    %407 = vmatpush1.bf16.msra.mxu0 0
    %408 = vmatprep.subr.bf16.mxu0 0
    %409 = vmatpush1.bf16.msra.mxu0 0
    %410 = vmatprep.subr.bf16.mxu0 0
    %411 = vmatpush1.bf16.msra.mxu0 0
    %412 = vmatprep.subr.bf16.mxu0 0
    %413 = vmatpush1.bf16.msra.mxu0 0
    %414 = vmatprep.subr.bf16.mxu0 0
    %415 = vmatpush1.bf16.msra.mxu0 0
    %416 = vmatprep.mubr.bf16.mxu0 0
    %417 = vmatmul.mubr.bf16.gmra.mrb[0].mxu0 %v382
    %v418 = vpop.f32.mrb[0].mxu0
    %v419 = vadd.f32 0.0, %v418
    %v420 = vpop.f32.mrb[0].mxu0
    %v421 = vpop.f32.mrb[0].mxu0
    %v422 = vpop.f32.mrb[0].mxu0
    %423 = vdwg.mxu0
    %s424 = scalar_lea.vmem %s4, 64
    %v425 = vld [vmem:[%s424] sm:$0xf]
    %v426 = vld [vmem:[%s424 + $0x4] sm:$0xf]
    %v427 = vld [vmem:[%s424 + $0x8] sm:$0xf]
    %v428 = vld [vmem:[%s424 + $0xc] sm:$0xf]
    %v429 = vld [vmem:[%s424 + $0x10] sm:$0xf]
    %v430 = vld [vmem:[%s424 + $0x14] sm:$0xf]
    %v431 = vld [vmem:[%s424 + $0x18] sm:$0xf]
    %v432 = vld [vmem:[%s424 + $0x1c] sm:$0xf]
    %v433 = vld [vmem:[%s424 + $0x20] sm:$0xf]
    %v434 = vld [vmem:[%s424 + $0x24] sm:$0xf]
    %v435 = vld [vmem:[%s424 + $0x28] sm:$0xf]
    %v436 = vld [vmem:[%s424 + $0x2c] sm:$0xf]
    %v437 = vld [vmem:[%s424 + $0x30] sm:$0xf]
    %v438 = vld [vmem:[%s424 + $0x34] sm:$0xf]
    %v439 = vld [vmem:[%s424 + $0x38] sm:$0xf]
    %v440 = vld [vmem:[%s424 + $0x3c] sm:$0xf]
    %s441 = scalar_lea.vmem %s6, 64
    %v442 = vld [vmem:[%s441] sm:$0xf]
    %v443 = vld [vmem:[%s441 + $0x4] sm:$0xf]
    %v444 = vld [vmem:[%s441 + $0x8] sm:$0xf]
    %v445 = vld [vmem:[%s441 + $0xc] sm:$0xf]
    %v446 = vld [vmem:[%s441 + $0x10] sm:$0xf]
    %v447 = vld [vmem:[%s441 + $0x14] sm:$0xf]
    %v448 = vld [vmem:[%s441 + $0x18] sm:$0xf]
    %v449 = vld [vmem:[%s441 + $0x1c] sm:$0xf]
    %v450 = vld [vmem:[%s441 + $0x20] sm:$0xf]
    %v451 = vld [vmem:[%s441 + $0x24] sm:$0xf]
    %v452 = vld [vmem:[%s441 + $0x28] sm:$0xf]
    %v453 = vld [vmem:[%s441 + $0x2c] sm:$0xf]
    %v454 = vld [vmem:[%s441 + $0x30] sm:$0xf]
    %v455 = vld [vmem:[%s441 + $0x34] sm:$0xf]
    %v456 = vld [vmem:[%s441 + $0x38] sm:$0xf]
    %v457 = vld [vmem:[%s441 + $0x3c] sm:$0xf]
    %s458 = scalar_lea.vmem %s5, 1
    %v459 = vld [vmem:[%s458] sm:$0x1]
    %s460 = scalar_lea.vmem %s7, 1
    %v461 = vld [vmem:[%s460] sm:$0x1]
    %s462 = scalar_lea.vmem %s8, 1
    %v463 = vld [vmem:[%s462] sm:$0x1]
    %s464 = scalar_lea.vmem %s9, 1
    %v465 = vld [vmem:[%s464] sm:$0x1]
    %v482 = vunpack.c.l.b16 %v425
    %v483 = vunpack.c.l.b16 %v426
    %v484 = vunpack.c.l.b16 %v427
    %v485 = vunpack.c.l.b16 %v428
    %v486 = vunpack.c.l.b16 %v429
    %v487 = vunpack.c.l.b16 %v430
    %v488 = vunpack.c.l.b16 %v431
    %v489 = vunpack.c.l.b16 %v432
    %v490 = vunpack.c.l.b16 %v433
    %v491 = vunpack.c.l.b16 %v434
    %v492 = vunpack.c.l.b16 %v435
    %v493 = vunpack.c.l.b16 %v436
    %v494 = vunpack.c.l.b16 %v437
    %v495 = vunpack.c.l.b16 %v438
    %v496 = vunpack.c.l.b16 %v439
    %v497 = vunpack.c.l.b16 %v440
    %v498 = vpack.c.b16 %v483, %v482
    %v499 = vpack.c.b16 %v485, %v484
    %v500 = vpack.c.b16 %v487, %v486
    %v501 = vpack.c.b16 %v489, %v488
    %v502 = vpack.c.b16 %v491, %v490
    %v503 = vpack.c.b16 %v493, %v492
    %v504 = vpack.c.b16 %v495, %v494
    %v505 = vpack.c.b16 %v497, %v496
    %514 = vmatprep.subr.bf16.mxu0 0
    %515 = vmatpush1.bf16.msra.mxu0 %v498
    %516 = vmatprep.subr.bf16.mxu0 0
    %517 = vmatpush1.bf16.msra.mxu0 %v499
    %518 = vmatprep.subr.bf16.mxu0 0
    %519 = vmatpush1.bf16.msra.mxu0 %v500
    %520 = vmatprep.subr.bf16.mxu0 0
    %521 = vmatpush1.bf16.msra.mxu0 %v501
    %522 = vmatprep.subr.bf16.mxu0 0
    %523 = vmatpush1.bf16.msra.mxu0 %v502
    %524 = vmatprep.subr.bf16.mxu0 0
    %525 = vmatpush1.bf16.msra.mxu0 %v503
    %526 = vmatprep.subr.bf16.mxu0 0
    %527 = vmatpush1.bf16.msra.mxu0 %v504
    %528 = vmatprep.subr.bf16.mxu0 0
    %529 = vmatpush1.bf16.msra.mxu0 %v505
    %530 = vmatprep.subr.bf16.mxu0 0
    %531 = vmatpush1.bf16.msra.mxu0 0
    %532 = vmatprep.subr.bf16.mxu0 0
    %533 = vmatpush1.bf16.msra.mxu0 0
    %534 = vmatprep.subr.bf16.mxu0 0
    %535 = vmatpush1.bf16.msra.mxu0 0
    %536 = vmatprep.subr.bf16.mxu0 0
    %537 = vmatpush1.bf16.msra.mxu0 0
    %538 = vmatprep.subr.bf16.mxu0 0
    %539 = vmatpush1.bf16.msra.mxu0 0
    %540 = vmatprep.subr.bf16.mxu0 0
    %541 = vmatpush1.bf16.msra.mxu0 0
    %542 = vmatprep.subr.bf16.mxu0 0
    %543 = vmatpush1.bf16.msra.mxu0 0
    %544 = vmatprep.subr.bf16.mxu0 0
    %545 = vmatpush1.bf16.msra.mxu0 0
    %546 = vmatprep.mubr.bf16.mxu0 0
    %547 = vmatmul.mubr.bf16.gmra.mrb[0].mxu0 %v380
    %v548 = vpop.f32.mrb[0].mxu0
    %v549 = vadd.f32 0.0, %v548
    %v550 = vpop.f32.mrb[0].mxu0
    %v551 = vpop.f32.mrb[0].mxu0
    %v552 = vadd.f32 0.0, %v551
    %v553 = vpop.f32.mrb[0].mxu0
    %554 = vdwg.mxu0
    %v555 = vpack.c.bf16 %v552, %v549
    %556 = vmatprep.subr.bf16.mxu0 0
    %557 = vmatpush1.bf16.msra.mxu0 %v555
    %558 = vmatprep.subr.bf16.mxu0 0
    %559 = vmatpush1.bf16.msra.mxu0 0
    %560 = vmatprep.subr.bf16.mxu0 0
    %561 = vmatpush1.bf16.msra.mxu0 0
    %562 = vmatprep.subr.bf16.mxu0 0
    %563 = vmatpush1.bf16.msra.mxu0 0
    %564 = vmatprep.subr.bf16.mxu0 0
    %565 = vmatpush1.bf16.msra.mxu0 0
    %566 = vmatprep.subr.bf16.mxu0 0
    %567 = vmatpush1.bf16.msra.mxu0 0
    %568 = vmatprep.subr.bf16.mxu0 0
    %569 = vmatpush1.bf16.msra.mxu0 0
    %570 = vmatprep.subr.bf16.mxu0 0
    %571 = vmatpush1.bf16.msra.mxu0 0
    %572 = vmatprep.subr.bf16.mxu0 0
    %573 = vmatpush1.bf16.msra.mxu0 0
    %574 = vmatprep.subr.bf16.mxu0 0
    %575 = vmatpush1.bf16.msra.mxu0 0
    %576 = vmatprep.subr.bf16.mxu0 0
    %577 = vmatpush1.bf16.msra.mxu0 0
    %578 = vmatprep.subr.bf16.mxu0 0
    %579 = vmatpush1.bf16.msra.mxu0 0
    %580 = vmatprep.subr.bf16.mxu0 0
    %581 = vmatpush1.bf16.msra.mxu0 0
    %582 = vmatprep.subr.bf16.mxu0 0
    %583 = vmatpush1.bf16.msra.mxu0 0
    %584 = vmatprep.subr.bf16.mxu0 0
    %585 = vmatpush1.bf16.msra.mxu0 0
    %586 = vmatprep.subr.bf16.mxu0 0
    %587 = vmatpush1.bf16.msra.mxu0 0
    %588 = vmatprep.mubr.bf16.mxu0 0
    %589 = vmatmul.mubr.bf16.gmra.mrb[0].mxu0 %v188
    %v590 = vpop.f32.mrb[0].mxu0
    %v591 = vadd.f32 %v549, %v590
    %v592 = vpop.f32.mrb[0].mxu0
    %v593 = vpop.f32.mrb[0].mxu0
    %v594 = vadd.f32 %v552, %v593
    %v595 = vpop.f32.mrb[0].mxu0
    %596 = vdwg.mxu0
    %v598 = vlaneseq
    %v599 = vshrl.u32 %v598, 7
    %v600 = vsub.s32 0, %v599
    %v601 = vrot.slane %v459, %v600
    %v603 = vadd.f32 %v591, %v601
    %v604 = vadd.f32 %v594, %v601
    %v605 = vmax.f32 %v603, 0.0
    %v606 = vmax.f32 %v604, 0.0
    %v607 = vpack.c.bf16 %v606, %v605
    %v609 = vlaneseq
    %v610 = vshrl.u32 %v609, 7
    %v611 = vsub.s32 0, %v610
    %v612 = vrot.slane %v461, %v611
    %v630 = vunpack.c.l.b16 %v442
    %v631 = vunpack.c.l.b16 %v443
    %v632 = vunpack.c.l.b16 %v444
    %v633 = vunpack.c.l.b16 %v445
    %v634 = vunpack.c.l.b16 %v446
    %v635 = vunpack.c.l.b16 %v447
    %v636 = vunpack.c.l.b16 %v448
    %v637 = vunpack.c.l.b16 %v449
    %v638 = vunpack.c.l.b16 %v450
    %v639 = vunpack.c.l.b16 %v451
    %v640 = vunpack.c.l.b16 %v452
    %v641 = vunpack.c.l.b16 %v453
    %v642 = vunpack.c.l.b16 %v454
    %v643 = vunpack.c.l.b16 %v455
    %v644 = vunpack.c.l.b16 %v456
    %v645 = vunpack.c.l.b16 %v457
    %v646 = vpack.c.b16 %v631, %v630
    %v647 = vpack.c.b16 %v633, %v632
    %v648 = vpack.c.b16 %v635, %v634
    %v649 = vpack.c.b16 %v637, %v636
    %v650 = vpack.c.b16 %v639, %v638
    %v651 = vpack.c.b16 %v641, %v640
    %v652 = vpack.c.b16 %v643, %v642
    %v653 = vpack.c.b16 %v645, %v644
    %662 = vmatprep.subr.bf16.mxu0 0
    %663 = vmatpush1.bf16.msra.mxu0 %v646
    %664 = vmatprep.subr.bf16.mxu0 0
    %665 = vmatpush1.bf16.msra.mxu0 %v647
    %666 = vmatprep.subr.bf16.mxu0 0
    %667 = vmatpush1.bf16.msra.mxu0 %v648
    %668 = vmatprep.subr.bf16.mxu0 0
    %669 = vmatpush1.bf16.msra.mxu0 %v649
    %670 = vmatprep.subr.bf16.mxu0 0
    %671 = vmatpush1.bf16.msra.mxu0 %v650
    %672 = vmatprep.subr.bf16.mxu0 0
    %673 = vmatpush1.bf16.msra.mxu0 %v651
    %674 = vmatprep.subr.bf16.mxu0 0
    %675 = vmatpush1.bf16.msra.mxu0 %v652
    %676 = vmatprep.subr.bf16.mxu0 0
    %677 = vmatpush1.bf16.msra.mxu0 %v653
    %678 = vmatprep.subr.bf16.mxu0 0
    %679 = vmatpush1.bf16.msra.mxu0 0
    %680 = vmatprep.subr.bf16.mxu0 0
    %681 = vmatpush1.bf16.msra.mxu0 0
    %682 = vmatprep.subr.bf16.mxu0 0
    %683 = vmatpush1.bf16.msra.mxu0 0
    %684 = vmatprep.subr.bf16.mxu0 0
    %685 = vmatpush1.bf16.msra.mxu0 0
    %686 = vmatprep.subr.bf16.mxu0 0
    %687 = vmatpush1.bf16.msra.mxu0 0
    %688 = vmatprep.subr.bf16.mxu0 0
    %689 = vmatpush1.bf16.msra.mxu0 0
    %690 = vmatprep.subr.bf16.mxu0 0
    %691 = vmatpush1.bf16.msra.mxu0 0
    %692 = vmatprep.subr.bf16.mxu0 0
    %693 = vmatpush1.bf16.msra.mxu0 0
    %694 = vmatprep.mubr.bf16.mxu0 0
    %695 = vmatmul.mubr.bf16.gmra.mrb[0].mxu0 %v607
    %v696 = vpop.f32.mrb[0].mxu0
    %v697 = vadd.f32 %v612, %v696
    %v698 = vpop.f32.mrb[0].mxu0
    %v699 = vpop.f32.mrb[0].mxu0
    %v700 = vadd.f32 %v612, %v699
    %v701 = vpop.f32.mrb[0].mxu0
    %702 = vdwg.mxu0
    %v703 = vmax.f32 %v697, 0.0
    %v704 = vmax.f32 %v700, 0.0
    %v705 = vadd.f32 %v703, %v704
    %v706 = vrot.slane %v705, 4
    %v707 = vadd.f32 %v705, %v706
    %v708 = vrot.slane %v707, 2
    %v709 = vadd.f32 %v707, %v708
    %v710 = vrot.slane %v709, 1
    %v711 = vadd.f32 %v709, %v710
    %v712 = vmul.f32 %v711, %v346
    %v713 = vsub.f32 %v703, %v712
    %v714 = vsub.f32 %v704, %v712
    %v715 = vmul.f32 %v713, %v713
    %v716 = vmul.f32 %v714, %v714
    %v717 = vadd.f32 %v715, %v716
    %v718 = vrot.slane %v717, 4
    %v719 = vadd.f32 %v717, %v718
    %v720 = vrot.slane %v719, 2
    %v721 = vadd.f32 %v719, %v720
    %v722 = vrot.slane %v721, 1
    %v723 = vadd.f32 %v721, %v722
    %v724 = vmul.f32 %v723, %v346
    %v725 = vadd.f32 %v724, 1e-05
    %v726 = vrsqrt.pop %v725
    %v727 = vmul.f32 %v713, %v726
    %v728 = vmul.f32 %v714, %v726
    %v730 = vlaneseq
    %v731 = vshrl.u32 %v730, 7
    %v732 = vsub.s32 0, %v731
    %v733 = vrot.slane %v463, %v732
    %v735 = vmul.f32 %v727, %v733
    %v736 = vmul.f32 %v728, %v733
    %v738 = vlaneseq
    %v739 = vshrl.u32 %v738, 7
    %v740 = vsub.s32 0, %v739
    %v741 = vrot.slane %v465, %v740
    %v743 = vadd.f32 %v735, %v741
    %v744 = vadd.f32 %v736, %v741
    %v745 = vpack.c.bf16 %v744, %v743
    %746 = vmatprep.subr.bf16.mxu0 0
    %747 = vmatpush1.bf16.msra.mxu0 %v745
    %748 = vmatprep.subr.bf16.mxu0 0
    %749 = vmatpush1.bf16.msra.mxu0 0
    %750 = vmatprep.subr.bf16.mxu0 0
    %751 = vmatpush1.bf16.msra.mxu0 0
    %752 = vmatprep.subr.bf16.mxu0 0
    %753 = vmatpush1.bf16.msra.mxu0 0
    %754 = vmatprep.subr.bf16.mxu0 0
    %755 = vmatpush1.bf16.msra.mxu0 0
    %756 = vmatprep.subr.bf16.mxu0 0
    %757 = vmatpush1.bf16.msra.mxu0 0
    %758 = vmatprep.subr.bf16.mxu0 0
    %759 = vmatpush1.bf16.msra.mxu0 0
    %760 = vmatprep.subr.bf16.mxu0 0
    %761 = vmatpush1.bf16.msra.mxu0 0
    %762 = vmatprep.subr.bf16.mxu0 0
    %763 = vmatpush1.bf16.msra.mxu0 0
    %764 = vmatprep.subr.bf16.mxu0 0
    %765 = vmatpush1.bf16.msra.mxu0 0
    %766 = vmatprep.subr.bf16.mxu0 0
    %767 = vmatpush1.bf16.msra.mxu0 0
    %768 = vmatprep.subr.bf16.mxu0 0
    %769 = vmatpush1.bf16.msra.mxu0 0
    %770 = vmatprep.subr.bf16.mxu0 0
    %771 = vmatpush1.bf16.msra.mxu0 0
    %772 = vmatprep.subr.bf16.mxu0 0
    %773 = vmatpush1.bf16.msra.mxu0 0
    %774 = vmatprep.subr.bf16.mxu0 0
    %775 = vmatpush1.bf16.msra.mxu0 0
    %776 = vmatprep.subr.bf16.mxu0 0
    %777 = vmatpush1.bf16.msra.mxu0 0
    %778 = vmatprep.mubr.bf16.mxu0 0
    %779 = vmatmul.mubr.bf16.gmra.mrb[0].mxu0 %v382
    %v780 = vpop.f32.mrb[0].mxu0
    %v781 = vadd.f32 0.0, %v780
    %v782 = vpop.f32.mrb[0].mxu0
    %v783 = vpop.f32.mrb[0].mxu0
    %v784 = vpop.f32.mrb[0].mxu0
    %785 = vdwg.mxu0
    %s786 = scalar_lea.vmem %s4, 128
    %v787 = vld [vmem:[%s786] sm:$0xf]
    %v788 = vld [vmem:[%s786 + $0x4] sm:$0xf]
    %v789 = vld [vmem:[%s786 + $0x8] sm:$0xf]
    %v790 = vld [vmem:[%s786 + $0xc] sm:$0xf]
    %v791 = vld [vmem:[%s786 + $0x10] sm:$0xf]
    %v792 = vld [vmem:[%s786 + $0x14] sm:$0xf]
    %v793 = vld [vmem:[%s786 + $0x18] sm:$0xf]
    %v794 = vld [vmem:[%s786 + $0x1c] sm:$0xf]
    %v795 = vld [vmem:[%s786 + $0x20] sm:$0xf]
    %v796 = vld [vmem:[%s786 + $0x24] sm:$0xf]
    %v797 = vld [vmem:[%s786 + $0x28] sm:$0xf]
    %v798 = vld [vmem:[%s786 + $0x2c] sm:$0xf]
    %v799 = vld [vmem:[%s786 + $0x30] sm:$0xf]
    %v800 = vld [vmem:[%s786 + $0x34] sm:$0xf]
    %v801 = vld [vmem:[%s786 + $0x38] sm:$0xf]
    %v802 = vld [vmem:[%s786 + $0x3c] sm:$0xf]
    %s803 = scalar_lea.vmem %s6, 128
    %v804 = vld [vmem:[%s803] sm:$0xf]
    %v805 = vld [vmem:[%s803 + $0x4] sm:$0xf]
    %v806 = vld [vmem:[%s803 + $0x8] sm:$0xf]
    %v807 = vld [vmem:[%s803 + $0xc] sm:$0xf]
    %v808 = vld [vmem:[%s803 + $0x10] sm:$0xf]
    %v809 = vld [vmem:[%s803 + $0x14] sm:$0xf]
    %v810 = vld [vmem:[%s803 + $0x18] sm:$0xf]
    %v811 = vld [vmem:[%s803 + $0x1c] sm:$0xf]
    %v812 = vld [vmem:[%s803 + $0x20] sm:$0xf]
    %v813 = vld [vmem:[%s803 + $0x24] sm:$0xf]
    %v814 = vld [vmem:[%s803 + $0x28] sm:$0xf]
    %v815 = vld [vmem:[%s803 + $0x2c] sm:$0xf]
    %v816 = vld [vmem:[%s803 + $0x30] sm:$0xf]
    %v817 = vld [vmem:[%s803 + $0x34] sm:$0xf]
    %v818 = vld [vmem:[%s803 + $0x38] sm:$0xf]
    %v819 = vld [vmem:[%s803 + $0x3c] sm:$0xf]
    %s820 = scalar_lea.vmem %s5, 2
    %v821 = vld [vmem:[%s820] sm:$0x1]
    %s822 = scalar_lea.vmem %s7, 2
    %v823 = vld [vmem:[%s822] sm:$0x1]
    %s824 = scalar_lea.vmem %s8, 2
    %v825 = vld [vmem:[%s824] sm:$0x1]
    %s826 = scalar_lea.vmem %s9, 2
    %v827 = vld [vmem:[%s826] sm:$0x1]
    %v844 = vunpack.c.l.b16 %v787
    %v845 = vunpack.c.l.b16 %v788
    %v846 = vunpack.c.l.b16 %v789
    %v847 = vunpack.c.l.b16 %v790
    %v848 = vunpack.c.l.b16 %v791
    %v849 = vunpack.c.l.b16 %v792
    %v850 = vunpack.c.l.b16 %v793
    %v851 = vunpack.c.l.b16 %v794
    %v852 = vunpack.c.l.b16 %v795
    %v853 = vunpack.c.l.b16 %v796
    %v854 = vunpack.c.l.b16 %v797
    %v855 = vunpack.c.l.b16 %v798
    %v856 = vunpack.c.l.b16 %v799
    %v857 = vunpack.c.l.b16 %v800
    %v858 = vunpack.c.l.b16 %v801
    %v859 = vunpack.c.l.b16 %v802
    %v860 = vpack.c.b16 %v845, %v844
    %v861 = vpack.c.b16 %v847, %v846
    %v862 = vpack.c.b16 %v849, %v848
    %v863 = vpack.c.b16 %v851, %v850
    %v864 = vpack.c.b16 %v853, %v852
    %v865 = vpack.c.b16 %v855, %v854
    %v866 = vpack.c.b16 %v857, %v856
    %v867 = vpack.c.b16 %v859, %v858
    %876 = vmatprep.subr.bf16.mxu0 0
    %877 = vmatpush1.bf16.msra.mxu0 %v860
    %878 = vmatprep.subr.bf16.mxu0 0
    %879 = vmatpush1.bf16.msra.mxu0 %v861
    %880 = vmatprep.subr.bf16.mxu0 0
    %881 = vmatpush1.bf16.msra.mxu0 %v862
    %882 = vmatprep.subr.bf16.mxu0 0
    %883 = vmatpush1.bf16.msra.mxu0 %v863
    %884 = vmatprep.subr.bf16.mxu0 0
    %885 = vmatpush1.bf16.msra.mxu0 %v864
    %886 = vmatprep.subr.bf16.mxu0 0
    %887 = vmatpush1.bf16.msra.mxu0 %v865
    %888 = vmatprep.subr.bf16.mxu0 0
    %889 = vmatpush1.bf16.msra.mxu0 %v866
    %890 = vmatprep.subr.bf16.mxu0 0
    %891 = vmatpush1.bf16.msra.mxu0 %v867
    %892 = vmatprep.subr.bf16.mxu0 0
    %893 = vmatpush1.bf16.msra.mxu0 0
    %894 = vmatprep.subr.bf16.mxu0 0
    %895 = vmatpush1.bf16.msra.mxu0 0
    %896 = vmatprep.subr.bf16.mxu0 0
    %897 = vmatpush1.bf16.msra.mxu0 0
    %898 = vmatprep.subr.bf16.mxu0 0
    %899 = vmatpush1.bf16.msra.mxu0 0
    %900 = vmatprep.subr.bf16.mxu0 0
    %901 = vmatpush1.bf16.msra.mxu0 0
    %902 = vmatprep.subr.bf16.mxu0 0
    %903 = vmatpush1.bf16.msra.mxu0 0
    %904 = vmatprep.subr.bf16.mxu0 0
    %905 = vmatpush1.bf16.msra.mxu0 0
    %906 = vmatprep.subr.bf16.mxu0 0
    %907 = vmatpush1.bf16.msra.mxu0 0
    %908 = vmatprep.mubr.bf16.mxu0 0
    %909 = vmatmul.mubr.bf16.gmra.mrb[0].mxu0 %v745
    %v910 = vpop.f32.mrb[0].mxu0
    %v911 = vadd.f32 0.0, %v910
    %v912 = vpop.f32.mrb[0].mxu0
    %v913 = vpop.f32.mrb[0].mxu0
    %v914 = vadd.f32 0.0, %v913
    %v915 = vpop.f32.mrb[0].mxu0
    %916 = vdwg.mxu0
    %v917 = vpack.c.bf16 %v914, %v911
    %918 = vmatprep.subr.bf16.mxu0 0
    %919 = vmatpush1.bf16.msra.mxu0 %v917
    %920 = vmatprep.subr.bf16.mxu0 0
    %921 = vmatpush1.bf16.msra.mxu0 0
    %922 = vmatprep.subr.bf16.mxu0 0
    %923 = vmatpush1.bf16.msra.mxu0 0
    %924 = vmatprep.subr.bf16.mxu0 0
    %925 = vmatpush1.bf16.msra.mxu0 0
    %926 = vmatprep.subr.bf16.mxu0 0
    %927 = vmatpush1.bf16.msra.mxu0 0
    %928 = vmatprep.subr.bf16.mxu0 0
    %929 = vmatpush1.bf16.msra.mxu0 0
    %930 = vmatprep.subr.bf16.mxu0 0
    %931 = vmatpush1.bf16.msra.mxu0 0
    %932 = vmatprep.subr.bf16.mxu0 0
    %933 = vmatpush1.bf16.msra.mxu0 0
    %934 = vmatprep.subr.bf16.mxu0 0
    %935 = vmatpush1.bf16.msra.mxu0 0
    %936 = vmatprep.subr.bf16.mxu0 0
    %937 = vmatpush1.bf16.msra.mxu0 0
    %938 = vmatprep.subr.bf16.mxu0 0
    %939 = vmatpush1.bf16.msra.mxu0 0
    %940 = vmatprep.subr.bf16.mxu0 0
    %941 = vmatpush1.bf16.msra.mxu0 0
    %942 = vmatprep.subr.bf16.mxu0 0
    %943 = vmatpush1.bf16.msra.mxu0 0
    %944 = vmatprep.subr.bf16.mxu0 0
    %945 = vmatpush1.bf16.msra.mxu0 0
    %946 = vmatprep.subr.bf16.mxu0 0
    %947 = vmatpush1.bf16.msra.mxu0 0
    %948 = vmatprep.subr.bf16.mxu0 0
    %949 = vmatpush1.bf16.msra.mxu0 0
    %950 = vmatprep.mubr.bf16.mxu0 0
    %951 = vmatmul.mubr.bf16.gmra.mrb[0].mxu0 %v188
    %v952 = vpop.f32.mrb[0].mxu0
    %v953 = vadd.f32 %v911, %v952
    %v954 = vpop.f32.mrb[0].mxu0
    %v955 = vpop.f32.mrb[0].mxu0
    %v956 = vadd.f32 %v914, %v955
    %v957 = vpop.f32.mrb[0].mxu0
    %958 = vdwg.mxu0
    %v960 = vlaneseq
    %v961 = vshrl.u32 %v960, 7
    %v962 = vsub.s32 0, %v961
    %v963 = vrot.slane %v821, %v962
    %v965 = vadd.f32 %v953, %v963
    %v966 = vadd.f32 %v956, %v963
    %v967 = vmax.f32 %v965, 0.0
    %v968 = vmax.f32 %v966, 0.0
    %v969 = vpack.c.bf16 %v968, %v967
    %v971 = vlaneseq
    %v972 = vshrl.u32 %v971, 7
    %v973 = vsub.s32 0, %v972
    %v974 = vrot.slane %v823, %v973
    %v992 = vunpack.c.l.b16 %v804
    %v993 = vunpack.c.l.b16 %v805
    %v994 = vunpack.c.l.b16 %v806
    %v995 = vunpack.c.l.b16 %v807
    %v996 = vunpack.c.l.b16 %v808
    %v997 = vunpack.c.l.b16 %v809
    %v998 = vunpack.c.l.b16 %v810
    %v999 = vunpack.c.l.b16 %v811
    %v1000 = vunpack.c.l.b16 %v812
    %v1001 = vunpack.c.l.b16 %v813
    %v1002 = vunpack.c.l.b16 %v814
    %v1003 = vunpack.c.l.b16 %v815
    %v1004 = vunpack.c.l.b16 %v816
    %v1005 = vunpack.c.l.b16 %v817
    %v1006 = vunpack.c.l.b16 %v818
    %v1007 = vunpack.c.l.b16 %v819
    %v1008 = vpack.c.b16 %v993, %v992
    %v1009 = vpack.c.b16 %v995, %v994
    %v1010 = vpack.c.b16 %v997, %v996
    %v1011 = vpack.c.b16 %v999, %v998
    %v1012 = vpack.c.b16 %v1001, %v1000
    %v1013 = vpack.c.b16 %v1003, %v1002
    %v1014 = vpack.c.b16 %v1005, %v1004
    %v1015 = vpack.c.b16 %v1007, %v1006
    %1024 = vmatprep.subr.bf16.mxu0 0
    %1025 = vmatpush1.bf16.msra.mxu0 %v1008
    %1026 = vmatprep.subr.bf16.mxu0 0
    %1027 = vmatpush1.bf16.msra.mxu0 %v1009
    %1028 = vmatprep.subr.bf16.mxu0 0
    %1029 = vmatpush1.bf16.msra.mxu0 %v1010
    %1030 = vmatprep.subr.bf16.mxu0 0
    %1031 = vmatpush1.bf16.msra.mxu0 %v1011
    %1032 = vmatprep.subr.bf16.mxu0 0
    %1033 = vmatpush1.bf16.msra.mxu0 %v1012
    %1034 = vmatprep.subr.bf16.mxu0 0
    %1035 = vmatpush1.bf16.msra.mxu0 %v1013
    %1036 = vmatprep.subr.bf16.mxu0 0
    %1037 = vmatpush1.bf16.msra.mxu0 %v1014
    %1038 = vmatprep.subr.bf16.mxu0 0
    %1039 = vmatpush1.bf16.msra.mxu0 %v1015
    %1040 = vmatprep.subr.bf16.mxu0 0
    %1041 = vmatpush1.bf16.msra.mxu0 0
    %1042 = vmatprep.subr.bf16.mxu0 0
    %1043 = vmatpush1.bf16.msra.mxu0 0
    %1044 = vmatprep.subr.bf16.mxu0 0
    %1045 = vmatpush1.bf16.msra.mxu0 0
    %1046 = vmatprep.subr.bf16.mxu0 0
    %1047 = vmatpush1.bf16.msra.mxu0 0
    %1048 = vmatprep.subr.bf16.mxu0 0
    %1049 = vmatpush1.bf16.msra.mxu0 0
    %1050 = vmatprep.subr.bf16.mxu0 0
    %1051 = vmatpush1.bf16.msra.mxu0 0
    %1052 = vmatprep.subr.bf16.mxu0 0
    %1053 = vmatpush1.bf16.msra.mxu0 0
    %1054 = vmatprep.subr.bf16.mxu0 0
    %1055 = vmatpush1.bf16.msra.mxu0 0
    %1056 = vmatprep.mubr.bf16.mxu0 0
    %1057 = vmatmul.mubr.bf16.gmra.mrb[0].mxu0 %v969
    %v1058 = vpop.f32.mrb[0].mxu0
    %v1059 = vadd.f32 %v974, %v1058
    %v1060 = vpop.f32.mrb[0].mxu0
    %v1061 = vpop.f32.mrb[0].mxu0
    %v1062 = vadd.f32 %v974, %v1061
    %v1063 = vpop.f32.mrb[0].mxu0
    %1064 = vdwg.mxu0
    %v1065 = vmax.f32 %v1059, 0.0
    %v1066 = vmax.f32 %v1062, 0.0
    %v1067 = vadd.f32 %v1065, %v1066
    %v1068 = vrot.slane %v1067, 4
    %v1069 = vadd.f32 %v1067, %v1068
    %v1070 = vrot.slane %v1069, 2
    %v1071 = vadd.f32 %v1069, %v1070
    %v1072 = vrot.slane %v1071, 1
    %v1073 = vadd.f32 %v1071, %v1072
    %v1074 = vmul.f32 %v1073, %v346
    %v1075 = vsub.f32 %v1065, %v1074
    %v1076 = vsub.f32 %v1066, %v1074
    %v1077 = vmul.f32 %v1075, %v1075
    %v1078 = vmul.f32 %v1076, %v1076
    %v1079 = vadd.f32 %v1077, %v1078
    %v1080 = vrot.slane %v1079, 4
    %v1081 = vadd.f32 %v1079, %v1080
    %v1082 = vrot.slane %v1081, 2
    %v1083 = vadd.f32 %v1081, %v1082
    %v1084 = vrot.slane %v1083, 1
    %v1085 = vadd.f32 %v1083, %v1084
    %v1086 = vmul.f32 %v1085, %v346
    %v1087 = vadd.f32 %v1086, 1e-05
    %v1088 = vrsqrt.pop %v1087
    %v1089 = vmul.f32 %v1075, %v1088
    %v1090 = vmul.f32 %v1076, %v1088
    %v1092 = vlaneseq
    %v1093 = vshrl.u32 %v1092, 7
    %v1094 = vsub.s32 0, %v1093
    %v1095 = vrot.slane %v825, %v1094
    %v1097 = vmul.f32 %v1089, %v1095
    %v1098 = vmul.f32 %v1090, %v1095
    %v1100 = vlaneseq
    %v1101 = vshrl.u32 %v1100, 7
    %v1102 = vsub.s32 0, %v1101
    %v1103 = vrot.slane %v827, %v1102
    %v1105 = vadd.f32 %v1097, %v1103
    %v1106 = vadd.f32 %v1098, %v1103
    %v1107 = vpack.c.bf16 %v1106, %v1105
    %1108 = vmatprep.subr.bf16.mxu0 0
    %1109 = vmatpush1.bf16.msra.mxu0 %v1107
    %1110 = vmatprep.subr.bf16.mxu0 0
    %1111 = vmatpush1.bf16.msra.mxu0 0
    %1112 = vmatprep.subr.bf16.mxu0 0
    %1113 = vmatpush1.bf16.msra.mxu0 0
    %1114 = vmatprep.subr.bf16.mxu0 0
    %1115 = vmatpush1.bf16.msra.mxu0 0
    %1116 = vmatprep.subr.bf16.mxu0 0
    %1117 = vmatpush1.bf16.msra.mxu0 0
    %1118 = vmatprep.subr.bf16.mxu0 0
    %1119 = vmatpush1.bf16.msra.mxu0 0
    %1120 = vmatprep.subr.bf16.mxu0 0
    %1121 = vmatpush1.bf16.msra.mxu0 0
    %1122 = vmatprep.subr.bf16.mxu0 0
    %1123 = vmatpush1.bf16.msra.mxu0 0
    %1124 = vmatprep.subr.bf16.mxu0 0
    %1125 = vmatpush1.bf16.msra.mxu0 0
    %1126 = vmatprep.subr.bf16.mxu0 0
    %1127 = vmatpush1.bf16.msra.mxu0 0
    %1128 = vmatprep.subr.bf16.mxu0 0
    %1129 = vmatpush1.bf16.msra.mxu0 0
    %1130 = vmatprep.subr.bf16.mxu0 0
    %1131 = vmatpush1.bf16.msra.mxu0 0
    %1132 = vmatprep.subr.bf16.mxu0 0
    %1133 = vmatpush1.bf16.msra.mxu0 0
    %1134 = vmatprep.subr.bf16.mxu0 0
    %1135 = vmatpush1.bf16.msra.mxu0 0
    %1136 = vmatprep.subr.bf16.mxu0 0
    %1137 = vmatpush1.bf16.msra.mxu0 0
    %1138 = vmatprep.subr.bf16.mxu0 0
    %1139 = vmatpush1.bf16.msra.mxu0 0
    %1140 = vmatprep.mubr.bf16.mxu0 0
    %1141 = vmatmul.mubr.bf16.gmra.mrb[0].mxu0 %v382
    %v1142 = vpop.f32.mrb[0].mxu0
    %v1143 = vadd.f32 0.0, %v1142
    %v1144 = vpop.f32.mrb[0].mxu0
    %v1145 = vpop.f32.mrb[0].mxu0
    %v1146 = vpop.f32.mrb[0].mxu0
    %1147 = vdwg.mxu0
    %v1148 = vld [vmem:[%s10] sm:$0xff]
    %v1149 = vld [vmem:[%s10 + $0x8] sm:$0xf]
    %v1150 = vld [vmem:[%s10 + $0xc] sm:$0xff]
    %v1151 = vld [vmem:[%s10 + $0x14] sm:$0xf]
    %v1152 = vld [vmem:[%s10 + $0x18] sm:$0xff]
    %v1153 = vld [vmem:[%s10 + $0x20] sm:$0xf]
    %v1154 = vld [vmem:[%s10 + $0x24] sm:$0xff]
    %v1155 = vld [vmem:[%s10 + $0x2c] sm:$0xf]
    %v1156 = vld [vmem:[%s10 + $0x30] sm:$0xff]
    %v1157 = vld [vmem:[%s10 + $0x38] sm:$0xf]
    %v1158 = vld [vmem:[%s10 + $0x3c] sm:$0xff]
    %v1159 = vld [vmem:[%s10 + $0x44] sm:$0xf]
    %v1160 = vld [vmem:[%s10 + $0x48] sm:$0xff]
    %v1161 = vld [vmem:[%s10 + $0x50] sm:$0xf]
    %v1162 = vld [vmem:[%s10 + $0x54] sm:$0xff]
    %v1163 = vld [vmem:[%s10 + $0x5c] sm:$0xf]
    %v1164 = vld [vmem:[%s10 + $0x60] sm:$0xff]
    %v1165 = vld [vmem:[%s10 + $0x68] sm:$0xf]
    %v1166 = vld [vmem:[%s10 + $0x6c] sm:$0xff]
    %v1167 = vld [vmem:[%s10 + $0x74] sm:$0xf]
    %v1168 = vld [vmem:[%s10 + $0x78] sm:$0xff]
    %v1169 = vld [vmem:[%s10 + $0x80] sm:$0xf]
    %v1170 = vld [vmem:[%s10 + $0x84] sm:$0xff]
    %v1171 = vld [vmem:[%s10 + $0x8c] sm:$0xf]
    %v1172 = vld [vmem:[%s10 + $0x90] sm:$0xff]
    %v1173 = vld [vmem:[%s10 + $0x98] sm:$0xf]
    %v1174 = vld [vmem:[%s10 + $0x9c] sm:$0xff]
    %v1175 = vld [vmem:[%s10 + $0xa4] sm:$0xf]
    %v1176 = vld [vmem:[%s10 + $0xa8] sm:$0xff]
    %v1177 = vld [vmem:[%s10 + $0xb0] sm:$0xf]
    %v1178 = vld [vmem:[%s10 + $0xb4] sm:$0xff]
    %v1179 = vld [vmem:[%s10 + $0xbc] sm:$0xf]
    %v1180 = vld [vmem:[%s10 + $0xc0] sm:$0xff]
    %v1181 = vld [vmem:[%s10 + $0xc8] sm:$0xf]
    %v1182 = vld [vmem:[%s10 + $0xcc] sm:$0xff]
    %v1183 = vld [vmem:[%s10 + $0xd4] sm:$0xf]
    %v1184 = vld [vmem:[%s10 + $0xd8] sm:$0xff]
    %v1185 = vld [vmem:[%s10 + $0xe0] sm:$0xf]
    %v1186 = vld [vmem:[%s10 + $0xe4] sm:$0xff]
    %v1187 = vld [vmem:[%s10 + $0xec] sm:$0xf]
    %v1188 = vld [vmem:[%s10 + $0xf0] sm:$0xff]
    %v1189 = vld [vmem:[%s10 + $0xf8] sm:$0xf]
    %v1190 = vld [vmem:[%s10 + $0xfc] sm:$0xff]
    %v1191 = vld [vmem:[%s10 + $0x104] sm:$0xf]
    %v1192 = vld [vmem:[%s10 + $0x108] sm:$0xff]
    %v1193 = vld [vmem:[%s10 + $0x110] sm:$0xf]
    %v1194 = vld [vmem:[%s10 + $0x114] sm:$0xff]
    %v1195 = vld [vmem:[%s10 + $0x11c] sm:$0xf]
    %v1196 = vld [vmem:[%s10 + $0x120] sm:$0xff]
    %v1197 = vld [vmem:[%s10 + $0x128] sm:$0xf]
    %v1198 = vld [vmem:[%s10 + $0x12c] sm:$0xff]
    %v1199 = vld [vmem:[%s10 + $0x134] sm:$0xf]
    %v1200 = vld [vmem:[%s10 + $0x138] sm:$0xff]
    %v1201 = vld [vmem:[%s10 + $0x140] sm:$0xf]
    %v1202 = vld [vmem:[%s10 + $0x144] sm:$0xff]
    %v1203 = vld [vmem:[%s10 + $0x14c] sm:$0xf]
    %v1204 = vld [vmem:[%s10 + $0x150] sm:$0xff]
    %v1205 = vld [vmem:[%s10 + $0x158] sm:$0xf]
    %v1206 = vld [vmem:[%s10 + $0x15c] sm:$0xff]
    %v1207 = vld [vmem:[%s10 + $0x164] sm:$0xf]
    %v1208 = vld [vmem:[%s10 + $0x168] sm:$0xff]
    %v1209 = vld [vmem:[%s10 + $0x170] sm:$0xf]
    %v1210 = vld [vmem:[%s10 + $0x174] sm:$0xff]
    %v1211 = vld [vmem:[%s10 + $0x17c] sm:$0xf]
    %v1212 = vld [vmem:[%s10 + $0x180] sm:$0xff]
    %v1213 = vld [vmem:[%s10 + $0x188] sm:$0xf]
    %v1214 = vld [vmem:[%s10 + $0x18c] sm:$0xff]
    %v1215 = vld [vmem:[%s10 + $0x194] sm:$0xf]
    %v1216 = vld [vmem:[%s10 + $0x198] sm:$0xff]
    %v1217 = vld [vmem:[%s10 + $0x1a0] sm:$0xf]
    %v1218 = vld [vmem:[%s10 + $0x1a4] sm:$0xff]
    %v1219 = vld [vmem:[%s10 + $0x1ac] sm:$0xf]
    %v1220 = vld [vmem:[%s10 + $0x1b0] sm:$0xff]
    %v1221 = vld [vmem:[%s10 + $0x1b8] sm:$0xf]
    %v1222 = vld [vmem:[%s10 + $0x1bc] sm:$0xff]
    %v1223 = vld [vmem:[%s10 + $0x1c4] sm:$0xf]
    %v1224 = vld [vmem:[%s10 + $0x1c8] sm:$0xff]
    %v1225 = vld [vmem:[%s10 + $0x1d0] sm:$0xf]
    %v1226 = vld [vmem:[%s10 + $0x1d4] sm:$0xff]
    %v1227 = vld [vmem:[%s10 + $0x1dc] sm:$0xf]
    %v1228 = vld [vmem:[%s10 + $0x1e0] sm:$0xff]
    %v1229 = vld [vmem:[%s10 + $0x1e8] sm:$0xf]
    %v1230 = vld [vmem:[%s10 + $0x1ec] sm:$0xff]
    %v1231 = vld [vmem:[%s10 + $0x1f4] sm:$0xf]
    %v1232 = vld [vmem:[%s10 + $0x1f8] sm:$0xff]
    %v1233 = vld [vmem:[%s10 + $0x200] sm:$0xf]
    %v1234 = vld [vmem:[%s10 + $0x204] sm:$0xff]
    %v1235 = vld [vmem:[%s10 + $0x20c] sm:$0xf]
    %v1236 = vld [vmem:[%s10 + $0x210] sm:$0xff]
    %v1237 = vld [vmem:[%s10 + $0x218] sm:$0xf]
    %v1238 = vld [vmem:[%s10 + $0x21c] sm:$0xff]
    %v1239 = vld [vmem:[%s10 + $0x224] sm:$0xf]
    %v1240 = vld [vmem:[%s10 + $0x228] sm:$0xff]
    %v1241 = vld [vmem:[%s10 + $0x230] sm:$0xf]
    %v1242 = vld [vmem:[%s10 + $0x234] sm:$0xff]
    %v1243 = vld [vmem:[%s10 + $0x23c] sm:$0xf]
    %v1244 = vld [vmem:[%s11] sm:$0x7]
    %v1246 = vlaneseq
    %v1247 = vshrl.u32 %v1246, 7
    %v1248 = vsub.s32 0, %v1247
    %v1249 = vrot.slane %v1244, %v1248
    %v1250 = vlaneseq
    %v1251 = vshrl.u32 %v1250, 7
    %v1252 = vsub.s32 1, %v1251
    %v1253 = vrot.slane %v1244, %v1252
    %v1254 = vlaneseq
    %v1255 = vshrl.u32 %v1254, 7
    %v1256 = vsub.s32 2, %v1255
    %v1257 = vrot.slane %v1244, %v1256
    %v1357 = vunpack.c.l.b16 %v1148
    %v1358 = vunpack.c.h.b16 %v1148
    %v1359 = vunpack.c.l.b16 %v1149
    %v1360 = vunpack.c.l.b16 %v1150
    %v1361 = vunpack.c.h.b16 %v1150
    %v1362 = vunpack.c.l.b16 %v1151
    %v1363 = vunpack.c.l.b16 %v1152
    %v1364 = vunpack.c.h.b16 %v1152
    %v1365 = vunpack.c.l.b16 %v1153
    %v1366 = vunpack.c.l.b16 %v1154
    %v1367 = vunpack.c.h.b16 %v1154
    %v1368 = vunpack.c.l.b16 %v1155
    %v1369 = vunpack.c.l.b16 %v1156
    %v1370 = vunpack.c.h.b16 %v1156
    %v1371 = vunpack.c.l.b16 %v1157
    %v1372 = vunpack.c.l.b16 %v1158
    %v1373 = vunpack.c.h.b16 %v1158
    %v1374 = vunpack.c.l.b16 %v1159
    %v1375 = vunpack.c.l.b16 %v1160
    %v1376 = vunpack.c.h.b16 %v1160
    %v1377 = vunpack.c.l.b16 %v1161
    %v1378 = vunpack.c.l.b16 %v1162
    %v1379 = vunpack.c.h.b16 %v1162
    %v1380 = vunpack.c.l.b16 %v1163
    %v1381 = vunpack.c.l.b16 %v1164
    %v1382 = vunpack.c.h.b16 %v1164
    %v1383 = vunpack.c.l.b16 %v1165
    %v1384 = vunpack.c.l.b16 %v1166
    %v1385 = vunpack.c.h.b16 %v1166
    %v1386 = vunpack.c.l.b16 %v1167
    %v1387 = vunpack.c.l.b16 %v1168
    %v1388 = vunpack.c.h.b16 %v1168
    %v1389 = vunpack.c.l.b16 %v1169
    %v1390 = vunpack.c.l.b16 %v1170
    %v1391 = vunpack.c.h.b16 %v1170
    %v1392 = vunpack.c.l.b16 %v1171
    %v1393 = vunpack.c.l.b16 %v1172
    %v1394 = vunpack.c.h.b16 %v1172
    %v1395 = vunpack.c.l.b16 %v1173
    %v1396 = vunpack.c.l.b16 %v1174
    %v1397 = vunpack.c.h.b16 %v1174
    %v1398 = vunpack.c.l.b16 %v1175
    %v1399 = vunpack.c.l.b16 %v1176
    %v1400 = vunpack.c.h.b16 %v1176
    %v1401 = vunpack.c.l.b16 %v1177
    %v1402 = vunpack.c.l.b16 %v1178
    %v1403 = vunpack.c.h.b16 %v1178
    %v1404 = vunpack.c.l.b16 %v1179
    %v1405 = vunpack.c.l.b16 %v1180
    %v1406 = vunpack.c.h.b16 %v1180
    %v1407 = vunpack.c.l.b16 %v1181
    %v1408 = vunpack.c.l.b16 %v1182
    %v1409 = vunpack.c.h.b16 %v1182
    %v1410 = vunpack.c.l.b16 %v1183
    %v1411 = vunpack.c.l.b16 %v1184
    %v1412 = vunpack.c.h.b16 %v1184
    %v1413 = vunpack.c.l.b16 %v1185
    %v1414 = vunpack.c.l.b16 %v1186
    %v1415 = vunpack.c.h.b16 %v1186
    %v1416 = vunpack.c.l.b16 %v1187
    %v1417 = vunpack.c.l.b16 %v1188
    %v1418 = vunpack.c.h.b16 %v1188
    %v1419 = vunpack.c.l.b16 %v1189
    %v1420 = vunpack.c.l.b16 %v1190
    %v1421 = vunpack.c.h.b16 %v1190
    %v1422 = vunpack.c.l.b16 %v1191
    %v1423 = vunpack.c.l.b16 %v1192
    %v1424 = vunpack.c.h.b16 %v1192
    %v1425 = vunpack.c.l.b16 %v1193
    %v1426 = vunpack.c.l.b16 %v1194
    %v1427 = vunpack.c.h.b16 %v1194
    %v1428 = vunpack.c.l.b16 %v1195
    %v1429 = vunpack.c.l.b16 %v1196
    %v1430 = vunpack.c.h.b16 %v1196
    %v1431 = vunpack.c.l.b16 %v1197
    %v1432 = vunpack.c.l.b16 %v1198
    %v1433 = vunpack.c.h.b16 %v1198
    %v1434 = vunpack.c.l.b16 %v1199
    %v1435 = vunpack.c.l.b16 %v1200
    %v1436 = vunpack.c.h.b16 %v1200
    %v1437 = vunpack.c.l.b16 %v1201
    %v1438 = vunpack.c.l.b16 %v1202
    %v1439 = vunpack.c.h.b16 %v1202
    %v1440 = vunpack.c.l.b16 %v1203
    %v1441 = vunpack.c.l.b16 %v1204
    %v1442 = vunpack.c.h.b16 %v1204
    %v1443 = vunpack.c.l.b16 %v1205
    %v1444 = vunpack.c.l.b16 %v1206
    %v1445 = vunpack.c.h.b16 %v1206
    %v1446 = vunpack.c.l.b16 %v1207
    %v1447 = vunpack.c.l.b16 %v1208
    %v1448 = vunpack.c.h.b16 %v1208
    %v1449 = vunpack.c.l.b16 %v1209
    %v1450 = vunpack.c.l.b16 %v1210
    %v1451 = vunpack.c.h.b16 %v1210
    %v1452 = vunpack.c.l.b16 %v1211
    %v1453 = vunpack.c.l.b16 %v1212
    %v1454 = vunpack.c.h.b16 %v1212
    %v1455 = vunpack.c.l.b16 %v1213
    %v1456 = vunpack.c.l.b16 %v1214
    %v1457 = vunpack.c.h.b16 %v1214
    %v1458 = vunpack.c.l.b16 %v1215
    %v1459 = vunpack.c.l.b16 %v1216
    %v1460 = vunpack.c.h.b16 %v1216
    %v1461 = vunpack.c.l.b16 %v1217
    %v1462 = vunpack.c.l.b16 %v1218
    %v1463 = vunpack.c.h.b16 %v1218
    %v1464 = vunpack.c.l.b16 %v1219
    %v1465 = vunpack.c.l.b16 %v1220
    %v1466 = vunpack.c.h.b16 %v1220
    %v1467 = vunpack.c.l.b16 %v1221
    %v1468 = vunpack.c.l.b16 %v1222
    %v1469 = vunpack.c.h.b16 %v1222
    %v1470 = vunpack.c.l.b16 %v1223
    %v1471 = vunpack.c.l.b16 %v1224
    %v1472 = vunpack.c.h.b16 %v1224
    %v1473 = vunpack.c.l.b16 %v1225
    %v1474 = vunpack.c.l.b16 %v1226
    %v1475 = vunpack.c.h.b16 %v1226
    %v1476 = vunpack.c.l.b16 %v1227
    %v1477 = vunpack.c.l.b16 %v1228
    %v1478 = vunpack.c.h.b16 %v1228
    %v1479 = vunpack.c.l.b16 %v1229
    %v1480 = vunpack.c.l.b16 %v1230
    %v1481 = vunpack.c.h.b16 %v1230
    %v1482 = vunpack.c.l.b16 %v1231
    %v1483 = vunpack.c.l.b16 %v1232
    %v1484 = vunpack.c.h.b16 %v1232
    %v1485 = vunpack.c.l.b16 %v1233
    %v1486 = vunpack.c.l.b16 %v1234
    %v1487 = vunpack.c.h.b16 %v1234
    %v1488 = vunpack.c.l.b16 %v1235
    %v1489 = vunpack.c.l.b16 %v1236
    %v1490 = vunpack.c.h.b16 %v1236
    %v1491 = vunpack.c.l.b16 %v1237
    %v1492 = vunpack.c.l.b16 %v1238
    %v1493 = vunpack.c.h.b16 %v1238
    %v1494 = vunpack.c.l.b16 %v1239
    %v1495 = vunpack.c.l.b16 %v1240
    %v1496 = vunpack.c.h.b16 %v1240
    %v1497 = vunpack.c.l.b16 %v1241
    %v1498 = vunpack.c.l.b16 %v1242
    %v1499 = vunpack.c.h.b16 %v1242
    %v1500 = vunpack.c.l.b16 %v1243
    %v1501 = vpack.c.b16 %v1360, %v1357
    %v1502 = vpack.c.b16 %v1361, %v1358
    %v1503 = vpack.c.b16 %v1362, %v1359
    %v1504 = vpack.c.b16 %v1366, %v1363
    %v1505 = vpack.c.b16 %v1367, %v1364
    %v1506 = vpack.c.b16 %v1368, %v1365
    %v1507 = vpack.c.b16 %v1372, %v1369
    %v1508 = vpack.c.b16 %v1373, %v1370
    %v1509 = vpack.c.b16 %v1374, %v1371
    %v1510 = vpack.c.b16 %v1378, %v1375
    %v1511 = vpack.c.b16 %v1379, %v1376
    %v1512 = vpack.c.b16 %v1380, %v1377
    %v1513 = vpack.c.b16 %v1384, %v1381
    %v1514 = vpack.c.b16 %v1385, %v1382
    %v1515 = vpack.c.b16 %v1386, %v1383
    %v1516 = vpack.c.b16 %v1390, %v1387
    %v1517 = vpack.c.b16 %v1391, %v1388
    %v1518 = vpack.c.b16 %v1392, %v1389
    %v1519 = vpack.c.b16 %v1396, %v1393
    %v1520 = vpack.c.b16 %v1397, %v1394
    %v1521 = vpack.c.b16 %v1398, %v1395
    %v1522 = vpack.c.b16 %v1402, %v1399
    %v1523 = vpack.c.b16 %v1403, %v1400
    %v1524 = vpack.c.b16 %v1404, %v1401
    %v1525 = vpack.c.b16 %v1408, %v1405
    %v1526 = vpack.c.b16 %v1409, %v1406
    %v1527 = vpack.c.b16 %v1410, %v1407
    %v1528 = vpack.c.b16 %v1414, %v1411
    %v1529 = vpack.c.b16 %v1415, %v1412
    %v1530 = vpack.c.b16 %v1416, %v1413
    %v1531 = vpack.c.b16 %v1420, %v1417
    %v1532 = vpack.c.b16 %v1421, %v1418
    %v1533 = vpack.c.b16 %v1422, %v1419
    %v1534 = vpack.c.b16 %v1426, %v1423
    %v1535 = vpack.c.b16 %v1427, %v1424
    %v1536 = vpack.c.b16 %v1428, %v1425
    %v1537 = vpack.c.b16 %v1432, %v1429
    %v1538 = vpack.c.b16 %v1433, %v1430
    %v1539 = vpack.c.b16 %v1434, %v1431
    %v1540 = vpack.c.b16 %v1438, %v1435
    %v1541 = vpack.c.b16 %v1439, %v1436
    %v1542 = vpack.c.b16 %v1440, %v1437
    %v1543 = vpack.c.b16 %v1444, %v1441
    %v1544 = vpack.c.b16 %v1445, %v1442
    %v1545 = vpack.c.b16 %v1446, %v1443
    %v1546 = vpack.c.b16 %v1450, %v1447
    %v1547 = vpack.c.b16 %v1451, %v1448
    %v1548 = vpack.c.b16 %v1452, %v1449
    %v1549 = vpack.c.b16 %v1456, %v1453
    %v1550 = vpack.c.b16 %v1457, %v1454
    %v1551 = vpack.c.b16 %v1458, %v1455
    %v1552 = vpack.c.b16 %v1462, %v1459
    %v1553 = vpack.c.b16 %v1463, %v1460
    %v1554 = vpack.c.b16 %v1464, %v1461
    %v1555 = vpack.c.b16 %v1468, %v1465
    %v1556 = vpack.c.b16 %v1469, %v1466
    %v1557 = vpack.c.b16 %v1470, %v1467
    %v1558 = vpack.c.b16 %v1474, %v1471
    %v1559 = vpack.c.b16 %v1475, %v1472
    %v1560 = vpack.c.b16 %v1476, %v1473
    %v1561 = vpack.c.b16 %v1480, %v1477
    %v1562 = vpack.c.b16 %v1481, %v1478
    %v1563 = vpack.c.b16 %v1482, %v1479
    %v1564 = vpack.c.b16 %v1486, %v1483
    %v1565 = vpack.c.b16 %v1487, %v1484
    %v1566 = vpack.c.b16 %v1488, %v1485
    %v1567 = vpack.c.b16 %v1492, %v1489
    %v1568 = vpack.c.b16 %v1493, %v1490
    %v1569 = vpack.c.b16 %v1494, %v1491
    %v1570 = vpack.c.b16 %v1498, %v1495
    %v1571 = vpack.c.b16 %v1499, %v1496
    %v1572 = vpack.c.b16 %v1500, %v1497
    %1645 = vmatprep.subr.bf16.mxu0 %v1502
    %1646 = vmatpush1.bf16.msra.mxu0 %v1501
    %1647 = vmatprep.subr.bf16.mxu0 %v1505
    %1648 = vmatpush1.bf16.msra.mxu0 %v1504
    %1649 = vmatprep.subr.bf16.mxu0 %v1508
    %1650 = vmatpush1.bf16.msra.mxu0 %v1507
    %1651 = vmatprep.subr.bf16.mxu0 %v1511
    %1652 = vmatpush1.bf16.msra.mxu0 %v1510
    %1653 = vmatprep.subr.bf16.mxu0 %v1514
    %1654 = vmatpush1.bf16.msra.mxu0 %v1513
    %1655 = vmatprep.subr.bf16.mxu0 %v1517
    %1656 = vmatpush1.bf16.msra.mxu0 %v1516
    %1657 = vmatprep.subr.bf16.mxu0 %v1520
    %1658 = vmatpush1.bf16.msra.mxu0 %v1519
    %1659 = vmatprep.subr.bf16.mxu0 %v1523
    %1660 = vmatpush1.bf16.msra.mxu0 %v1522
    %1661 = vmatprep.subr.bf16.mxu0 %v1526
    %1662 = vmatpush1.bf16.msra.mxu0 %v1525
    %1663 = vmatprep.subr.bf16.mxu0 %v1529
    %1664 = vmatpush1.bf16.msra.mxu0 %v1528
    %1665 = vmatprep.subr.bf16.mxu0 %v1532
    %1666 = vmatpush1.bf16.msra.mxu0 %v1531
    %1667 = vmatprep.subr.bf16.mxu0 %v1535
    %1668 = vmatpush1.bf16.msra.mxu0 %v1534
    %1669 = vmatprep.subr.bf16.mxu0 %v1538
    %1670 = vmatpush1.bf16.msra.mxu0 %v1537
    %1671 = vmatprep.subr.bf16.mxu0 %v1541
    %1672 = vmatpush1.bf16.msra.mxu0 %v1540
    %1673 = vmatprep.subr.bf16.mxu0 %v1544
    %1674 = vmatpush1.bf16.msra.mxu0 %v1543
    %1675 = vmatprep.subr.bf16.mxu0 %v1547
    %1676 = vmatpush1.bf16.msra.mxu0 %v1546
    %1677 = vmatprep.mubr.bf16.mxu0 %v745
    %1678 = vmatmul.mubr.bf16.gmra.mrb[0].mxu0 %v380
    %v1679 = vpop.f32.mrb[0].mxu0
    %v1680 = vadd.f32 %v1249, %v1679
    %v1681 = vpop.f32.mrb[0].mxu0
    %v1682 = vadd.f32 %v1253, %v1681
    %v1683 = vpop.f32.mrb[0].mxu0
    %v1684 = vadd.f32 %v1249, %v1683
    %v1685 = vpop.f32.mrb[0].mxu0
    %v1686 = vadd.f32 %v1253, %v1685
    %1687 = vdwg.mxu0
    %1688 = vmatprep.subr.bf16.mxu0 %v1550
    %1689 = vmatpush1.bf16.msra.mxu0 %v1549
    %1690 = vmatprep.subr.bf16.mxu0 %v1553
    %1691 = vmatpush1.bf16.msra.mxu0 %v1552
    %1692 = vmatprep.subr.bf16.mxu0 %v1556
    %1693 = vmatpush1.bf16.msra.mxu0 %v1555
    %1694 = vmatprep.subr.bf16.mxu0 %v1559
    %1695 = vmatpush1.bf16.msra.mxu0 %v1558
    %1696 = vmatprep.subr.bf16.mxu0 %v1562
    %1697 = vmatpush1.bf16.msra.mxu0 %v1561
    %1698 = vmatprep.subr.bf16.mxu0 %v1565
    %1699 = vmatpush1.bf16.msra.mxu0 %v1564
    %1700 = vmatprep.subr.bf16.mxu0 %v1568
    %1701 = vmatpush1.bf16.msra.mxu0 %v1567
    %1702 = vmatprep.subr.bf16.mxu0 %v1571
    %1703 = vmatpush1.bf16.msra.mxu0 %v1570
    %1704 = vmatprep.subr.bf16.mxu0 0
    %1705 = vmatpush1.bf16.msra.mxu0 0
    %1706 = vmatprep.subr.bf16.mxu0 0
    %1707 = vmatpush1.bf16.msra.mxu0 0
    %1708 = vmatprep.subr.bf16.mxu0 0
    %1709 = vmatpush1.bf16.msra.mxu0 0
    %1710 = vmatprep.subr.bf16.mxu0 0
    %1711 = vmatpush1.bf16.msra.mxu0 0
    %1712 = vmatprep.subr.bf16.mxu0 0
    %1713 = vmatpush1.bf16.msra.mxu0 0
    %1714 = vmatprep.subr.bf16.mxu0 0
    %1715 = vmatpush1.bf16.msra.mxu0 0
    %1716 = vmatprep.subr.bf16.mxu0 0
    %1717 = vmatpush1.bf16.msra.mxu0 0
    %1718 = vmatprep.subr.bf16.mxu0 0
    %1719 = vmatpush1.bf16.msra.mxu0 0
    %1720 = vmatprep.mubr.bf16.mxu0 0
    %1721 = vmatmul.mubr.bf16.gmra.mrb[0].mxu0 %v1107
    %v1722 = vpop.f32.mrb[0].mxu0
    %v1723 = vadd.f32 %v1680, %v1722
    %v1724 = vpop.f32.mrb[0].mxu0
    %v1725 = vadd.f32 %v1682, %v1724
    %v1726 = vpop.f32.mrb[0].mxu0
    %v1727 = vadd.f32 %v1684, %v1726
    %v1728 = vpop.f32.mrb[0].mxu0
    %v1729 = vadd.f32 %v1686, %v1728
    %1730 = vdwg.mxu0
    %1731 = vmatprep.subr.bf16.mxu0 0
    %1732 = vmatpush1.bf16.msra.mxu0 %v1503
    %1733 = vmatprep.subr.bf16.mxu0 0
    %1734 = vmatpush1.bf16.msra.mxu0 %v1506
    %1735 = vmatprep.subr.bf16.mxu0 0
    %1736 = vmatpush1.bf16.msra.mxu0 %v1509
    %1737 = vmatprep.subr.bf16.mxu0 0
    %1738 = vmatpush1.bf16.msra.mxu0 %v1512
    %1739 = vmatprep.subr.bf16.mxu0 0
    %1740 = vmatpush1.bf16.msra.mxu0 %v1515
    %1741 = vmatprep.subr.bf16.mxu0 0
    %1742 = vmatpush1.bf16.msra.mxu0 %v1518
    %1743 = vmatprep.subr.bf16.mxu0 0
    %1744 = vmatpush1.bf16.msra.mxu0 %v1521
    %1745 = vmatprep.subr.bf16.mxu0 0
    %1746 = vmatpush1.bf16.msra.mxu0 %v1524
    %1747 = vmatprep.subr.bf16.mxu0 0
    %1748 = vmatpush1.bf16.msra.mxu0 %v1527
    %1749 = vmatprep.subr.bf16.mxu0 0
    %1750 = vmatpush1.bf16.msra.mxu0 %v1530
    %1751 = vmatprep.subr.bf16.mxu0 0
    %1752 = vmatpush1.bf16.msra.mxu0 %v1533
    %1753 = vmatprep.subr.bf16.mxu0 0
    %1754 = vmatpush1.bf16.msra.mxu0 %v1536
    %1755 = vmatprep.subr.bf16.mxu0 0
    %1756 = vmatpush1.bf16.msra.mxu0 %v1539
    %1757 = vmatprep.subr.bf16.mxu0 0
    %1758 = vmatpush1.bf16.msra.mxu0 %v1542
    %1759 = vmatprep.subr.bf16.mxu0 0
    %1760 = vmatpush1.bf16.msra.mxu0 %v1545
    %1761 = vmatprep.subr.bf16.mxu0 0
    %1762 = vmatpush1.bf16.msra.mxu0 %v1548
    %1763 = vmatprep.mubr.bf16.mxu0 %v745
    %1764 = vmatmul.mubr.bf16.gmra.mrb[0].mxu0 %v380
    %v1765 = vpop.f32.mrb[0].mxu0
    %v1766 = vadd.f32 %v1257, %v1765
    %v1767 = vpop.f32.mrb[0].mxu0
    %v1768 = vpop.f32.mrb[0].mxu0
    %v1769 = vadd.f32 %v1257, %v1768
    %v1770 = vpop.f32.mrb[0].mxu0
    %1771 = vdwg.mxu0
    %1772 = vmatprep.subr.bf16.mxu0 0
    %1773 = vmatpush1.bf16.msra.mxu0 %v1551
    %1774 = vmatprep.subr.bf16.mxu0 0
    %1775 = vmatpush1.bf16.msra.mxu0 %v1554
    %1776 = vmatprep.subr.bf16.mxu0 0
    %1777 = vmatpush1.bf16.msra.mxu0 %v1557
    %1778 = vmatprep.subr.bf16.mxu0 0
    %1779 = vmatpush1.bf16.msra.mxu0 %v1560
    %1780 = vmatprep.subr.bf16.mxu0 0
    %1781 = vmatpush1.bf16.msra.mxu0 %v1563
    %1782 = vmatprep.subr.bf16.mxu0 0
    %1783 = vmatpush1.bf16.msra.mxu0 %v1566
    %1784 = vmatprep.subr.bf16.mxu0 0
    %1785 = vmatpush1.bf16.msra.mxu0 %v1569
    %1786 = vmatprep.subr.bf16.mxu0 0
    %1787 = vmatpush1.bf16.msra.mxu0 %v1572
    %1788 = vmatprep.subr.bf16.mxu0 0
    %1789 = vmatpush1.bf16.msra.mxu0 0
    %1790 = vmatprep.subr.bf16.mxu0 0
    %1791 = vmatpush1.bf16.msra.mxu0 0
    %1792 = vmatprep.subr.bf16.mxu0 0
    %1793 = vmatpush1.bf16.msra.mxu0 0
    %1794 = vmatprep.subr.bf16.mxu0 0
    %1795 = vmatpush1.bf16.msra.mxu0 0
    %1796 = vmatprep.subr.bf16.mxu0 0
    %1797 = vmatpush1.bf16.msra.mxu0 0
    %1798 = vmatprep.subr.bf16.mxu0 0
    %1799 = vmatpush1.bf16.msra.mxu0 0
    %1800 = vmatprep.subr.bf16.mxu0 0
    %1801 = vmatpush1.bf16.msra.mxu0 0
    %1802 = vmatprep.subr.bf16.mxu0 0
    %1803 = vmatpush1.bf16.msra.mxu0 0
    %1804 = vmatprep.mubr.bf16.mxu0 0
    %1805 = vmatmul.mubr.bf16.gmra.mrb[0].mxu0 %v1107
    %v1806 = vpop.f32.mrb[0].mxu0
    %v1807 = vadd.f32 %v1766, %v1806
    %v1808 = vpop.f32.mrb[0].mxu0
    %v1809 = vpop.f32.mrb[0].mxu0
    %v1810 = vadd.f32 %v1769, %v1809
    %v1811 = vpop.f32.mrb[0].mxu0
    %1812 = vdwg.mxu0
    %v1813 = vmax.f32 %v1723, 0.0
    %v1814 = vmax.f32 %v1725, 0.0
    %v1815 = vmax.f32 %v1807, 0.0
    %v1816 = vmax.f32 %v1727, 0.0
    %v1817 = vmax.f32 %v1729, 0.0
    %v1818 = vmax.f32 %v1810, 0.0
    %v1819 = vpack.c.bf16 %v1816, %v1813
    %v1820 = vpack.c.bf16 %v1817, %v1814
    %v1821 = vpack.c.bf16 %v1818, %v1815
    %s1822 = scalar_lea.vmem %s10, 576
    %v1823 = vld [vmem:[%s1822] sm:$0xff]
    %v1824 = vld [vmem:[%s1822 + $0x8] sm:$0xf]
    %v1825 = vld [vmem:[%s1822 + $0xc] sm:$0xff]
    %v1826 = vld [vmem:[%s1822 + $0x14] sm:$0xf]
    %v1827 = vld [vmem:[%s1822 + $0x18] sm:$0xff]
    %v1828 = vld [vmem:[%s1822 + $0x20] sm:$0xf]
    %v1829 = vld [vmem:[%s1822 + $0x24] sm:$0xff]
    %v1830 = vld [vmem:[%s1822 + $0x2c] sm:$0xf]
    %v1831 = vld [vmem:[%s1822 + $0x30] sm:$0xff]
    %v1832 = vld [vmem:[%s1822 + $0x38] sm:$0xf]
    %v1833 = vld [vmem:[%s1822 + $0x3c] sm:$0xff]
    %v1834 = vld [vmem:[%s1822 + $0x44] sm:$0xf]
    %v1835 = vld [vmem:[%s1822 + $0x48] sm:$0xff]
    %v1836 = vld [vmem:[%s1822 + $0x50] sm:$0xf]
    %v1837 = vld [vmem:[%s1822 + $0x54] sm:$0xff]
    %v1838 = vld [vmem:[%s1822 + $0x5c] sm:$0xf]
    %v1839 = vld [vmem:[%s1822 + $0x60] sm:$0xff]
    %v1840 = vld [vmem:[%s1822 + $0x68] sm:$0xf]
    %v1841 = vld [vmem:[%s1822 + $0x6c] sm:$0xff]
    %v1842 = vld [vmem:[%s1822 + $0x74] sm:$0xf]
    %v1843 = vld [vmem:[%s1822 + $0x78] sm:$0xff]
    %v1844 = vld [vmem:[%s1822 + $0x80] sm:$0xf]
    %v1845 = vld [vmem:[%s1822 + $0x84] sm:$0xff]
    %v1846 = vld [vmem:[%s1822 + $0x8c] sm:$0xf]
    %v1847 = vld [vmem:[%s1822 + $0x90] sm:$0xff]
    %v1848 = vld [vmem:[%s1822 + $0x98] sm:$0xf]
    %v1849 = vld [vmem:[%s1822 + $0x9c] sm:$0xff]
    %v1850 = vld [vmem:[%s1822 + $0xa4] sm:$0xf]
    %v1851 = vld [vmem:[%s1822 + $0xa8] sm:$0xff]
    %v1852 = vld [vmem:[%s1822 + $0xb0] sm:$0xf]
    %v1853 = vld [vmem:[%s1822 + $0xb4] sm:$0xff]
    %v1854 = vld [vmem:[%s1822 + $0xbc] sm:$0xf]
    %v1855 = vld [vmem:[%s1822 + $0xc0] sm:$0xff]
    %v1856 = vld [vmem:[%s1822 + $0xc8] sm:$0xf]
    %v1857 = vld [vmem:[%s1822 + $0xcc] sm:$0xff]
    %v1858 = vld [vmem:[%s1822 + $0xd4] sm:$0xf]
    %v1859 = vld [vmem:[%s1822 + $0xd8] sm:$0xff]
    %v1860 = vld [vmem:[%s1822 + $0xe0] sm:$0xf]
    %v1861 = vld [vmem:[%s1822 + $0xe4] sm:$0xff]
    %v1862 = vld [vmem:[%s1822 + $0xec] sm:$0xf]
    %v1863 = vld [vmem:[%s1822 + $0xf0] sm:$0xff]
    %v1864 = vld [vmem:[%s1822 + $0xf8] sm:$0xf]
    %v1865 = vld [vmem:[%s1822 + $0xfc] sm:$0xff]
    %v1866 = vld [vmem:[%s1822 + $0x104] sm:$0xf]
    %v1867 = vld [vmem:[%s1822 + $0x108] sm:$0xff]
    %v1868 = vld [vmem:[%s1822 + $0x110] sm:$0xf]
    %v1869 = vld [vmem:[%s1822 + $0x114] sm:$0xff]
    %v1870 = vld [vmem:[%s1822 + $0x11c] sm:$0xf]
    %v1871 = vld [vmem:[%s1822 + $0x120] sm:$0xff]
    %v1872 = vld [vmem:[%s1822 + $0x128] sm:$0xf]
    %v1873 = vld [vmem:[%s1822 + $0x12c] sm:$0xff]
    %v1874 = vld [vmem:[%s1822 + $0x134] sm:$0xf]
    %v1875 = vld [vmem:[%s1822 + $0x138] sm:$0xff]
    %v1876 = vld [vmem:[%s1822 + $0x140] sm:$0xf]
    %v1877 = vld [vmem:[%s1822 + $0x144] sm:$0xff]
    %v1878 = vld [vmem:[%s1822 + $0x14c] sm:$0xf]
    %v1879 = vld [vmem:[%s1822 + $0x150] sm:$0xff]
    %v1880 = vld [vmem:[%s1822 + $0x158] sm:$0xf]
    %v1881 = vld [vmem:[%s1822 + $0x15c] sm:$0xff]
    %v1882 = vld [vmem:[%s1822 + $0x164] sm:$0xf]
    %v1883 = vld [vmem:[%s1822 + $0x168] sm:$0xff]
    %v1884 = vld [vmem:[%s1822 + $0x170] sm:$0xf]
    %v1885 = vld [vmem:[%s1822 + $0x174] sm:$0xff]
    %v1886 = vld [vmem:[%s1822 + $0x17c] sm:$0xf]
    %v1887 = vld [vmem:[%s1822 + $0x180] sm:$0xff]
    %v1888 = vld [vmem:[%s1822 + $0x188] sm:$0xf]
    %v1889 = vld [vmem:[%s1822 + $0x18c] sm:$0xff]
    %v1890 = vld [vmem:[%s1822 + $0x194] sm:$0xf]
    %v1891 = vld [vmem:[%s1822 + $0x198] sm:$0xff]
    %v1892 = vld [vmem:[%s1822 + $0x1a0] sm:$0xf]
    %v1893 = vld [vmem:[%s1822 + $0x1a4] sm:$0xff]
    %v1894 = vld [vmem:[%s1822 + $0x1ac] sm:$0xf]
    %v1895 = vld [vmem:[%s1822 + $0x1b0] sm:$0xff]
    %v1896 = vld [vmem:[%s1822 + $0x1b8] sm:$0xf]
    %v1897 = vld [vmem:[%s1822 + $0x1bc] sm:$0xff]
    %v1898 = vld [vmem:[%s1822 + $0x1c4] sm:$0xf]
    %v1899 = vld [vmem:[%s1822 + $0x1c8] sm:$0xff]
    %v1900 = vld [vmem:[%s1822 + $0x1d0] sm:$0xf]
    %v1901 = vld [vmem:[%s1822 + $0x1d4] sm:$0xff]
    %v1902 = vld [vmem:[%s1822 + $0x1dc] sm:$0xf]
    %v1903 = vld [vmem:[%s1822 + $0x1e0] sm:$0xff]
    %v1904 = vld [vmem:[%s1822 + $0x1e8] sm:$0xf]
    %v1905 = vld [vmem:[%s1822 + $0x1ec] sm:$0xff]
    %v1906 = vld [vmem:[%s1822 + $0x1f4] sm:$0xf]
    %v1907 = vld [vmem:[%s1822 + $0x1f8] sm:$0xff]
    %v1908 = vld [vmem:[%s1822 + $0x200] sm:$0xf]
    %v1909 = vld [vmem:[%s1822 + $0x204] sm:$0xff]
    %v1910 = vld [vmem:[%s1822 + $0x20c] sm:$0xf]
    %v1911 = vld [vmem:[%s1822 + $0x210] sm:$0xff]
    %v1912 = vld [vmem:[%s1822 + $0x218] sm:$0xf]
    %v1913 = vld [vmem:[%s1822 + $0x21c] sm:$0xff]
    %v1914 = vld [vmem:[%s1822 + $0x224] sm:$0xf]
    %v1915 = vld [vmem:[%s1822 + $0x228] sm:$0xff]
    %v1916 = vld [vmem:[%s1822 + $0x230] sm:$0xf]
    %v1917 = vld [vmem:[%s1822 + $0x234] sm:$0xff]
    %v1918 = vld [vmem:[%s1822 + $0x23c] sm:$0xf]
    %s1919 = scalar_lea.vmem %s11, 3
    %v1920 = vld [vmem:[%s1919] sm:$0x7]
    %v1922 = vlaneseq
    %v1923 = vshrl.u32 %v1922, 7
    %v1924 = vsub.s32 0, %v1923
    %v1925 = vrot.slane %v1920, %v1924
    %v1926 = vlaneseq
    %v1927 = vshrl.u32 %v1926, 7
    %v1928 = vsub.s32 1, %v1927
    %v1929 = vrot.slane %v1920, %v1928
    %v1930 = vlaneseq
    %v1931 = vshrl.u32 %v1930, 7
    %v1932 = vsub.s32 2, %v1931
    %v1933 = vrot.slane %v1920, %v1932
    %v2033 = vunpack.c.l.b16 %v1823
    %v2034 = vunpack.c.h.b16 %v1823
    %v2035 = vunpack.c.l.b16 %v1824
    %v2036 = vunpack.c.l.b16 %v1825
    %v2037 = vunpack.c.h.b16 %v1825
    %v2038 = vunpack.c.l.b16 %v1826
    %v2039 = vunpack.c.l.b16 %v1827
    %v2040 = vunpack.c.h.b16 %v1827
    %v2041 = vunpack.c.l.b16 %v1828
    %v2042 = vunpack.c.l.b16 %v1829
    %v2043 = vunpack.c.h.b16 %v1829
    %v2044 = vunpack.c.l.b16 %v1830
    %v2045 = vunpack.c.l.b16 %v1831
    %v2046 = vunpack.c.h.b16 %v1831
    %v2047 = vunpack.c.l.b16 %v1832
    %v2048 = vunpack.c.l.b16 %v1833
    %v2049 = vunpack.c.h.b16 %v1833
    %v2050 = vunpack.c.l.b16 %v1834
    %v2051 = vunpack.c.l.b16 %v1835
    %v2052 = vunpack.c.h.b16 %v1835
    %v2053 = vunpack.c.l.b16 %v1836
    %v2054 = vunpack.c.l.b16 %v1837
    %v2055 = vunpack.c.h.b16 %v1837
    %v2056 = vunpack.c.l.b16 %v1838
    %v2057 = vunpack.c.l.b16 %v1839
    %v2058 = vunpack.c.h.b16 %v1839
    %v2059 = vunpack.c.l.b16 %v1840
    %v2060 = vunpack.c.l.b16 %v1841
    %v2061 = vunpack.c.h.b16 %v1841
    %v2062 = vunpack.c.l.b16 %v1842
    %v2063 = vunpack.c.l.b16 %v1843
    %v2064 = vunpack.c.h.b16 %v1843
    %v2065 = vunpack.c.l.b16 %v1844
    %v2066 = vunpack.c.l.b16 %v1845
    %v2067 = vunpack.c.h.b16 %v1845
    %v2068 = vunpack.c.l.b16 %v1846
    %v2069 = vunpack.c.l.b16 %v1847
    %v2070 = vunpack.c.h.b16 %v1847
    %v2071 = vunpack.c.l.b16 %v1848
    %v2072 = vunpack.c.l.b16 %v1849
    %v2073 = vunpack.c.h.b16 %v1849
    %v2074 = vunpack.c.l.b16 %v1850
    %v2075 = vunpack.c.l.b16 %v1851
    %v2076 = vunpack.c.h.b16 %v1851
    %v2077 = vunpack.c.l.b16 %v1852
    %v2078 = vunpack.c.l.b16 %v1853
    %v2079 = vunpack.c.h.b16 %v1853
    %v2080 = vunpack.c.l.b16 %v1854
    %v2081 = vunpack.c.l.b16 %v1855
    %v2082 = vunpack.c.h.b16 %v1855
    %v2083 = vunpack.c.l.b16 %v1856
    %v2084 = vunpack.c.l.b16 %v1857
    %v2085 = vunpack.c.h.b16 %v1857
    %v2086 = vunpack.c.l.b16 %v1858
    %v2087 = vunpack.c.l.b16 %v1859
    %v2088 = vunpack.c.h.b16 %v1859
    %v2089 = vunpack.c.l.b16 %v1860
    %v2090 = vunpack.c.l.b16 %v1861
    %v2091 = vunpack.c.h.b16 %v1861
    %v2092 = vunpack.c.l.b16 %v1862
    %v2093 = vunpack.c.l.b16 %v1863
    %v2094 = vunpack.c.h.b16 %v1863
    %v2095 = vunpack.c.l.b16 %v1864
    %v2096 = vunpack.c.l.b16 %v1865
    %v2097 = vunpack.c.h.b16 %v1865
    %v2098 = vunpack.c.l.b16 %v1866
    %v2099 = vunpack.c.l.b16 %v1867
    %v2100 = vunpack.c.h.b16 %v1867
    %v2101 = vunpack.c.l.b16 %v1868
    %v2102 = vunpack.c.l.b16 %v1869
    %v2103 = vunpack.c.h.b16 %v1869
    %v2104 = vunpack.c.l.b16 %v1870
    %v2105 = vunpack.c.l.b16 %v1871
    %v2106 = vunpack.c.h.b16 %v1871
    %v2107 = vunpack.c.l.b16 %v1872
    %v2108 = vunpack.c.l.b16 %v1873
    %v2109 = vunpack.c.h.b16 %v1873
    %v2110 = vunpack.c.l.b16 %v1874
    %v2111 = vunpack.c.l.b16 %v1875
    %v2112 = vunpack.c.h.b16 %v1875
    %v2113 = vunpack.c.l.b16 %v1876
    %v2114 = vunpack.c.l.b16 %v1877
    %v2115 = vunpack.c.h.b16 %v1877
    %v2116 = vunpack.c.l.b16 %v1878
    %v2117 = vunpack.c.l.b16 %v1879
    %v2118 = vunpack.c.h.b16 %v1879
    %v2119 = vunpack.c.l.b16 %v1880
    %v2120 = vunpack.c.l.b16 %v1881
    %v2121 = vunpack.c.h.b16 %v1881
    %v2122 = vunpack.c.l.b16 %v1882
    %v2123 = vunpack.c.l.b16 %v1883
    %v2124 = vunpack.c.h.b16 %v1883
    %v2125 = vunpack.c.l.b16 %v1884
    %v2126 = vunpack.c.l.b16 %v1885
    %v2127 = vunpack.c.h.b16 %v1885
    %v2128 = vunpack.c.l.b16 %v1886
    %v2129 = vunpack.c.l.b16 %v1887
    %v2130 = vunpack.c.h.b16 %v1887
    %v2131 = vunpack.c.l.b16 %v1888
    %v2132 = vunpack.c.l.b16 %v1889
    %v2133 = vunpack.c.h.b16 %v1889
    %v2134 = vunpack.c.l.b16 %v1890
    %v2135 = vunpack.c.l.b16 %v1891
    %v2136 = vunpack.c.h.b16 %v1891
    %v2137 = vunpack.c.l.b16 %v1892
    %v2138 = vunpack.c.l.b16 %v1893
    %v2139 = vunpack.c.h.b16 %v1893
    %v2140 = vunpack.c.l.b16 %v1894
    %v2141 = vunpack.c.l.b16 %v1895
    %v2142 = vunpack.c.h.b16 %v1895
    %v2143 = vunpack.c.l.b16 %v1896
    %v2144 = vunpack.c.l.b16 %v1897
    %v2145 = vunpack.c.h.b16 %v1897
    %v2146 = vunpack.c.l.b16 %v1898
    %v2147 = vunpack.c.l.b16 %v1899
    %v2148 = vunpack.c.h.b16 %v1899
    %v2149 = vunpack.c.l.b16 %v1900
    %v2150 = vunpack.c.l.b16 %v1901
    %v2151 = vunpack.c.h.b16 %v1901
    %v2152 = vunpack.c.l.b16 %v1902
    %v2153 = vunpack.c.l.b16 %v1903
    %v2154 = vunpack.c.h.b16 %v1903
    %v2155 = vunpack.c.l.b16 %v1904
    %v2156 = vunpack.c.l.b16 %v1905
    %v2157 = vunpack.c.h.b16 %v1905
    %v2158 = vunpack.c.l.b16 %v1906
    %v2159 = vunpack.c.l.b16 %v1907
    %v2160 = vunpack.c.h.b16 %v1907
    %v2161 = vunpack.c.l.b16 %v1908
    %v2162 = vunpack.c.l.b16 %v1909
    %v2163 = vunpack.c.h.b16 %v1909
    %v2164 = vunpack.c.l.b16 %v1910
    %v2165 = vunpack.c.l.b16 %v1911
    %v2166 = vunpack.c.h.b16 %v1911
    %v2167 = vunpack.c.l.b16 %v1912
    %v2168 = vunpack.c.l.b16 %v1913
    %v2169 = vunpack.c.h.b16 %v1913
    %v2170 = vunpack.c.l.b16 %v1914
    %v2171 = vunpack.c.l.b16 %v1915
    %v2172 = vunpack.c.h.b16 %v1915
    %v2173 = vunpack.c.l.b16 %v1916
    %v2174 = vunpack.c.l.b16 %v1917
    %v2175 = vunpack.c.h.b16 %v1917
    %v2176 = vunpack.c.l.b16 %v1918
    %v2177 = vpack.c.b16 %v2036, %v2033
    %v2178 = vpack.c.b16 %v2037, %v2034
    %v2179 = vpack.c.b16 %v2038, %v2035
    %v2180 = vpack.c.b16 %v2042, %v2039
    %v2181 = vpack.c.b16 %v2043, %v2040
    %v2182 = vpack.c.b16 %v2044, %v2041
    %v2183 = vpack.c.b16 %v2048, %v2045
    %v2184 = vpack.c.b16 %v2049, %v2046
    %v2185 = vpack.c.b16 %v2050, %v2047
    %v2186 = vpack.c.b16 %v2054, %v2051
    %v2187 = vpack.c.b16 %v2055, %v2052
    %v2188 = vpack.c.b16 %v2056, %v2053
    %v2189 = vpack.c.b16 %v2060, %v2057
    %v2190 = vpack.c.b16 %v2061, %v2058
    %v2191 = vpack.c.b16 %v2062, %v2059
    %v2192 = vpack.c.b16 %v2066, %v2063
    %v2193 = vpack.c.b16 %v2067, %v2064
    %v2194 = vpack.c.b16 %v2068, %v2065
    %v2195 = vpack.c.b16 %v2072, %v2069
    %v2196 = vpack.c.b16 %v2073, %v2070
    %v2197 = vpack.c.b16 %v2074, %v2071
    %v2198 = vpack.c.b16 %v2078, %v2075
    %v2199 = vpack.c.b16 %v2079, %v2076
    %v2200 = vpack.c.b16 %v2080, %v2077
    %v2201 = vpack.c.b16 %v2084, %v2081
    %v2202 = vpack.c.b16 %v2085, %v2082
    %v2203 = vpack.c.b16 %v2086, %v2083
    %v2204 = vpack.c.b16 %v2090, %v2087
    %v2205 = vpack.c.b16 %v2091, %v2088
    %v2206 = vpack.c.b16 %v2092, %v2089
    %v2207 = vpack.c.b16 %v2096, %v2093
    %v2208 = vpack.c.b16 %v2097, %v2094
    %v2209 = vpack.c.b16 %v2098, %v2095
    %v2210 = vpack.c.b16 %v2102, %v2099
    %v2211 = vpack.c.b16 %v2103, %v2100
    %v2212 = vpack.c.b16 %v2104, %v2101
    %v2213 = vpack.c.b16 %v2108, %v2105
    %v2214 = vpack.c.b16 %v2109, %v2106
    %v2215 = vpack.c.b16 %v2110, %v2107
    %v2216 = vpack.c.b16 %v2114, %v2111
    %v2217 = vpack.c.b16 %v2115, %v2112
    %v2218 = vpack.c.b16 %v2116, %v2113
    %v2219 = vpack.c.b16 %v2120, %v2117
    %v2220 = vpack.c.b16 %v2121, %v2118
    %v2221 = vpack.c.b16 %v2122, %v2119
    %v2222 = vpack.c.b16 %v2126, %v2123
    %v2223 = vpack.c.b16 %v2127, %v2124
    %v2224 = vpack.c.b16 %v2128, %v2125
    %v2225 = vpack.c.b16 %v2132, %v2129
    %v2226 = vpack.c.b16 %v2133, %v2130
    %v2227 = vpack.c.b16 %v2134, %v2131
    %v2228 = vpack.c.b16 %v2138, %v2135
    %v2229 = vpack.c.b16 %v2139, %v2136
    %v2230 = vpack.c.b16 %v2140, %v2137
    %v2231 = vpack.c.b16 %v2144, %v2141
    %v2232 = vpack.c.b16 %v2145, %v2142
    %v2233 = vpack.c.b16 %v2146, %v2143
    %v2234 = vpack.c.b16 %v2150, %v2147
    %v2235 = vpack.c.b16 %v2151, %v2148
    %v2236 = vpack.c.b16 %v2152, %v2149
    %v2237 = vpack.c.b16 %v2156, %v2153
    %v2238 = vpack.c.b16 %v2157, %v2154
    %v2239 = vpack.c.b16 %v2158, %v2155
    %v2240 = vpack.c.b16 %v2162, %v2159
    %v2241 = vpack.c.b16 %v2163, %v2160
    %v2242 = vpack.c.b16 %v2164, %v2161
    %v2243 = vpack.c.b16 %v2168, %v2165
    %v2244 = vpack.c.b16 %v2169, %v2166
    %v2245 = vpack.c.b16 %v2170, %v2167
    %v2246 = vpack.c.b16 %v2174, %v2171
    %v2247 = vpack.c.b16 %v2175, %v2172
    %v2248 = vpack.c.b16 %v2176, %v2173
    %2321 = vmatprep.subr.bf16.mxu0 %v2178
    %2322 = vmatpush1.bf16.msra.mxu0 %v2177
    %2323 = vmatprep.subr.bf16.mxu0 %v2181
    %2324 = vmatpush1.bf16.msra.mxu0 %v2180
    %2325 = vmatprep.subr.bf16.mxu0 %v2184
    %2326 = vmatpush1.bf16.msra.mxu0 %v2183
    %2327 = vmatprep.subr.bf16.mxu0 %v2187
    %2328 = vmatpush1.bf16.msra.mxu0 %v2186
    %2329 = vmatprep.subr.bf16.mxu0 %v2190
    %2330 = vmatpush1.bf16.msra.mxu0 %v2189
    %2331 = vmatprep.subr.bf16.mxu0 %v2193
    %2332 = vmatpush1.bf16.msra.mxu0 %v2192
    %2333 = vmatprep.subr.bf16.mxu0 %v2196
    %2334 = vmatpush1.bf16.msra.mxu0 %v2195
    %2335 = vmatprep.subr.bf16.mxu0 %v2199
    %2336 = vmatpush1.bf16.msra.mxu0 %v2198
    %2337 = vmatprep.subr.bf16.mxu0 %v2202
    %2338 = vmatpush1.bf16.msra.mxu0 %v2201
    %2339 = vmatprep.subr.bf16.mxu0 %v2205
    %2340 = vmatpush1.bf16.msra.mxu0 %v2204
    %2341 = vmatprep.subr.bf16.mxu0 %v2208
    %2342 = vmatpush1.bf16.msra.mxu0 %v2207
    %2343 = vmatprep.subr.bf16.mxu0 %v2211
    %2344 = vmatpush1.bf16.msra.mxu0 %v2210
    %2345 = vmatprep.subr.bf16.mxu0 %v2214
    %2346 = vmatpush1.bf16.msra.mxu0 %v2213
    %2347 = vmatprep.subr.bf16.mxu0 %v2217
    %2348 = vmatpush1.bf16.msra.mxu0 %v2216
    %2349 = vmatprep.subr.bf16.mxu0 %v2220
    %2350 = vmatpush1.bf16.msra.mxu0 %v2219
    %2351 = vmatprep.subr.bf16.mxu0 %v2223
    %2352 = vmatpush1.bf16.msra.mxu0 %v2222
    %2353 = vmatprep.mubr.bf16.mxu0 %v1820
    %2354 = vmatmul.mubr.bf16.gmra.mrb[0].mxu0 %v1819
    %v2355 = vpop.f32.mrb[0].mxu0
    %v2356 = vadd.f32 %v1925, %v2355
    %v2357 = vpop.f32.mrb[0].mxu0
    %v2358 = vadd.f32 %v1929, %v2357
    %v2359 = vpop.f32.mrb[0].mxu0
    %v2360 = vadd.f32 %v1925, %v2359
    %v2361 = vpop.f32.mrb[0].mxu0
    %v2362 = vadd.f32 %v1929, %v2361
    %2363 = vdwg.mxu0
    %2364 = vmatprep.subr.bf16.mxu0 %v2226
    %2365 = vmatpush1.bf16.msra.mxu0 %v2225
    %2366 = vmatprep.subr.bf16.mxu0 %v2229
    %2367 = vmatpush1.bf16.msra.mxu0 %v2228
    %2368 = vmatprep.subr.bf16.mxu0 %v2232
    %2369 = vmatpush1.bf16.msra.mxu0 %v2231
    %2370 = vmatprep.subr.bf16.mxu0 %v2235
    %2371 = vmatpush1.bf16.msra.mxu0 %v2234
    %2372 = vmatprep.subr.bf16.mxu0 %v2238
    %2373 = vmatpush1.bf16.msra.mxu0 %v2237
    %2374 = vmatprep.subr.bf16.mxu0 %v2241
    %2375 = vmatpush1.bf16.msra.mxu0 %v2240
    %2376 = vmatprep.subr.bf16.mxu0 %v2244
    %2377 = vmatpush1.bf16.msra.mxu0 %v2243
    %2378 = vmatprep.subr.bf16.mxu0 %v2247
    %2379 = vmatpush1.bf16.msra.mxu0 %v2246
    %2380 = vmatprep.subr.bf16.mxu0 0
    %2381 = vmatpush1.bf16.msra.mxu0 0
    %2382 = vmatprep.subr.bf16.mxu0 0
    %2383 = vmatpush1.bf16.msra.mxu0 0
    %2384 = vmatprep.subr.bf16.mxu0 0
    %2385 = vmatpush1.bf16.msra.mxu0 0
    %2386 = vmatprep.subr.bf16.mxu0 0
    %2387 = vmatpush1.bf16.msra.mxu0 0
    %2388 = vmatprep.subr.bf16.mxu0 0
    %2389 = vmatpush1.bf16.msra.mxu0 0
    %2390 = vmatprep.subr.bf16.mxu0 0
    %2391 = vmatpush1.bf16.msra.mxu0 0
    %2392 = vmatprep.subr.bf16.mxu0 0
    %2393 = vmatpush1.bf16.msra.mxu0 0
    %2394 = vmatprep.subr.bf16.mxu0 0
    %2395 = vmatpush1.bf16.msra.mxu0 0
    %2396 = vmatprep.mubr.bf16.mxu0 0
    %2397 = vmatmul.mubr.bf16.gmra.mrb[0].mxu0 %v1821
    %v2398 = vpop.f32.mrb[0].mxu0
    %v2399 = vadd.f32 %v2356, %v2398
    %v2400 = vpop.f32.mrb[0].mxu0
    %v2401 = vadd.f32 %v2358, %v2400
    %v2402 = vpop.f32.mrb[0].mxu0
    %v2403 = vadd.f32 %v2360, %v2402
    %v2404 = vpop.f32.mrb[0].mxu0
    %v2405 = vadd.f32 %v2362, %v2404
    %2406 = vdwg.mxu0
    %2407 = vmatprep.subr.bf16.mxu0 0
    %2408 = vmatpush1.bf16.msra.mxu0 %v2179
    %2409 = vmatprep.subr.bf16.mxu0 0
    %2410 = vmatpush1.bf16.msra.mxu0 %v2182
    %2411 = vmatprep.subr.bf16.mxu0 0
    %2412 = vmatpush1.bf16.msra.mxu0 %v2185
    %2413 = vmatprep.subr.bf16.mxu0 0
    %2414 = vmatpush1.bf16.msra.mxu0 %v2188
    %2415 = vmatprep.subr.bf16.mxu0 0
    %2416 = vmatpush1.bf16.msra.mxu0 %v2191
    %2417 = vmatprep.subr.bf16.mxu0 0
    %2418 = vmatpush1.bf16.msra.mxu0 %v2194
    %2419 = vmatprep.subr.bf16.mxu0 0
    %2420 = vmatpush1.bf16.msra.mxu0 %v2197
    %2421 = vmatprep.subr.bf16.mxu0 0
    %2422 = vmatpush1.bf16.msra.mxu0 %v2200
    %2423 = vmatprep.subr.bf16.mxu0 0
    %2424 = vmatpush1.bf16.msra.mxu0 %v2203
    %2425 = vmatprep.subr.bf16.mxu0 0
    %2426 = vmatpush1.bf16.msra.mxu0 %v2206
    %2427 = vmatprep.subr.bf16.mxu0 0
    %2428 = vmatpush1.bf16.msra.mxu0 %v2209
    %2429 = vmatprep.subr.bf16.mxu0 0
    %2430 = vmatpush1.bf16.msra.mxu0 %v2212
    %2431 = vmatprep.subr.bf16.mxu0 0
    %2432 = vmatpush1.bf16.msra.mxu0 %v2215
    %2433 = vmatprep.subr.bf16.mxu0 0
    %2434 = vmatpush1.bf16.msra.mxu0 %v2218
    %2435 = vmatprep.subr.bf16.mxu0 0
    %2436 = vmatpush1.bf16.msra.mxu0 %v2221
    %2437 = vmatprep.subr.bf16.mxu0 0
    %2438 = vmatpush1.bf16.msra.mxu0 %v2224
    %2439 = vmatprep.mubr.bf16.mxu0 %v1820
    %2440 = vmatmul.mubr.bf16.gmra.mrb[0].mxu0 %v1819
    %v2441 = vpop.f32.mrb[0].mxu0
    %v2442 = vadd.f32 %v1933, %v2441
    %v2443 = vpop.f32.mrb[0].mxu0
    %v2444 = vpop.f32.mrb[0].mxu0
    %v2445 = vadd.f32 %v1933, %v2444
    %v2446 = vpop.f32.mrb[0].mxu0
    %2447 = vdwg.mxu0
    %2448 = vmatprep.subr.bf16.mxu0 0
    %2449 = vmatpush1.bf16.msra.mxu0 %v2227
    %2450 = vmatprep.subr.bf16.mxu0 0
    %2451 = vmatpush1.bf16.msra.mxu0 %v2230
    %2452 = vmatprep.subr.bf16.mxu0 0
    %2453 = vmatpush1.bf16.msra.mxu0 %v2233
    %2454 = vmatprep.subr.bf16.mxu0 0
    %2455 = vmatpush1.bf16.msra.mxu0 %v2236
    %2456 = vmatprep.subr.bf16.mxu0 0
    %2457 = vmatpush1.bf16.msra.mxu0 %v2239
    %2458 = vmatprep.subr.bf16.mxu0 0
    %2459 = vmatpush1.bf16.msra.mxu0 %v2242
    %2460 = vmatprep.subr.bf16.mxu0 0
    %2461 = vmatpush1.bf16.msra.mxu0 %v2245
    %2462 = vmatprep.subr.bf16.mxu0 0
    %2463 = vmatpush1.bf16.msra.mxu0 %v2248
    %2464 = vmatprep.subr.bf16.mxu0 0
    %2465 = vmatpush1.bf16.msra.mxu0 0
    %2466 = vmatprep.subr.bf16.mxu0 0
    %2467 = vmatpush1.bf16.msra.mxu0 0
    %2468 = vmatprep.subr.bf16.mxu0 0
    %2469 = vmatpush1.bf16.msra.mxu0 0
    %2470 = vmatprep.subr.bf16.mxu0 0
    %2471 = vmatpush1.bf16.msra.mxu0 0
    %2472 = vmatprep.subr.bf16.mxu0 0
    %2473 = vmatpush1.bf16.msra.mxu0 0
    %2474 = vmatprep.subr.bf16.mxu0 0
    %2475 = vmatpush1.bf16.msra.mxu0 0
    %2476 = vmatprep.subr.bf16.mxu0 0
    %2477 = vmatpush1.bf16.msra.mxu0 0
    %2478 = vmatprep.subr.bf16.mxu0 0
    %2479 = vmatpush1.bf16.msra.mxu0 0
    %2480 = vmatprep.mubr.bf16.mxu0 0
    %2481 = vmatmul.mubr.bf16.gmra.mrb[0].mxu0 %v1821
    %v2482 = vpop.f32.mrb[0].mxu0
    %v2483 = vadd.f32 %v2442, %v2482
    %v2484 = vpop.f32.mrb[0].mxu0
    %v2485 = vpop.f32.mrb[0].mxu0
    %v2486 = vadd.f32 %v2445, %v2485
    %v2487 = vpop.f32.mrb[0].mxu0
    %2488 = vdwg.mxu0
    %v2489 = vmax.f32 %v2399, 0.0
    %v2490 = vmax.f32 %v2401, 0.0
    %v2491 = vmax.f32 %v2483, 0.0
    %v2492 = vmax.f32 %v2403, 0.0
    %v2493 = vmax.f32 %v2405, 0.0
    %v2494 = vmax.f32 %v2486, 0.0
    %v2495 = vpack.c.bf16 %v2492, %v2489
    %v2496 = vpack.c.bf16 %v2493, %v2490
    %v2497 = vpack.c.bf16 %v2494, %v2491
    %s2498 = scalar_lea.vmem %s10, 1152
    %v2499 = vld [vmem:[%s2498] sm:$0xff]
    %v2500 = vld [vmem:[%s2498 + $0x8] sm:$0xf]
    %v2501 = vld [vmem:[%s2498 + $0xc] sm:$0xff]
    %v2502 = vld [vmem:[%s2498 + $0x14] sm:$0xf]
    %v2503 = vld [vmem:[%s2498 + $0x18] sm:$0xff]
    %v2504 = vld [vmem:[%s2498 + $0x20] sm:$0xf]
    %v2505 = vld [vmem:[%s2498 + $0x24] sm:$0xff]
    %v2506 = vld [vmem:[%s2498 + $0x2c] sm:$0xf]
    %v2507 = vld [vmem:[%s2498 + $0x30] sm:$0xff]
    %v2508 = vld [vmem:[%s2498 + $0x38] sm:$0xf]
    %v2509 = vld [vmem:[%s2498 + $0x3c] sm:$0xff]
    %v2510 = vld [vmem:[%s2498 + $0x44] sm:$0xf]
    %v2511 = vld [vmem:[%s2498 + $0x48] sm:$0xff]
    %v2512 = vld [vmem:[%s2498 + $0x50] sm:$0xf]
    %v2513 = vld [vmem:[%s2498 + $0x54] sm:$0xff]
    %v2514 = vld [vmem:[%s2498 + $0x5c] sm:$0xf]
    %v2515 = vld [vmem:[%s2498 + $0x60] sm:$0xff]
    %v2516 = vld [vmem:[%s2498 + $0x68] sm:$0xf]
    %v2517 = vld [vmem:[%s2498 + $0x6c] sm:$0xff]
    %v2518 = vld [vmem:[%s2498 + $0x74] sm:$0xf]
    %v2519 = vld [vmem:[%s2498 + $0x78] sm:$0xff]
    %v2520 = vld [vmem:[%s2498 + $0x80] sm:$0xf]
    %v2521 = vld [vmem:[%s2498 + $0x84] sm:$0xff]
    %v2522 = vld [vmem:[%s2498 + $0x8c] sm:$0xf]
    %v2523 = vld [vmem:[%s2498 + $0x90] sm:$0xff]
    %v2524 = vld [vmem:[%s2498 + $0x98] sm:$0xf]
    %v2525 = vld [vmem:[%s2498 + $0x9c] sm:$0xff]
    %v2526 = vld [vmem:[%s2498 + $0xa4] sm:$0xf]
    %v2527 = vld [vmem:[%s2498 + $0xa8] sm:$0xff]
    %v2528 = vld [vmem:[%s2498 + $0xb0] sm:$0xf]
    %v2529 = vld [vmem:[%s2498 + $0xb4] sm:$0xff]
    %v2530 = vld [vmem:[%s2498 + $0xbc] sm:$0xf]
    %v2531 = vld [vmem:[%s2498 + $0xc0] sm:$0xff]
    %v2532 = vld [vmem:[%s2498 + $0xc8] sm:$0xf]
    %v2533 = vld [vmem:[%s2498 + $0xcc] sm:$0xff]
    %v2534 = vld [vmem:[%s2498 + $0xd4] sm:$0xf]
    %v2535 = vld [vmem:[%s2498 + $0xd8] sm:$0xff]
    %v2536 = vld [vmem:[%s2498 + $0xe0] sm:$0xf]
    %v2537 = vld [vmem:[%s2498 + $0xe4] sm:$0xff]
    %v2538 = vld [vmem:[%s2498 + $0xec] sm:$0xf]
    %v2539 = vld [vmem:[%s2498 + $0xf0] sm:$0xff]
    %v2540 = vld [vmem:[%s2498 + $0xf8] sm:$0xf]
    %v2541 = vld [vmem:[%s2498 + $0xfc] sm:$0xff]
    %v2542 = vld [vmem:[%s2498 + $0x104] sm:$0xf]
    %v2543 = vld [vmem:[%s2498 + $0x108] sm:$0xff]
    %v2544 = vld [vmem:[%s2498 + $0x110] sm:$0xf]
    %v2545 = vld [vmem:[%s2498 + $0x114] sm:$0xff]
    %v2546 = vld [vmem:[%s2498 + $0x11c] sm:$0xf]
    %v2547 = vld [vmem:[%s2498 + $0x120] sm:$0xff]
    %v2548 = vld [vmem:[%s2498 + $0x128] sm:$0xf]
    %v2549 = vld [vmem:[%s2498 + $0x12c] sm:$0xff]
    %v2550 = vld [vmem:[%s2498 + $0x134] sm:$0xf]
    %v2551 = vld [vmem:[%s2498 + $0x138] sm:$0xff]
    %v2552 = vld [vmem:[%s2498 + $0x140] sm:$0xf]
    %v2553 = vld [vmem:[%s2498 + $0x144] sm:$0xff]
    %v2554 = vld [vmem:[%s2498 + $0x14c] sm:$0xf]
    %v2555 = vld [vmem:[%s2498 + $0x150] sm:$0xff]
    %v2556 = vld [vmem:[%s2498 + $0x158] sm:$0xf]
    %v2557 = vld [vmem:[%s2498 + $0x15c] sm:$0xff]
    %v2558 = vld [vmem:[%s2498 + $0x164] sm:$0xf]
    %v2559 = vld [vmem:[%s2498 + $0x168] sm:$0xff]
    %v2560 = vld [vmem:[%s2498 + $0x170] sm:$0xf]
    %v2561 = vld [vmem:[%s2498 + $0x174] sm:$0xff]
    %v2562 = vld [vmem:[%s2498 + $0x17c] sm:$0xf]
    %v2563 = vld [vmem:[%s2498 + $0x180] sm:$0xff]
    %v2564 = vld [vmem:[%s2498 + $0x188] sm:$0xf]
    %v2565 = vld [vmem:[%s2498 + $0x18c] sm:$0xff]
    %v2566 = vld [vmem:[%s2498 + $0x194] sm:$0xf]
    %v2567 = vld [vmem:[%s2498 + $0x198] sm:$0xff]
    %v2568 = vld [vmem:[%s2498 + $0x1a0] sm:$0xf]
    %v2569 = vld [vmem:[%s2498 + $0x1a4] sm:$0xff]
    %v2570 = vld [vmem:[%s2498 + $0x1ac] sm:$0xf]
    %v2571 = vld [vmem:[%s2498 + $0x1b0] sm:$0xff]
    %v2572 = vld [vmem:[%s2498 + $0x1b8] sm:$0xf]
    %v2573 = vld [vmem:[%s2498 + $0x1bc] sm:$0xff]
    %v2574 = vld [vmem:[%s2498 + $0x1c4] sm:$0xf]
    %v2575 = vld [vmem:[%s2498 + $0x1c8] sm:$0xff]
    %v2576 = vld [vmem:[%s2498 + $0x1d0] sm:$0xf]
    %v2577 = vld [vmem:[%s2498 + $0x1d4] sm:$0xff]
    %v2578 = vld [vmem:[%s2498 + $0x1dc] sm:$0xf]
    %v2579 = vld [vmem:[%s2498 + $0x1e0] sm:$0xff]
    %v2580 = vld [vmem:[%s2498 + $0x1e8] sm:$0xf]
    %v2581 = vld [vmem:[%s2498 + $0x1ec] sm:$0xff]
    %v2582 = vld [vmem:[%s2498 + $0x1f4] sm:$0xf]
    %v2583 = vld [vmem:[%s2498 + $0x1f8] sm:$0xff]
    %v2584 = vld [vmem:[%s2498 + $0x200] sm:$0xf]
    %v2585 = vld [vmem:[%s2498 + $0x204] sm:$0xff]
    %v2586 = vld [vmem:[%s2498 + $0x20c] sm:$0xf]
    %v2587 = vld [vmem:[%s2498 + $0x210] sm:$0xff]
    %v2588 = vld [vmem:[%s2498 + $0x218] sm:$0xf]
    %v2589 = vld [vmem:[%s2498 + $0x21c] sm:$0xff]
    %v2590 = vld [vmem:[%s2498 + $0x224] sm:$0xf]
    %v2591 = vld [vmem:[%s2498 + $0x228] sm:$0xff]
    %v2592 = vld [vmem:[%s2498 + $0x230] sm:$0xf]
    %v2593 = vld [vmem:[%s2498 + $0x234] sm:$0xff]
    %v2594 = vld [vmem:[%s2498 + $0x23c] sm:$0xf]
    %s2595 = scalar_lea.vmem %s11, 6
    %v2596 = vld [vmem:[%s2595] sm:$0x7]
    %v2598 = vlaneseq
    %v2599 = vshrl.u32 %v2598, 7
    %v2600 = vsub.s32 0, %v2599
    %v2601 = vrot.slane %v2596, %v2600
    %v2602 = vlaneseq
    %v2603 = vshrl.u32 %v2602, 7
    %v2604 = vsub.s32 1, %v2603
    %v2605 = vrot.slane %v2596, %v2604
    %v2606 = vlaneseq
    %v2607 = vshrl.u32 %v2606, 7
    %v2608 = vsub.s32 2, %v2607
    %v2609 = vrot.slane %v2596, %v2608
    %v2709 = vunpack.c.l.b16 %v2499
    %v2710 = vunpack.c.h.b16 %v2499
    %v2711 = vunpack.c.l.b16 %v2500
    %v2712 = vunpack.c.l.b16 %v2501
    %v2713 = vunpack.c.h.b16 %v2501
    %v2714 = vunpack.c.l.b16 %v2502
    %v2715 = vunpack.c.l.b16 %v2503
    %v2716 = vunpack.c.h.b16 %v2503
    %v2717 = vunpack.c.l.b16 %v2504
    %v2718 = vunpack.c.l.b16 %v2505
    %v2719 = vunpack.c.h.b16 %v2505
    %v2720 = vunpack.c.l.b16 %v2506
    %v2721 = vunpack.c.l.b16 %v2507
    %v2722 = vunpack.c.h.b16 %v2507
    %v2723 = vunpack.c.l.b16 %v2508
    %v2724 = vunpack.c.l.b16 %v2509
    %v2725 = vunpack.c.h.b16 %v2509
    %v2726 = vunpack.c.l.b16 %v2510
    %v2727 = vunpack.c.l.b16 %v2511
    %v2728 = vunpack.c.h.b16 %v2511
    %v2729 = vunpack.c.l.b16 %v2512
    %v2730 = vunpack.c.l.b16 %v2513
    %v2731 = vunpack.c.h.b16 %v2513
    %v2732 = vunpack.c.l.b16 %v2514
    %v2733 = vunpack.c.l.b16 %v2515
    %v2734 = vunpack.c.h.b16 %v2515
    %v2735 = vunpack.c.l.b16 %v2516
    %v2736 = vunpack.c.l.b16 %v2517
    %v2737 = vunpack.c.h.b16 %v2517
    %v2738 = vunpack.c.l.b16 %v2518
    %v2739 = vunpack.c.l.b16 %v2519
    %v2740 = vunpack.c.h.b16 %v2519
    %v2741 = vunpack.c.l.b16 %v2520
    %v2742 = vunpack.c.l.b16 %v2521
    %v2743 = vunpack.c.h.b16 %v2521
    %v2744 = vunpack.c.l.b16 %v2522
    %v2745 = vunpack.c.l.b16 %v2523
    %v2746 = vunpack.c.h.b16 %v2523
    %v2747 = vunpack.c.l.b16 %v2524
    %v2748 = vunpack.c.l.b16 %v2525
    %v2749 = vunpack.c.h.b16 %v2525
    %v2750 = vunpack.c.l.b16 %v2526
    %v2751 = vunpack.c.l.b16 %v2527
    %v2752 = vunpack.c.h.b16 %v2527
    %v2753 = vunpack.c.l.b16 %v2528
    %v2754 = vunpack.c.l.b16 %v2529
    %v2755 = vunpack.c.h.b16 %v2529
    %v2756 = vunpack.c.l.b16 %v2530
    %v2757 = vunpack.c.l.b16 %v2531
    %v2758 = vunpack.c.h.b16 %v2531
    %v2759 = vunpack.c.l.b16 %v2532
    %v2760 = vunpack.c.l.b16 %v2533
    %v2761 = vunpack.c.h.b16 %v2533
    %v2762 = vunpack.c.l.b16 %v2534
    %v2763 = vunpack.c.l.b16 %v2535
    %v2764 = vunpack.c.h.b16 %v2535
    %v2765 = vunpack.c.l.b16 %v2536
    %v2766 = vunpack.c.l.b16 %v2537
    %v2767 = vunpack.c.h.b16 %v2537
    %v2768 = vunpack.c.l.b16 %v2538
    %v2769 = vunpack.c.l.b16 %v2539
    %v2770 = vunpack.c.h.b16 %v2539
    %v2771 = vunpack.c.l.b16 %v2540
    %v2772 = vunpack.c.l.b16 %v2541
    %v2773 = vunpack.c.h.b16 %v2541
    %v2774 = vunpack.c.l.b16 %v2542
    %v2775 = vunpack.c.l.b16 %v2543
    %v2776 = vunpack.c.h.b16 %v2543
    %v2777 = vunpack.c.l.b16 %v2544
    %v2778 = vunpack.c.l.b16 %v2545
    %v2779 = vunpack.c.h.b16 %v2545
    %v2780 = vunpack.c.l.b16 %v2546
    %v2781 = vunpack.c.l.b16 %v2547
    %v2782 = vunpack.c.h.b16 %v2547
    %v2783 = vunpack.c.l.b16 %v2548
    %v2784 = vunpack.c.l.b16 %v2549
    %v2785 = vunpack.c.h.b16 %v2549
    %v2786 = vunpack.c.l.b16 %v2550
    %v2787 = vunpack.c.l.b16 %v2551
    %v2788 = vunpack.c.h.b16 %v2551
    %v2789 = vunpack.c.l.b16 %v2552
    %v2790 = vunpack.c.l.b16 %v2553
    %v2791 = vunpack.c.h.b16 %v2553
    %v2792 = vunpack.c.l.b16 %v2554
    %v2793 = vunpack.c.l.b16 %v2555
    %v2794 = vunpack.c.h.b16 %v2555
    %v2795 = vunpack.c.l.b16 %v2556
    %v2796 = vunpack.c.l.b16 %v2557
    %v2797 = vunpack.c.h.b16 %v2557
    %v2798 = vunpack.c.l.b16 %v2558
    %v2799 = vunpack.c.l.b16 %v2559
    %v2800 = vunpack.c.h.b16 %v2559
    %v2801 = vunpack.c.l.b16 %v2560
    %v2802 = vunpack.c.l.b16 %v2561
    %v2803 = vunpack.c.h.b16 %v2561
    %v2804 = vunpack.c.l.b16 %v2562
    %v2805 = vunpack.c.l.b16 %v2563
    %v2806 = vunpack.c.h.b16 %v2563
    %v2807 = vunpack.c.l.b16 %v2564
    %v2808 = vunpack.c.l.b16 %v2565
    %v2809 = vunpack.c.h.b16 %v2565
    %v2810 = vunpack.c.l.b16 %v2566
    %v2811 = vunpack.c.l.b16 %v2567
    %v2812 = vunpack.c.h.b16 %v2567
    %v2813 = vunpack.c.l.b16 %v2568
    %v2814 = vunpack.c.l.b16 %v2569
    %v2815 = vunpack.c.h.b16 %v2569
    %v2816 = vunpack.c.l.b16 %v2570
    %v2817 = vunpack.c.l.b16 %v2571
    %v2818 = vunpack.c.h.b16 %v2571
    %v2819 = vunpack.c.l.b16 %v2572
    %v2820 = vunpack.c.l.b16 %v2573
    %v2821 = vunpack.c.h.b16 %v2573
    %v2822 = vunpack.c.l.b16 %v2574
    %v2823 = vunpack.c.l.b16 %v2575
    %v2824 = vunpack.c.h.b16 %v2575
    %v2825 = vunpack.c.l.b16 %v2576
    %v2826 = vunpack.c.l.b16 %v2577
    %v2827 = vunpack.c.h.b16 %v2577
    %v2828 = vunpack.c.l.b16 %v2578
    %v2829 = vunpack.c.l.b16 %v2579
    %v2830 = vunpack.c.h.b16 %v2579
    %v2831 = vunpack.c.l.b16 %v2580
    %v2832 = vunpack.c.l.b16 %v2581
    %v2833 = vunpack.c.h.b16 %v2581
    %v2834 = vunpack.c.l.b16 %v2582
    %v2835 = vunpack.c.l.b16 %v2583
    %v2836 = vunpack.c.h.b16 %v2583
    %v2837 = vunpack.c.l.b16 %v2584
    %v2838 = vunpack.c.l.b16 %v2585
    %v2839 = vunpack.c.h.b16 %v2585
    %v2840 = vunpack.c.l.b16 %v2586
    %v2841 = vunpack.c.l.b16 %v2587
    %v2842 = vunpack.c.h.b16 %v2587
    %v2843 = vunpack.c.l.b16 %v2588
    %v2844 = vunpack.c.l.b16 %v2589
    %v2845 = vunpack.c.h.b16 %v2589
    %v2846 = vunpack.c.l.b16 %v2590
    %v2847 = vunpack.c.l.b16 %v2591
    %v2848 = vunpack.c.h.b16 %v2591
    %v2849 = vunpack.c.l.b16 %v2592
    %v2850 = vunpack.c.l.b16 %v2593
    %v2851 = vunpack.c.h.b16 %v2593
    %v2852 = vunpack.c.l.b16 %v2594
    %v2853 = vpack.c.b16 %v2712, %v2709
    %v2854 = vpack.c.b16 %v2713, %v2710
    %v2855 = vpack.c.b16 %v2714, %v2711
    %v2856 = vpack.c.b16 %v2718, %v2715
    %v2857 = vpack.c.b16 %v2719, %v2716
    %v2858 = vpack.c.b16 %v2720, %v2717
    %v2859 = vpack.c.b16 %v2724, %v2721
    %v2860 = vpack.c.b16 %v2725, %v2722
    %v2861 = vpack.c.b16 %v2726, %v2723
    %v2862 = vpack.c.b16 %v2730, %v2727
    %v2863 = vpack.c.b16 %v2731, %v2728
    %v2864 = vpack.c.b16 %v2732, %v2729
    %v2865 = vpack.c.b16 %v2736, %v2733
    %v2866 = vpack.c.b16 %v2737, %v2734
    %v2867 = vpack.c.b16 %v2738, %v2735
    %v2868 = vpack.c.b16 %v2742, %v2739
    %v2869 = vpack.c.b16 %v2743, %v2740
    %v2870 = vpack.c.b16 %v2744, %v2741
    %v2871 = vpack.c.b16 %v2748, %v2745
    %v2872 = vpack.c.b16 %v2749, %v2746
    %v2873 = vpack.c.b16 %v2750, %v2747
    %v2874 = vpack.c.b16 %v2754, %v2751
    %v2875 = vpack.c.b16 %v2755, %v2752
    %v2876 = vpack.c.b16 %v2756, %v2753
    %v2877 = vpack.c.b16 %v2760, %v2757
    %v2878 = vpack.c.b16 %v2761, %v2758
    %v2879 = vpack.c.b16 %v2762, %v2759
    %v2880 = vpack.c.b16 %v2766, %v2763
    %v2881 = vpack.c.b16 %v2767, %v2764
    %v2882 = vpack.c.b16 %v2768, %v2765
    %v2883 = vpack.c.b16 %v2772, %v2769
    %v2884 = vpack.c.b16 %v2773, %v2770
    %v2885 = vpack.c.b16 %v2774, %v2771
    %v2886 = vpack.c.b16 %v2778, %v2775
    %v2887 = vpack.c.b16 %v2779, %v2776
    %v2888 = vpack.c.b16 %v2780, %v2777
    %v2889 = vpack.c.b16 %v2784, %v2781
    %v2890 = vpack.c.b16 %v2785, %v2782
    %v2891 = vpack.c.b16 %v2786, %v2783
    %v2892 = vpack.c.b16 %v2790, %v2787
    %v2893 = vpack.c.b16 %v2791, %v2788
    %v2894 = vpack.c.b16 %v2792, %v2789
    %v2895 = vpack.c.b16 %v2796, %v2793
    %v2896 = vpack.c.b16 %v2797, %v2794
    %v2897 = vpack.c.b16 %v2798, %v2795
    %v2898 = vpack.c.b16 %v2802, %v2799
    %v2899 = vpack.c.b16 %v2803, %v2800
    %v2900 = vpack.c.b16 %v2804, %v2801
    %v2901 = vpack.c.b16 %v2808, %v2805
    %v2902 = vpack.c.b16 %v2809, %v2806
    %v2903 = vpack.c.b16 %v2810, %v2807
    %v2904 = vpack.c.b16 %v2814, %v2811
    %v2905 = vpack.c.b16 %v2815, %v2812
    %v2906 = vpack.c.b16 %v2816, %v2813
    %v2907 = vpack.c.b16 %v2820, %v2817
    %v2908 = vpack.c.b16 %v2821, %v2818
    %v2909 = vpack.c.b16 %v2822, %v2819
    %v2910 = vpack.c.b16 %v2826, %v2823
    %v2911 = vpack.c.b16 %v2827, %v2824
    %v2912 = vpack.c.b16 %v2828, %v2825
    %v2913 = vpack.c.b16 %v2832, %v2829
    %v2914 = vpack.c.b16 %v2833, %v2830
    %v2915 = vpack.c.b16 %v2834, %v2831
    %v2916 = vpack.c.b16 %v2838, %v2835
    %v2917 = vpack.c.b16 %v2839, %v2836
    %v2918 = vpack.c.b16 %v2840, %v2837
    %v2919 = vpack.c.b16 %v2844, %v2841
    %v2920 = vpack.c.b16 %v2845, %v2842
    %v2921 = vpack.c.b16 %v2846, %v2843
    %v2922 = vpack.c.b16 %v2850, %v2847
    %v2923 = vpack.c.b16 %v2851, %v2848
    %v2924 = vpack.c.b16 %v2852, %v2849
    %2997 = vmatprep.subr.bf16.mxu0 %v2854
    %2998 = vmatpush1.bf16.msra.mxu0 %v2853
    %2999 = vmatprep.subr.bf16.mxu0 %v2857
    %3000 = vmatpush1.bf16.msra.mxu0 %v2856
    %3001 = vmatprep.subr.bf16.mxu0 %v2860
    %3002 = vmatpush1.bf16.msra.mxu0 %v2859
    %3003 = vmatprep.subr.bf16.mxu0 %v2863
    %3004 = vmatpush1.bf16.msra.mxu0 %v2862
    %3005 = vmatprep.subr.bf16.mxu0 %v2866
    %3006 = vmatpush1.bf16.msra.mxu0 %v2865
    %3007 = vmatprep.subr.bf16.mxu0 %v2869
    %3008 = vmatpush1.bf16.msra.mxu0 %v2868
    %3009 = vmatprep.subr.bf16.mxu0 %v2872
    %3010 = vmatpush1.bf16.msra.mxu0 %v2871
    %3011 = vmatprep.subr.bf16.mxu0 %v2875
    %3012 = vmatpush1.bf16.msra.mxu0 %v2874
    %3013 = vmatprep.subr.bf16.mxu0 %v2878
    %3014 = vmatpush1.bf16.msra.mxu0 %v2877
    %3015 = vmatprep.subr.bf16.mxu0 %v2881
    %3016 = vmatpush1.bf16.msra.mxu0 %v2880
    %3017 = vmatprep.subr.bf16.mxu0 %v2884
    %3018 = vmatpush1.bf16.msra.mxu0 %v2883
    %3019 = vmatprep.subr.bf16.mxu0 %v2887
    %3020 = vmatpush1.bf16.msra.mxu0 %v2886
    %3021 = vmatprep.subr.bf16.mxu0 %v2890
    %3022 = vmatpush1.bf16.msra.mxu0 %v2889
    %3023 = vmatprep.subr.bf16.mxu0 %v2893
    %3024 = vmatpush1.bf16.msra.mxu0 %v2892
    %3025 = vmatprep.subr.bf16.mxu0 %v2896
    %3026 = vmatpush1.bf16.msra.mxu0 %v2895
    %3027 = vmatprep.subr.bf16.mxu0 %v2899
    %3028 = vmatpush1.bf16.msra.mxu0 %v2898
    %3029 = vmatprep.mubr.bf16.mxu0 %v2496
    %3030 = vmatmul.mubr.bf16.gmra.mrb[0].mxu0 %v2495
    %v3031 = vpop.f32.mrb[0].mxu0
    %v3032 = vadd.f32 %v2601, %v3031
    %v3033 = vpop.f32.mrb[0].mxu0
    %v3034 = vadd.f32 %v2605, %v3033
    %v3035 = vpop.f32.mrb[0].mxu0
    %v3036 = vadd.f32 %v2601, %v3035
    %v3037 = vpop.f32.mrb[0].mxu0
    %v3038 = vadd.f32 %v2605, %v3037
    %3039 = vdwg.mxu0
    %3040 = vmatprep.subr.bf16.mxu0 %v2902
    %3041 = vmatpush1.bf16.msra.mxu0 %v2901
    %3042 = vmatprep.subr.bf16.mxu0 %v2905
    %3043 = vmatpush1.bf16.msra.mxu0 %v2904
    %3044 = vmatprep.subr.bf16.mxu0 %v2908
    %3045 = vmatpush1.bf16.msra.mxu0 %v2907
    %3046 = vmatprep.subr.bf16.mxu0 %v2911
    %3047 = vmatpush1.bf16.msra.mxu0 %v2910
    %3048 = vmatprep.subr.bf16.mxu0 %v2914
    %3049 = vmatpush1.bf16.msra.mxu0 %v2913
    %3050 = vmatprep.subr.bf16.mxu0 %v2917
    %3051 = vmatpush1.bf16.msra.mxu0 %v2916
    %3052 = vmatprep.subr.bf16.mxu0 %v2920
    %3053 = vmatpush1.bf16.msra.mxu0 %v2919
    %3054 = vmatprep.subr.bf16.mxu0 %v2923
    %3055 = vmatpush1.bf16.msra.mxu0 %v2922
    %3056 = vmatprep.subr.bf16.mxu0 0
    %3057 = vmatpush1.bf16.msra.mxu0 0
    %3058 = vmatprep.subr.bf16.mxu0 0
    %3059 = vmatpush1.bf16.msra.mxu0 0
    %3060 = vmatprep.subr.bf16.mxu0 0
    %3061 = vmatpush1.bf16.msra.mxu0 0
    %3062 = vmatprep.subr.bf16.mxu0 0
    %3063 = vmatpush1.bf16.msra.mxu0 0
    %3064 = vmatprep.subr.bf16.mxu0 0
    %3065 = vmatpush1.bf16.msra.mxu0 0
    %3066 = vmatprep.subr.bf16.mxu0 0
    %3067 = vmatpush1.bf16.msra.mxu0 0
    %3068 = vmatprep.subr.bf16.mxu0 0
    %3069 = vmatpush1.bf16.msra.mxu0 0
    %3070 = vmatprep.subr.bf16.mxu0 0
    %3071 = vmatpush1.bf16.msra.mxu0 0
    %3072 = vmatprep.mubr.bf16.mxu0 0
    %3073 = vmatmul.mubr.bf16.gmra.mrb[0].mxu0 %v2497
    %v3074 = vpop.f32.mrb[0].mxu0
    %v3075 = vadd.f32 %v3032, %v3074
    %v3076 = vpop.f32.mrb[0].mxu0
    %v3077 = vadd.f32 %v3034, %v3076
    %v3078 = vpop.f32.mrb[0].mxu0
    %v3079 = vadd.f32 %v3036, %v3078
    %v3080 = vpop.f32.mrb[0].mxu0
    %v3081 = vadd.f32 %v3038, %v3080
    %3082 = vdwg.mxu0
    %3083 = vmatprep.subr.bf16.mxu0 0
    %3084 = vmatpush1.bf16.msra.mxu0 %v2855
    %3085 = vmatprep.subr.bf16.mxu0 0
    %3086 = vmatpush1.bf16.msra.mxu0 %v2858
    %3087 = vmatprep.subr.bf16.mxu0 0
    %3088 = vmatpush1.bf16.msra.mxu0 %v2861
    %3089 = vmatprep.subr.bf16.mxu0 0
    %3090 = vmatpush1.bf16.msra.mxu0 %v2864
    %3091 = vmatprep.subr.bf16.mxu0 0
    %3092 = vmatpush1.bf16.msra.mxu0 %v2867
    %3093 = vmatprep.subr.bf16.mxu0 0
    %3094 = vmatpush1.bf16.msra.mxu0 %v2870
    %3095 = vmatprep.subr.bf16.mxu0 0
    %3096 = vmatpush1.bf16.msra.mxu0 %v2873
    %3097 = vmatprep.subr.bf16.mxu0 0
    %3098 = vmatpush1.bf16.msra.mxu0 %v2876
    %3099 = vmatprep.subr.bf16.mxu0 0
    %3100 = vmatpush1.bf16.msra.mxu0 %v2879
    %3101 = vmatprep.subr.bf16.mxu0 0
    %3102 = vmatpush1.bf16.msra.mxu0 %v2882
    %3103 = vmatprep.subr.bf16.mxu0 0
    %3104 = vmatpush1.bf16.msra.mxu0 %v2885
    %3105 = vmatprep.subr.bf16.mxu0 0
    %3106 = vmatpush1.bf16.msra.mxu0 %v2888
    %3107 = vmatprep.subr.bf16.mxu0 0
    %3108 = vmatpush1.bf16.msra.mxu0 %v2891
    %3109 = vmatprep.subr.bf16.mxu0 0
    %3110 = vmatpush1.bf16.msra.mxu0 %v2894
    %3111 = vmatprep.subr.bf16.mxu0 0
    %3112 = vmatpush1.bf16.msra.mxu0 %v2897
    %3113 = vmatprep.subr.bf16.mxu0 0
    %3114 = vmatpush1.bf16.msra.mxu0 %v2900
    %3115 = vmatprep.mubr.bf16.mxu0 %v2496
    %3116 = vmatmul.mubr.bf16.gmra.mrb[0].mxu0 %v2495
    %v3117 = vpop.f32.mrb[0].mxu0
    %v3118 = vadd.f32 %v2609, %v3117
    %v3119 = vpop.f32.mrb[0].mxu0
    %v3120 = vpop.f32.mrb[0].mxu0
    %v3121 = vadd.f32 %v2609, %v3120
    %v3122 = vpop.f32.mrb[0].mxu0
    %3123 = vdwg.mxu0
    %3124 = vmatprep.subr.bf16.mxu0 0
    %3125 = vmatpush1.bf16.msra.mxu0 %v2903
    %3126 = vmatprep.subr.bf16.mxu0 0
    %3127 = vmatpush1.bf16.msra.mxu0 %v2906
    %3128 = vmatprep.subr.bf16.mxu0 0
    %3129 = vmatpush1.bf16.msra.mxu0 %v2909
    %3130 = vmatprep.subr.bf16.mxu0 0
    %3131 = vmatpush1.bf16.msra.mxu0 %v2912
    %3132 = vmatprep.subr.bf16.mxu0 0
    %3133 = vmatpush1.bf16.msra.mxu0 %v2915
    %3134 = vmatprep.subr.bf16.mxu0 0
    %3135 = vmatpush1.bf16.msra.mxu0 %v2918
    %3136 = vmatprep.subr.bf16.mxu0 0
    %3137 = vmatpush1.bf16.msra.mxu0 %v2921
    %3138 = vmatprep.subr.bf16.mxu0 0
    %3139 = vmatpush1.bf16.msra.mxu0 %v2924
    %3140 = vmatprep.subr.bf16.mxu0 0
    %3141 = vmatpush1.bf16.msra.mxu0 0
    %3142 = vmatprep.subr.bf16.mxu0 0
    %3143 = vmatpush1.bf16.msra.mxu0 0
    %3144 = vmatprep.subr.bf16.mxu0 0
    %3145 = vmatpush1.bf16.msra.mxu0 0
    %3146 = vmatprep.subr.bf16.mxu0 0
    %3147 = vmatpush1.bf16.msra.mxu0 0
    %3148 = vmatprep.subr.bf16.mxu0 0
    %3149 = vmatpush1.bf16.msra.mxu0 0
    %3150 = vmatprep.subr.bf16.mxu0 0
    %3151 = vmatpush1.bf16.msra.mxu0 0
    %3152 = vmatprep.subr.bf16.mxu0 0
    %3153 = vmatpush1.bf16.msra.mxu0 0
    %3154 = vmatprep.subr.bf16.mxu0 0
    %3155 = vmatpush1.bf16.msra.mxu0 0
    %3156 = vmatprep.mubr.bf16.mxu0 0
    %3157 = vmatmul.mubr.bf16.gmra.mrb[0].mxu0 %v2497
    %v3158 = vpop.f32.mrb[0].mxu0
    %v3159 = vadd.f32 %v3118, %v3158
    %v3160 = vpop.f32.mrb[0].mxu0
    %v3161 = vpop.f32.mrb[0].mxu0
    %v3162 = vadd.f32 %v3121, %v3161
    %v3163 = vpop.f32.mrb[0].mxu0
    %3164 = vdwg.mxu0
    %v3165 = vmax.f32 %v3075, 0.0
    %v3166 = vmax.f32 %v3077, 0.0
    %v3167 = vmax.f32 %v3159, 0.0
    %v3168 = vmax.f32 %v3079, 0.0
    %v3169 = vmax.f32 %v3081, 0.0
    %v3170 = vmax.f32 %v3162, 0.0
    %s3171 = scalar_lea.vmem %s10, 1728
    %v3172 = vld [vmem:[%s3171] sm:$0xff]
    %v3173 = vld [vmem:[%s3171 + $0x8] sm:$0xf]
    %v3174 = vld [vmem:[%s3171 + $0xc] sm:$0xff]
    %v3175 = vld [vmem:[%s3171 + $0x14] sm:$0xf]
    %v3176 = vld [vmem:[%s3171 + $0x18] sm:$0xff]
    %v3177 = vld [vmem:[%s3171 + $0x20] sm:$0xf]
    %v3178 = vld [vmem:[%s3171 + $0x24] sm:$0xff]
    %v3179 = vld [vmem:[%s3171 + $0x2c] sm:$0xf]
    %v3180 = vld [vmem:[%s3171 + $0x30] sm:$0xff]
    %v3181 = vld [vmem:[%s3171 + $0x38] sm:$0xf]
    %v3182 = vld [vmem:[%s3171 + $0x3c] sm:$0xff]
    %v3183 = vld [vmem:[%s3171 + $0x44] sm:$0xf]
    %v3184 = vld [vmem:[%s3171 + $0x48] sm:$0xff]
    %v3185 = vld [vmem:[%s3171 + $0x50] sm:$0xf]
    %v3186 = vld [vmem:[%s3171 + $0x54] sm:$0xff]
    %v3187 = vld [vmem:[%s3171 + $0x5c] sm:$0xf]
    %v3188 = vld [vmem:[%s3171 + $0x60] sm:$0xff]
    %v3189 = vld [vmem:[%s3171 + $0x68] sm:$0xf]
    %v3190 = vld [vmem:[%s3171 + $0x6c] sm:$0xff]
    %v3191 = vld [vmem:[%s3171 + $0x74] sm:$0xf]
    %v3192 = vld [vmem:[%s3171 + $0x78] sm:$0xff]
    %v3193 = vld [vmem:[%s3171 + $0x80] sm:$0xf]
    %v3194 = vld [vmem:[%s3171 + $0x84] sm:$0xff]
    %v3195 = vld [vmem:[%s3171 + $0x8c] sm:$0xf]
    %v3196 = vld [vmem:[%s3171 + $0x90] sm:$0xff]
    %v3197 = vld [vmem:[%s3171 + $0x98] sm:$0xf]
    %v3198 = vld [vmem:[%s3171 + $0x9c] sm:$0xff]
    %v3199 = vld [vmem:[%s3171 + $0xa4] sm:$0xf]
    %v3200 = vld [vmem:[%s3171 + $0xa8] sm:$0xff]
    %v3201 = vld [vmem:[%s3171 + $0xb0] sm:$0xf]
    %v3202 = vld [vmem:[%s3171 + $0xb4] sm:$0xff]
    %v3203 = vld [vmem:[%s3171 + $0xbc] sm:$0xf]
    %v3204 = vld [vmem:[%s3171 + $0xc0] sm:$0xff]
    %v3205 = vld [vmem:[%s3171 + $0xc8] sm:$0xf]
    %v3206 = vld [vmem:[%s3171 + $0xcc] sm:$0xff]
    %v3207 = vld [vmem:[%s3171 + $0xd4] sm:$0xf]
    %v3208 = vld [vmem:[%s3171 + $0xd8] sm:$0xff]
    %v3209 = vld [vmem:[%s3171 + $0xe0] sm:$0xf]
    %v3210 = vld [vmem:[%s3171 + $0xe4] sm:$0xff]
    %v3211 = vld [vmem:[%s3171 + $0xec] sm:$0xf]
    %v3212 = vld [vmem:[%s3171 + $0xf0] sm:$0xff]
    %v3213 = vld [vmem:[%s3171 + $0xf8] sm:$0xf]
    %v3214 = vld [vmem:[%s3171 + $0xfc] sm:$0xff]
    %v3215 = vld [vmem:[%s3171 + $0x104] sm:$0xf]
    %v3216 = vld [vmem:[%s3171 + $0x108] sm:$0xff]
    %v3217 = vld [vmem:[%s3171 + $0x110] sm:$0xf]
    %v3218 = vld [vmem:[%s3171 + $0x114] sm:$0xff]
    %v3219 = vld [vmem:[%s3171 + $0x11c] sm:$0xf]
    %v3220 = vld [vmem:[%s3171 + $0x120] sm:$0xff]
    %v3221 = vld [vmem:[%s3171 + $0x128] sm:$0xf]
    %v3222 = vld [vmem:[%s3171 + $0x12c] sm:$0xff]
    %v3223 = vld [vmem:[%s3171 + $0x134] sm:$0xf]
    %v3224 = vld [vmem:[%s3171 + $0x138] sm:$0xff]
    %v3225 = vld [vmem:[%s3171 + $0x140] sm:$0xf]
    %v3226 = vld [vmem:[%s3171 + $0x144] sm:$0xff]
    %v3227 = vld [vmem:[%s3171 + $0x14c] sm:$0xf]
    %v3228 = vld [vmem:[%s3171 + $0x150] sm:$0xff]
    %v3229 = vld [vmem:[%s3171 + $0x158] sm:$0xf]
    %v3230 = vld [vmem:[%s3171 + $0x15c] sm:$0xff]
    %v3231 = vld [vmem:[%s3171 + $0x164] sm:$0xf]
    %v3232 = vld [vmem:[%s3171 + $0x168] sm:$0xff]
    %v3233 = vld [vmem:[%s3171 + $0x170] sm:$0xf]
    %v3234 = vld [vmem:[%s3171 + $0x174] sm:$0xff]
    %v3235 = vld [vmem:[%s3171 + $0x17c] sm:$0xf]
    %v3236 = vld [vmem:[%s3171 + $0x180] sm:$0xff]
    %v3237 = vld [vmem:[%s3171 + $0x188] sm:$0xf]
    %v3238 = vld [vmem:[%s3171 + $0x18c] sm:$0xff]
    %v3239 = vld [vmem:[%s3171 + $0x194] sm:$0xf]
    %v3240 = vld [vmem:[%s3171 + $0x198] sm:$0xff]
    %v3241 = vld [vmem:[%s3171 + $0x1a0] sm:$0xf]
    %v3242 = vld [vmem:[%s3171 + $0x1a4] sm:$0xff]
    %v3243 = vld [vmem:[%s3171 + $0x1ac] sm:$0xf]
    %v3244 = vld [vmem:[%s3171 + $0x1b0] sm:$0xff]
    %v3245 = vld [vmem:[%s3171 + $0x1b8] sm:$0xf]
    %v3246 = vld [vmem:[%s3171 + $0x1bc] sm:$0xff]
    %v3247 = vld [vmem:[%s3171 + $0x1c4] sm:$0xf]
    %v3248 = vld [vmem:[%s3171 + $0x1c8] sm:$0xff]
    %v3249 = vld [vmem:[%s3171 + $0x1d0] sm:$0xf]
    %v3250 = vld [vmem:[%s3171 + $0x1d4] sm:$0xff]
    %v3251 = vld [vmem:[%s3171 + $0x1dc] sm:$0xf]
    %v3252 = vld [vmem:[%s3171 + $0x1e0] sm:$0xff]
    %v3253 = vld [vmem:[%s3171 + $0x1e8] sm:$0xf]
    %v3254 = vld [vmem:[%s3171 + $0x1ec] sm:$0xff]
    %v3255 = vld [vmem:[%s3171 + $0x1f4] sm:$0xf]
    %v3256 = vld [vmem:[%s3171 + $0x1f8] sm:$0xff]
    %v3257 = vld [vmem:[%s3171 + $0x200] sm:$0xf]
    %v3258 = vld [vmem:[%s3171 + $0x204] sm:$0xff]
    %v3259 = vld [vmem:[%s3171 + $0x20c] sm:$0xf]
    %v3260 = vld [vmem:[%s3171 + $0x210] sm:$0xff]
    %v3261 = vld [vmem:[%s3171 + $0x218] sm:$0xf]
    %v3262 = vld [vmem:[%s3171 + $0x21c] sm:$0xff]
    %v3263 = vld [vmem:[%s3171 + $0x224] sm:$0xf]
    %v3264 = vld [vmem:[%s3171 + $0x228] sm:$0xff]
    %v3265 = vld [vmem:[%s3171 + $0x230] sm:$0xf]
    %v3266 = vld [vmem:[%s3171 + $0x234] sm:$0xff]
    %v3267 = vld [vmem:[%s3171 + $0x23c] sm:$0xf]
    %s3268 = scalar_lea.vmem %s11, 9
    %v3269 = vld [vmem:[%s3268] sm:$0x7]
    %v3271 = vlaneseq
    %v3272 = vshrl.u32 %v3271, 7
    %v3273 = vsub.s32 0, %v3272
    %v3274 = vrot.slane %v3269, %v3273
    %v3275 = vlaneseq
    %v3276 = vshrl.u32 %v3275, 7
    %v3277 = vsub.s32 1, %v3276
    %v3278 = vrot.slane %v3269, %v3277
    %v3279 = vlaneseq
    %v3280 = vshrl.u32 %v3279, 7
    %v3281 = vsub.s32 2, %v3280
    %v3282 = vrot.slane %v3269, %v3281
    %v3382 = vunpack.c.l.b16 %v3172
    %v3383 = vunpack.c.h.b16 %v3172
    %v3384 = vunpack.c.l.b16 %v3173
    %v3385 = vunpack.c.l.b16 %v3174
    %v3386 = vunpack.c.h.b16 %v3174
    %v3387 = vunpack.c.l.b16 %v3175
    %v3388 = vunpack.c.l.b16 %v3176
    %v3389 = vunpack.c.h.b16 %v3176
    %v3390 = vunpack.c.l.b16 %v3177
    %v3391 = vunpack.c.l.b16 %v3178
    %v3392 = vunpack.c.h.b16 %v3178
    %v3393 = vunpack.c.l.b16 %v3179
    %v3394 = vunpack.c.l.b16 %v3180
    %v3395 = vunpack.c.h.b16 %v3180
    %v3396 = vunpack.c.l.b16 %v3181
    %v3397 = vunpack.c.l.b16 %v3182
    %v3398 = vunpack.c.h.b16 %v3182
    %v3399 = vunpack.c.l.b16 %v3183
    %v3400 = vunpack.c.l.b16 %v3184
    %v3401 = vunpack.c.h.b16 %v3184
    %v3402 = vunpack.c.l.b16 %v3185
    %v3403 = vunpack.c.l.b16 %v3186
    %v3404 = vunpack.c.h.b16 %v3186
    %v3405 = vunpack.c.l.b16 %v3187
    %v3406 = vunpack.c.l.b16 %v3188
    %v3407 = vunpack.c.h.b16 %v3188
    %v3408 = vunpack.c.l.b16 %v3189
    %v3409 = vunpack.c.l.b16 %v3190
    %v3410 = vunpack.c.h.b16 %v3190
    %v3411 = vunpack.c.l.b16 %v3191
    %v3412 = vunpack.c.l.b16 %v3192
    %v3413 = vunpack.c.h.b16 %v3192
    %v3414 = vunpack.c.l.b16 %v3193
    %v3415 = vunpack.c.l.b16 %v3194
    %v3416 = vunpack.c.h.b16 %v3194
    %v3417 = vunpack.c.l.b16 %v3195
    %v3418 = vunpack.c.l.b16 %v3196
    %v3419 = vunpack.c.h.b16 %v3196
    %v3420 = vunpack.c.l.b16 %v3197
    %v3421 = vunpack.c.l.b16 %v3198
    %v3422 = vunpack.c.h.b16 %v3198
    %v3423 = vunpack.c.l.b16 %v3199
    %v3424 = vunpack.c.l.b16 %v3200
    %v3425 = vunpack.c.h.b16 %v3200
    %v3426 = vunpack.c.l.b16 %v3201
    %v3427 = vunpack.c.l.b16 %v3202
    %v3428 = vunpack.c.h.b16 %v3202
    %v3429 = vunpack.c.l.b16 %v3203
    %v3430 = vunpack.c.l.b16 %v3204
    %v3431 = vunpack.c.h.b16 %v3204
    %v3432 = vunpack.c.l.b16 %v3205
    %v3433 = vunpack.c.l.b16 %v3206
    %v3434 = vunpack.c.h.b16 %v3206
    %v3435 = vunpack.c.l.b16 %v3207
    %v3436 = vunpack.c.l.b16 %v3208
    %v3437 = vunpack.c.h.b16 %v3208
    %v3438 = vunpack.c.l.b16 %v3209
    %v3439 = vunpack.c.l.b16 %v3210
    %v3440 = vunpack.c.h.b16 %v3210
    %v3441 = vunpack.c.l.b16 %v3211
    %v3442 = vunpack.c.l.b16 %v3212
    %v3443 = vunpack.c.h.b16 %v3212
    %v3444 = vunpack.c.l.b16 %v3213
    %v3445 = vunpack.c.l.b16 %v3214
    %v3446 = vunpack.c.h.b16 %v3214
    %v3447 = vunpack.c.l.b16 %v3215
    %v3448 = vunpack.c.l.b16 %v3216
    %v3449 = vunpack.c.h.b16 %v3216
    %v3450 = vunpack.c.l.b16 %v3217
    %v3451 = vunpack.c.l.b16 %v3218
    %v3452 = vunpack.c.h.b16 %v3218
    %v3453 = vunpack.c.l.b16 %v3219
    %v3454 = vunpack.c.l.b16 %v3220
    %v3455 = vunpack.c.h.b16 %v3220
    %v3456 = vunpack.c.l.b16 %v3221
    %v3457 = vunpack.c.l.b16 %v3222
    %v3458 = vunpack.c.h.b16 %v3222
    %v3459 = vunpack.c.l.b16 %v3223
    %v3460 = vunpack.c.l.b16 %v3224
    %v3461 = vunpack.c.h.b16 %v3224
    %v3462 = vunpack.c.l.b16 %v3225
    %v3463 = vunpack.c.l.b16 %v3226
    %v3464 = vunpack.c.h.b16 %v3226
    %v3465 = vunpack.c.l.b16 %v3227
    %v3466 = vunpack.c.l.b16 %v3228
    %v3467 = vunpack.c.h.b16 %v3228
    %v3468 = vunpack.c.l.b16 %v3229
    %v3469 = vunpack.c.l.b16 %v3230
    %v3470 = vunpack.c.h.b16 %v3230
    %v3471 = vunpack.c.l.b16 %v3231
    %v3472 = vunpack.c.l.b16 %v3232
    %v3473 = vunpack.c.h.b16 %v3232
    %v3474 = vunpack.c.l.b16 %v3233
    %v3475 = vunpack.c.l.b16 %v3234
    %v3476 = vunpack.c.h.b16 %v3234
    %v3477 = vunpack.c.l.b16 %v3235
    %v3478 = vunpack.c.l.b16 %v3236
    %v3479 = vunpack.c.h.b16 %v3236
    %v3480 = vunpack.c.l.b16 %v3237
    %v3481 = vunpack.c.l.b16 %v3238
    %v3482 = vunpack.c.h.b16 %v3238
    %v3483 = vunpack.c.l.b16 %v3239
    %v3484 = vunpack.c.l.b16 %v3240
    %v3485 = vunpack.c.h.b16 %v3240
    %v3486 = vunpack.c.l.b16 %v3241
    %v3487 = vunpack.c.l.b16 %v3242
    %v3488 = vunpack.c.h.b16 %v3242
    %v3489 = vunpack.c.l.b16 %v3243
    %v3490 = vunpack.c.l.b16 %v3244
    %v3491 = vunpack.c.h.b16 %v3244
    %v3492 = vunpack.c.l.b16 %v3245
    %v3493 = vunpack.c.l.b16 %v3246
    %v3494 = vunpack.c.h.b16 %v3246
    %v3495 = vunpack.c.l.b16 %v3247
    %v3496 = vunpack.c.l.b16 %v3248
    %v3497 = vunpack.c.h.b16 %v3248
    %v3498 = vunpack.c.l.b16 %v3249
    %v3499 = vunpack.c.l.b16 %v3250
    %v3500 = vunpack.c.h.b16 %v3250
    %v3501 = vunpack.c.l.b16 %v3251
    %v3502 = vunpack.c.l.b16 %v3252
    %v3503 = vunpack.c.h.b16 %v3252
    %v3504 = vunpack.c.l.b16 %v3253
    %v3505 = vunpack.c.l.b16 %v3254
    %v3506 = vunpack.c.h.b16 %v3254
    %v3507 = vunpack.c.l.b16 %v3255
    %v3508 = vunpack.c.l.b16 %v3256
    %v3509 = vunpack.c.h.b16 %v3256
    %v3510 = vunpack.c.l.b16 %v3257
    %v3511 = vunpack.c.l.b16 %v3258
    %v3512 = vunpack.c.h.b16 %v3258
    %v3513 = vunpack.c.l.b16 %v3259
    %v3514 = vunpack.c.l.b16 %v3260
    %v3515 = vunpack.c.h.b16 %v3260
    %v3516 = vunpack.c.l.b16 %v3261
    %v3517 = vunpack.c.l.b16 %v3262
    %v3518 = vunpack.c.h.b16 %v3262
    %v3519 = vunpack.c.l.b16 %v3263
    %v3520 = vunpack.c.l.b16 %v3264
    %v3521 = vunpack.c.h.b16 %v3264
    %v3522 = vunpack.c.l.b16 %v3265
    %v3523 = vunpack.c.l.b16 %v3266
    %v3524 = vunpack.c.h.b16 %v3266
    %v3525 = vunpack.c.l.b16 %v3267
    %v3526 = vpack.c.b16 %v3385, %v3382
    %v3527 = vpack.c.b16 %v3386, %v3383
    %v3528 = vpack.c.b16 %v3387, %v3384
    %v3529 = vpack.c.b16 %v3391, %v3388
    %v3530 = vpack.c.b16 %v3392, %v3389
    %v3531 = vpack.c.b16 %v3393, %v3390
    %v3532 = vpack.c.b16 %v3397, %v3394
    %v3533 = vpack.c.b16 %v3398, %v3395
    %v3534 = vpack.c.b16 %v3399, %v3396
    %v3535 = vpack.c.b16 %v3403, %v3400
    %v3536 = vpack.c.b16 %v3404, %v3401
    %v3537 = vpack.c.b16 %v3405, %v3402
    %v3538 = vpack.c.b16 %v3409, %v3406
    %v3539 = vpack.c.b16 %v3410, %v3407
    %v3540 = vpack.c.b16 %v3411, %v3408
    %v3541 = vpack.c.b16 %v3415, %v3412
    %v3542 = vpack.c.b16 %v3416, %v3413
    %v3543 = vpack.c.b16 %v3417, %v3414
    %v3544 = vpack.c.b16 %v3421, %v3418
    %v3545 = vpack.c.b16 %v3422, %v3419
    %v3546 = vpack.c.b16 %v3423, %v3420
    %v3547 = vpack.c.b16 %v3427, %v3424
    %v3548 = vpack.c.b16 %v3428, %v3425
    %v3549 = vpack.c.b16 %v3429, %v3426
    %v3550 = vpack.c.b16 %v3433, %v3430
    %v3551 = vpack.c.b16 %v3434, %v3431
    %v3552 = vpack.c.b16 %v3435, %v3432
    %v3553 = vpack.c.b16 %v3439, %v3436
    %v3554 = vpack.c.b16 %v3440, %v3437
    %v3555 = vpack.c.b16 %v3441, %v3438
    %v3556 = vpack.c.b16 %v3445, %v3442
    %v3557 = vpack.c.b16 %v3446, %v3443
    %v3558 = vpack.c.b16 %v3447, %v3444
    %v3559 = vpack.c.b16 %v3451, %v3448
    %v3560 = vpack.c.b16 %v3452, %v3449
    %v3561 = vpack.c.b16 %v3453, %v3450
    %v3562 = vpack.c.b16 %v3457, %v3454
    %v3563 = vpack.c.b16 %v3458, %v3455
    %v3564 = vpack.c.b16 %v3459, %v3456
    %v3565 = vpack.c.b16 %v3463, %v3460
    %v3566 = vpack.c.b16 %v3464, %v3461
    %v3567 = vpack.c.b16 %v3465, %v3462
    %v3568 = vpack.c.b16 %v3469, %v3466
    %v3569 = vpack.c.b16 %v3470, %v3467
    %v3570 = vpack.c.b16 %v3471, %v3468
    %v3571 = vpack.c.b16 %v3475, %v3472
    %v3572 = vpack.c.b16 %v3476, %v3473
    %v3573 = vpack.c.b16 %v3477, %v3474
    %v3574 = vpack.c.b16 %v3481, %v3478
    %v3575 = vpack.c.b16 %v3482, %v3479
    %v3576 = vpack.c.b16 %v3483, %v3480
    %v3577 = vpack.c.b16 %v3487, %v3484
    %v3578 = vpack.c.b16 %v3488, %v3485
    %v3579 = vpack.c.b16 %v3489, %v3486
    %v3580 = vpack.c.b16 %v3493, %v3490
    %v3581 = vpack.c.b16 %v3494, %v3491
    %v3582 = vpack.c.b16 %v3495, %v3492
    %v3583 = vpack.c.b16 %v3499, %v3496
    %v3584 = vpack.c.b16 %v3500, %v3497
    %v3585 = vpack.c.b16 %v3501, %v3498
    %v3586 = vpack.c.b16 %v3505, %v3502
    %v3587 = vpack.c.b16 %v3506, %v3503
    %v3588 = vpack.c.b16 %v3507, %v3504
    %v3589 = vpack.c.b16 %v3511, %v3508
    %v3590 = vpack.c.b16 %v3512, %v3509
    %v3591 = vpack.c.b16 %v3513, %v3510
    %v3592 = vpack.c.b16 %v3517, %v3514
    %v3593 = vpack.c.b16 %v3518, %v3515
    %v3594 = vpack.c.b16 %v3519, %v3516
    %v3595 = vpack.c.b16 %v3523, %v3520
    %v3596 = vpack.c.b16 %v3524, %v3521
    %v3597 = vpack.c.b16 %v3525, %v3522
    %3670 = vmatprep.subr.bf16.mxu0 %v3527
    %3671 = vmatpush1.bf16.msra.mxu0 %v3526
    %3672 = vmatprep.subr.bf16.mxu0 %v3530
    %3673 = vmatpush1.bf16.msra.mxu0 %v3529
    %3674 = vmatprep.subr.bf16.mxu0 %v3533
    %3675 = vmatpush1.bf16.msra.mxu0 %v3532
    %3676 = vmatprep.subr.bf16.mxu0 %v3536
    %3677 = vmatpush1.bf16.msra.mxu0 %v3535
    %3678 = vmatprep.subr.bf16.mxu0 %v3539
    %3679 = vmatpush1.bf16.msra.mxu0 %v3538
    %3680 = vmatprep.subr.bf16.mxu0 %v3542
    %3681 = vmatpush1.bf16.msra.mxu0 %v3541
    %3682 = vmatprep.subr.bf16.mxu0 %v3545
    %3683 = vmatpush1.bf16.msra.mxu0 %v3544
    %3684 = vmatprep.subr.bf16.mxu0 %v3548
    %3685 = vmatpush1.bf16.msra.mxu0 %v3547
    %3686 = vmatprep.subr.bf16.mxu0 %v3551
    %3687 = vmatpush1.bf16.msra.mxu0 %v3550
    %3688 = vmatprep.subr.bf16.mxu0 %v3554
    %3689 = vmatpush1.bf16.msra.mxu0 %v3553
    %3690 = vmatprep.subr.bf16.mxu0 %v3557
    %3691 = vmatpush1.bf16.msra.mxu0 %v3556
    %3692 = vmatprep.subr.bf16.mxu0 %v3560
    %3693 = vmatpush1.bf16.msra.mxu0 %v3559
    %3694 = vmatprep.subr.bf16.mxu0 %v3563
    %3695 = vmatpush1.bf16.msra.mxu0 %v3562
    %3696 = vmatprep.subr.bf16.mxu0 %v3566
    %3697 = vmatpush1.bf16.msra.mxu0 %v3565
    %3698 = vmatprep.subr.bf16.mxu0 %v3569
    %3699 = vmatpush1.bf16.msra.mxu0 %v3568
    %3700 = vmatprep.subr.bf16.mxu0 %v3572
    %3701 = vmatpush1.bf16.msra.mxu0 %v3571
    %3702 = vmatprep.mubr.bf16.mxu0 %v745
    %3703 = vmatmul.mubr.bf16.gmra.mrb[0].mxu0 %v380
    %v3704 = vpop.f32.mrb[0].mxu0
    %v3705 = vadd.f32 %v3274, %v3704
    %v3706 = vpop.f32.mrb[0].mxu0
    %v3707 = vadd.f32 %v3278, %v3706
    %v3708 = vpop.f32.mrb[0].mxu0
    %v3709 = vadd.f32 %v3274, %v3708
    %v3710 = vpop.f32.mrb[0].mxu0
    %v3711 = vadd.f32 %v3278, %v3710
    %3712 = vdwg.mxu0
    %3713 = vmatprep.subr.bf16.mxu0 %v3575
    %3714 = vmatpush1.bf16.msra.mxu0 %v3574
    %3715 = vmatprep.subr.bf16.mxu0 %v3578
    %3716 = vmatpush1.bf16.msra.mxu0 %v3577
    %3717 = vmatprep.subr.bf16.mxu0 %v3581
    %3718 = vmatpush1.bf16.msra.mxu0 %v3580
    %3719 = vmatprep.subr.bf16.mxu0 %v3584
    %3720 = vmatpush1.bf16.msra.mxu0 %v3583
    %3721 = vmatprep.subr.bf16.mxu0 %v3587
    %3722 = vmatpush1.bf16.msra.mxu0 %v3586
    %3723 = vmatprep.subr.bf16.mxu0 %v3590
    %3724 = vmatpush1.bf16.msra.mxu0 %v3589
    %3725 = vmatprep.subr.bf16.mxu0 %v3593
    %3726 = vmatpush1.bf16.msra.mxu0 %v3592
    %3727 = vmatprep.subr.bf16.mxu0 %v3596
    %3728 = vmatpush1.bf16.msra.mxu0 %v3595
    %3729 = vmatprep.subr.bf16.mxu0 0
    %3730 = vmatpush1.bf16.msra.mxu0 0
    %3731 = vmatprep.subr.bf16.mxu0 0
    %3732 = vmatpush1.bf16.msra.mxu0 0
    %3733 = vmatprep.subr.bf16.mxu0 0
    %3734 = vmatpush1.bf16.msra.mxu0 0
    %3735 = vmatprep.subr.bf16.mxu0 0
    %3736 = vmatpush1.bf16.msra.mxu0 0
    %3737 = vmatprep.subr.bf16.mxu0 0
    %3738 = vmatpush1.bf16.msra.mxu0 0
    %3739 = vmatprep.subr.bf16.mxu0 0
    %3740 = vmatpush1.bf16.msra.mxu0 0
    %3741 = vmatprep.subr.bf16.mxu0 0
    %3742 = vmatpush1.bf16.msra.mxu0 0
    %3743 = vmatprep.subr.bf16.mxu0 0
    %3744 = vmatpush1.bf16.msra.mxu0 0
    %3745 = vmatprep.mubr.bf16.mxu0 0
    %3746 = vmatmul.mubr.bf16.gmra.mrb[0].mxu0 %v1107
    %v3747 = vpop.f32.mrb[0].mxu0
    %v3748 = vadd.f32 %v3705, %v3747
    %v3749 = vpop.f32.mrb[0].mxu0
    %v3750 = vadd.f32 %v3707, %v3749
    %v3751 = vpop.f32.mrb[0].mxu0
    %v3752 = vadd.f32 %v3709, %v3751
    %v3753 = vpop.f32.mrb[0].mxu0
    %v3754 = vadd.f32 %v3711, %v3753
    %3755 = vdwg.mxu0
    %3756 = vmatprep.subr.bf16.mxu0 0
    %3757 = vmatpush1.bf16.msra.mxu0 %v3528
    %3758 = vmatprep.subr.bf16.mxu0 0
    %3759 = vmatpush1.bf16.msra.mxu0 %v3531
    %3760 = vmatprep.subr.bf16.mxu0 0
    %3761 = vmatpush1.bf16.msra.mxu0 %v3534
    %3762 = vmatprep.subr.bf16.mxu0 0
    %3763 = vmatpush1.bf16.msra.mxu0 %v3537
    %3764 = vmatprep.subr.bf16.mxu0 0
    %3765 = vmatpush1.bf16.msra.mxu0 %v3540
    %3766 = vmatprep.subr.bf16.mxu0 0
    %3767 = vmatpush1.bf16.msra.mxu0 %v3543
    %3768 = vmatprep.subr.bf16.mxu0 0
    %3769 = vmatpush1.bf16.msra.mxu0 %v3546
    %3770 = vmatprep.subr.bf16.mxu0 0
    %3771 = vmatpush1.bf16.msra.mxu0 %v3549
    %3772 = vmatprep.subr.bf16.mxu0 0
    %3773 = vmatpush1.bf16.msra.mxu0 %v3552
    %3774 = vmatprep.subr.bf16.mxu0 0
    %3775 = vmatpush1.bf16.msra.mxu0 %v3555
    %3776 = vmatprep.subr.bf16.mxu0 0
    %3777 = vmatpush1.bf16.msra.mxu0 %v3558
    %3778 = vmatprep.subr.bf16.mxu0 0
    %3779 = vmatpush1.bf16.msra.mxu0 %v3561
    %3780 = vmatprep.subr.bf16.mxu0 0
    %3781 = vmatpush1.bf16.msra.mxu0 %v3564
    %3782 = vmatprep.subr.bf16.mxu0 0
    %3783 = vmatpush1.bf16.msra.mxu0 %v3567
    %3784 = vmatprep.subr.bf16.mxu0 0
    %3785 = vmatpush1.bf16.msra.mxu0 %v3570
    %3786 = vmatprep.subr.bf16.mxu0 0
    %3787 = vmatpush1.bf16.msra.mxu0 %v3573
    %3788 = vmatprep.mubr.bf16.mxu0 %v745
    %3789 = vmatmul.mubr.bf16.gmra.mrb[0].mxu0 %v380
    %v3790 = vpop.f32.mrb[0].mxu0
    %v3791 = vadd.f32 %v3282, %v3790
    %v3792 = vpop.f32.mrb[0].mxu0
    %v3793 = vpop.f32.mrb[0].mxu0
    %v3794 = vadd.f32 %v3282, %v3793
    %v3795 = vpop.f32.mrb[0].mxu0
    %3796 = vdwg.mxu0
    %3797 = vmatprep.subr.bf16.mxu0 0
    %3798 = vmatpush1.bf16.msra.mxu0 %v3576
    %3799 = vmatprep.subr.bf16.mxu0 0
    %3800 = vmatpush1.bf16.msra.mxu0 %v3579
    %3801 = vmatprep.subr.bf16.mxu0 0
    %3802 = vmatpush1.bf16.msra.mxu0 %v3582
    %3803 = vmatprep.subr.bf16.mxu0 0
    %3804 = vmatpush1.bf16.msra.mxu0 %v3585
    %3805 = vmatprep.subr.bf16.mxu0 0
    %3806 = vmatpush1.bf16.msra.mxu0 %v3588
    %3807 = vmatprep.subr.bf16.mxu0 0
    %3808 = vmatpush1.bf16.msra.mxu0 %v3591
    %3809 = vmatprep.subr.bf16.mxu0 0
    %3810 = vmatpush1.bf16.msra.mxu0 %v3594
    %3811 = vmatprep.subr.bf16.mxu0 0
    %3812 = vmatpush1.bf16.msra.mxu0 %v3597
    %3813 = vmatprep.subr.bf16.mxu0 0
    %3814 = vmatpush1.bf16.msra.mxu0 0
    %3815 = vmatprep.subr.bf16.mxu0 0
    %3816 = vmatpush1.bf16.msra.mxu0 0
    %3817 = vmatprep.subr.bf16.mxu0 0
    %3818 = vmatpush1.bf16.msra.mxu0 0
    %3819 = vmatprep.subr.bf16.mxu0 0
    %3820 = vmatpush1.bf16.msra.mxu0 0
    %3821 = vmatprep.subr.bf16.mxu0 0
    %3822 = vmatpush1.bf16.msra.mxu0 0
    %3823 = vmatprep.subr.bf16.mxu0 0
    %3824 = vmatpush1.bf16.msra.mxu0 0
    %3825 = vmatprep.subr.bf16.mxu0 0
    %3826 = vmatpush1.bf16.msra.mxu0 0
    %3827 = vmatprep.subr.bf16.mxu0 0
    %3828 = vmatpush1.bf16.msra.mxu0 0
    %3829 = vmatprep.mubr.bf16.mxu0 0
    %3830 = vmatmul.mubr.bf16.gmra.mrb[0].mxu0 %v1107
    %v3831 = vpop.f32.mrb[0].mxu0
    %v3832 = vadd.f32 %v3791, %v3831
    %v3833 = vpop.f32.mrb[0].mxu0
    %v3834 = vpop.f32.mrb[0].mxu0
    %v3835 = vadd.f32 %v3794, %v3834
    %v3836 = vpop.f32.mrb[0].mxu0
    %3837 = vdwg.mxu0
    %v3838 = vadd.f32 %v3165, %v3748
    %v3839 = vadd.f32 %v3166, %v3750
    %v3840 = vadd.f32 %v3167, %v3832
    %v3841 = vadd.f32 %v3168, %v3752
    %v3842 = vadd.f32 %v3169, %v3754
    %v3843 = vadd.f32 %v3170, %v3835
    %v3844 = vpack.c.bf16 %v419, %v419
    %v3845 = vpack.c.bf16 %v781, %v781
    %v3846 = vpack.c.bf16 %v1143, %v1143
    %v3847 = vld [vmem:[%s12] sm:$0xff]
    %v3848 = vld [vmem:[%s12 + $0x8] sm:$0xf]
    %v3849 = vld [vmem:[%s12 + $0xc] sm:$0xff]
    %v3850 = vld [vmem:[%s12 + $0x14] sm:$0xf]
    %v3851 = vld [vmem:[%s12 + $0x18] sm:$0xff]
    %v3852 = vld [vmem:[%s12 + $0x20] sm:$0xf]
    %v3853 = vld [vmem:[%s12 + $0x24] sm:$0xff]
    %v3854 = vld [vmem:[%s12 + $0x2c] sm:$0xf]
    %v3855 = vld [vmem:[%s12 + $0x30] sm:$0xff]
    %v3856 = vld [vmem:[%s12 + $0x38] sm:$0xf]
    %v3857 = vld [vmem:[%s12 + $0x3c] sm:$0xff]
    %v3858 = vld [vmem:[%s12 + $0x44] sm:$0xf]
    %v3859 = vld [vmem:[%s12 + $0x48] sm:$0xff]
    %v3860 = vld [vmem:[%s12 + $0x50] sm:$0xf]
    %v3861 = vld [vmem:[%s12 + $0x54] sm:$0xff]
    %v3862 = vld [vmem:[%s12 + $0x5c] sm:$0xf]
    %v3863 = vld [vmem:[%s12 + $0x60] sm:$0xff]
    %v3864 = vld [vmem:[%s12 + $0x68] sm:$0xf]
    %v3865 = vld [vmem:[%s12 + $0x6c] sm:$0xff]
    %v3866 = vld [vmem:[%s12 + $0x74] sm:$0xf]
    %v3867 = vld [vmem:[%s12 + $0x78] sm:$0xff]
    %v3868 = vld [vmem:[%s12 + $0x80] sm:$0xf]
    %v3869 = vld [vmem:[%s12 + $0x84] sm:$0xff]
    %v3870 = vld [vmem:[%s12 + $0x8c] sm:$0xf]
    %v3871 = vld [vmem:[%s12 + $0x90] sm:$0xff]
    %v3872 = vld [vmem:[%s12 + $0x98] sm:$0xf]
    %v3873 = vld [vmem:[%s12 + $0x9c] sm:$0xff]
    %v3874 = vld [vmem:[%s12 + $0xa4] sm:$0xf]
    %v3875 = vld [vmem:[%s12 + $0xa8] sm:$0xff]
    %v3876 = vld [vmem:[%s12 + $0xb0] sm:$0xf]
    %v3877 = vld [vmem:[%s12 + $0xb4] sm:$0xff]
    %v3878 = vld [vmem:[%s12 + $0xbc] sm:$0xf]
    %v3879 = vld [vmem:[%s12 + $0xc0] sm:$0xff]
    %v3880 = vld [vmem:[%s12 + $0xc8] sm:$0xf]
    %v3881 = vld [vmem:[%s12 + $0xcc] sm:$0xff]
    %v3882 = vld [vmem:[%s12 + $0xd4] sm:$0xf]
    %v3883 = vld [vmem:[%s12 + $0xd8] sm:$0xff]
    %v3884 = vld [vmem:[%s12 + $0xe0] sm:$0xf]
    %v3885 = vld [vmem:[%s12 + $0xe4] sm:$0xff]
    %v3886 = vld [vmem:[%s12 + $0xec] sm:$0xf]
    %v3887 = vld [vmem:[%s12 + $0xf0] sm:$0xff]
    %v3888 = vld [vmem:[%s12 + $0xf8] sm:$0xf]
    %v3889 = vld [vmem:[%s12 + $0xfc] sm:$0xff]
    %v3890 = vld [vmem:[%s12 + $0x104] sm:$0xf]
    %v3891 = vld [vmem:[%s12 + $0x108] sm:$0xff]
    %v3892 = vld [vmem:[%s12 + $0x110] sm:$0xf]
    %v3893 = vld [vmem:[%s12 + $0x114] sm:$0xff]
    %v3894 = vld [vmem:[%s12 + $0x11c] sm:$0xf]
    %v3895 = vld [vmem:[%s12 + $0x120] sm:$0xff]
    %v3896 = vld [vmem:[%s12 + $0x128] sm:$0xf]
    %v3897 = vld [vmem:[%s12 + $0x12c] sm:$0xff]
    %v3898 = vld [vmem:[%s12 + $0x134] sm:$0xf]
    %v3899 = vld [vmem:[%s12 + $0x138] sm:$0xff]
    %v3900 = vld [vmem:[%s12 + $0x140] sm:$0xf]
    %v3901 = vld [vmem:[%s12 + $0x144] sm:$0xff]
    %v3902 = vld [vmem:[%s12 + $0x14c] sm:$0xf]
    %v3903 = vld [vmem:[%s12 + $0x150] sm:$0xff]
    %v3904 = vld [vmem:[%s12 + $0x158] sm:$0xf]
    %v3905 = vld [vmem:[%s12 + $0x15c] sm:$0xff]
    %v3906 = vld [vmem:[%s12 + $0x164] sm:$0xf]
    %v3907 = vld [vmem:[%s12 + $0x168] sm:$0xff]
    %v3908 = vld [vmem:[%s12 + $0x170] sm:$0xf]
    %v3909 = vld [vmem:[%s12 + $0x174] sm:$0xff]
    %v3910 = vld [vmem:[%s12 + $0x17c] sm:$0xf]
    %v3911 = vld [vmem:[%s12 + $0x180] sm:$0xff]
    %v3912 = vld [vmem:[%s12 + $0x188] sm:$0xf]
    %v3913 = vld [vmem:[%s12 + $0x18c] sm:$0xff]
    %v3914 = vld [vmem:[%s12 + $0x194] sm:$0xf]
    %v3915 = vld [vmem:[%s12 + $0x198] sm:$0xff]
    %v3916 = vld [vmem:[%s12 + $0x1a0] sm:$0xf]
    %v3917 = vld [vmem:[%s12 + $0x1a4] sm:$0xff]
    %v3918 = vld [vmem:[%s12 + $0x1ac] sm:$0xf]
    %v3919 = vld [vmem:[%s12 + $0x1b0] sm:$0xff]
    %v3920 = vld [vmem:[%s12 + $0x1b8] sm:$0xf]
    %v3921 = vld [vmem:[%s12 + $0x1bc] sm:$0xff]
    %v3922 = vld [vmem:[%s12 + $0x1c4] sm:$0xf]
    %v3923 = vld [vmem:[%s12 + $0x1c8] sm:$0xff]
    %v3924 = vld [vmem:[%s12 + $0x1d0] sm:$0xf]
    %v3925 = vld [vmem:[%s12 + $0x1d4] sm:$0xff]
    %v3926 = vld [vmem:[%s12 + $0x1dc] sm:$0xf]
    %v3927 = vld [vmem:[%s12 + $0x1e0] sm:$0xff]
    %v3928 = vld [vmem:[%s12 + $0x1e8] sm:$0xf]
    %v3929 = vld [vmem:[%s12 + $0x1ec] sm:$0xff]
    %v3930 = vld [vmem:[%s12 + $0x1f4] sm:$0xf]
    %v3931 = vld [vmem:[%s12 + $0x1f8] sm:$0xff]
    %v3932 = vld [vmem:[%s12 + $0x200] sm:$0xf]
    %v3933 = vld [vmem:[%s12 + $0x204] sm:$0xff]
    %v3934 = vld [vmem:[%s12 + $0x20c] sm:$0xf]
    %v3935 = vld [vmem:[%s12 + $0x210] sm:$0xff]
    %v3936 = vld [vmem:[%s12 + $0x218] sm:$0xf]
    %v3937 = vld [vmem:[%s12 + $0x21c] sm:$0xff]
    %v3938 = vld [vmem:[%s12 + $0x224] sm:$0xf]
    %v3939 = vld [vmem:[%s12 + $0x228] sm:$0xff]
    %v3940 = vld [vmem:[%s12 + $0x230] sm:$0xf]
    %v3941 = vld [vmem:[%s12 + $0x234] sm:$0xff]
    %v3942 = vld [vmem:[%s12 + $0x23c] sm:$0xf]
    %v3943 = vld [vmem:[%s13] sm:$0x7]
    %v3945 = vlaneseq
    %v3946 = vshrl.u32 %v3945, 7
    %v3947 = vsub.s32 0, %v3946
    %v3948 = vrot.slane %v3943, %v3947
    %v3949 = vlaneseq
    %v3950 = vshrl.u32 %v3949, 7
    %v3951 = vsub.s32 1, %v3950
    %v3952 = vrot.slane %v3943, %v3951
    %v3953 = vlaneseq
    %v3954 = vshrl.u32 %v3953, 7
    %v3955 = vsub.s32 2, %v3954
    %v3956 = vrot.slane %v3943, %v3955
    %v4056 = vunpack.c.l.b16 %v3847
    %v4057 = vunpack.c.h.b16 %v3847
    %v4058 = vunpack.c.l.b16 %v3848
    %v4059 = vunpack.c.l.b16 %v3849
    %v4060 = vunpack.c.h.b16 %v3849
    %v4061 = vunpack.c.l.b16 %v3850
    %v4062 = vunpack.c.l.b16 %v3851
    %v4063 = vunpack.c.h.b16 %v3851
    %v4064 = vunpack.c.l.b16 %v3852
    %v4065 = vunpack.c.l.b16 %v3853
    %v4066 = vunpack.c.h.b16 %v3853
    %v4067 = vunpack.c.l.b16 %v3854
    %v4068 = vunpack.c.l.b16 %v3855
    %v4069 = vunpack.c.h.b16 %v3855
    %v4070 = vunpack.c.l.b16 %v3856
    %v4071 = vunpack.c.l.b16 %v3857
    %v4072 = vunpack.c.h.b16 %v3857
    %v4073 = vunpack.c.l.b16 %v3858
    %v4074 = vunpack.c.l.b16 %v3859
    %v4075 = vunpack.c.h.b16 %v3859
    %v4076 = vunpack.c.l.b16 %v3860
    %v4077 = vunpack.c.l.b16 %v3861
    %v4078 = vunpack.c.h.b16 %v3861
    %v4079 = vunpack.c.l.b16 %v3862
    %v4080 = vunpack.c.l.b16 %v3863
    %v4081 = vunpack.c.h.b16 %v3863
    %v4082 = vunpack.c.l.b16 %v3864
    %v4083 = vunpack.c.l.b16 %v3865
    %v4084 = vunpack.c.h.b16 %v3865
    %v4085 = vunpack.c.l.b16 %v3866
    %v4086 = vunpack.c.l.b16 %v3867
    %v4087 = vunpack.c.h.b16 %v3867
    %v4088 = vunpack.c.l.b16 %v3868
    %v4089 = vunpack.c.l.b16 %v3869
    %v4090 = vunpack.c.h.b16 %v3869
    %v4091 = vunpack.c.l.b16 %v3870
    %v4092 = vunpack.c.l.b16 %v3871
    %v4093 = vunpack.c.h.b16 %v3871
    %v4094 = vunpack.c.l.b16 %v3872
    %v4095 = vunpack.c.l.b16 %v3873
    %v4096 = vunpack.c.h.b16 %v3873
    %v4097 = vunpack.c.l.b16 %v3874
    %v4098 = vunpack.c.l.b16 %v3875
    %v4099 = vunpack.c.h.b16 %v3875
    %v4100 = vunpack.c.l.b16 %v3876
    %v4101 = vunpack.c.l.b16 %v3877
    %v4102 = vunpack.c.h.b16 %v3877
    %v4103 = vunpack.c.l.b16 %v3878
    %v4104 = vunpack.c.l.b16 %v3879
    %v4105 = vunpack.c.h.b16 %v3879
    %v4106 = vunpack.c.l.b16 %v3880
    %v4107 = vunpack.c.l.b16 %v3881
    %v4108 = vunpack.c.h.b16 %v3881
    %v4109 = vunpack.c.l.b16 %v3882
    %v4110 = vunpack.c.l.b16 %v3883
    %v4111 = vunpack.c.h.b16 %v3883
    %v4112 = vunpack.c.l.b16 %v3884
    %v4113 = vunpack.c.l.b16 %v3885
    %v4114 = vunpack.c.h.b16 %v3885
    %v4115 = vunpack.c.l.b16 %v3886
    %v4116 = vunpack.c.l.b16 %v3887
    %v4117 = vunpack.c.h.b16 %v3887
    %v4118 = vunpack.c.l.b16 %v3888
    %v4119 = vunpack.c.l.b16 %v3889
    %v4120 = vunpack.c.h.b16 %v3889
    %v4121 = vunpack.c.l.b16 %v3890
    %v4122 = vunpack.c.l.b16 %v3891
    %v4123 = vunpack.c.h.b16 %v3891
    %v4124 = vunpack.c.l.b16 %v3892
    %v4125 = vunpack.c.l.b16 %v3893
    %v4126 = vunpack.c.h.b16 %v3893
    %v4127 = vunpack.c.l.b16 %v3894
    %v4128 = vunpack.c.l.b16 %v3895
    %v4129 = vunpack.c.h.b16 %v3895
    %v4130 = vunpack.c.l.b16 %v3896
    %v4131 = vunpack.c.l.b16 %v3897
    %v4132 = vunpack.c.h.b16 %v3897
    %v4133 = vunpack.c.l.b16 %v3898
    %v4134 = vunpack.c.l.b16 %v3899
    %v4135 = vunpack.c.h.b16 %v3899
    %v4136 = vunpack.c.l.b16 %v3900
    %v4137 = vunpack.c.l.b16 %v3901
    %v4138 = vunpack.c.h.b16 %v3901
    %v4139 = vunpack.c.l.b16 %v3902
    %v4140 = vunpack.c.l.b16 %v3903
    %v4141 = vunpack.c.h.b16 %v3903
    %v4142 = vunpack.c.l.b16 %v3904
    %v4143 = vunpack.c.l.b16 %v3905
    %v4144 = vunpack.c.h.b16 %v3905
    %v4145 = vunpack.c.l.b16 %v3906
    %v4146 = vunpack.c.l.b16 %v3907
    %v4147 = vunpack.c.h.b16 %v3907
    %v4148 = vunpack.c.l.b16 %v3908
    %v4149 = vunpack.c.l.b16 %v3909
    %v4150 = vunpack.c.h.b16 %v3909
    %v4151 = vunpack.c.l.b16 %v3910
    %v4152 = vunpack.c.l.b16 %v3911
    %v4153 = vunpack.c.h.b16 %v3911
    %v4154 = vunpack.c.l.b16 %v3912
    %v4155 = vunpack.c.l.b16 %v3913
    %v4156 = vunpack.c.h.b16 %v3913
    %v4157 = vunpack.c.l.b16 %v3914
    %v4158 = vunpack.c.l.b16 %v3915
    %v4159 = vunpack.c.h.b16 %v3915
    %v4160 = vunpack.c.l.b16 %v3916
    %v4161 = vunpack.c.l.b16 %v3917
    %v4162 = vunpack.c.h.b16 %v3917
    %v4163 = vunpack.c.l.b16 %v3918
    %v4164 = vunpack.c.l.b16 %v3919
    %v4165 = vunpack.c.h.b16 %v3919
    %v4166 = vunpack.c.l.b16 %v3920
    %v4167 = vunpack.c.l.b16 %v3921
    %v4168 = vunpack.c.h.b16 %v3921
    %v4169 = vunpack.c.l.b16 %v3922
    %v4170 = vunpack.c.l.b16 %v3923
    %v4171 = vunpack.c.h.b16 %v3923
    %v4172 = vunpack.c.l.b16 %v3924
    %v4173 = vunpack.c.l.b16 %v3925
    %v4174 = vunpack.c.h.b16 %v3925
    %v4175 = vunpack.c.l.b16 %v3926
    %v4176 = vunpack.c.l.b16 %v3927
    %v4177 = vunpack.c.h.b16 %v3927
    %v4178 = vunpack.c.l.b16 %v3928
    %v4179 = vunpack.c.l.b16 %v3929
    %v4180 = vunpack.c.h.b16 %v3929
    %v4181 = vunpack.c.l.b16 %v3930
    %v4182 = vunpack.c.l.b16 %v3931
    %v4183 = vunpack.c.h.b16 %v3931
    %v4184 = vunpack.c.l.b16 %v3932
    %v4185 = vunpack.c.l.b16 %v3933
    %v4186 = vunpack.c.h.b16 %v3933
    %v4187 = vunpack.c.l.b16 %v3934
    %v4188 = vunpack.c.l.b16 %v3935
    %v4189 = vunpack.c.h.b16 %v3935
    %v4190 = vunpack.c.l.b16 %v3936
    %v4191 = vunpack.c.l.b16 %v3937
    %v4192 = vunpack.c.h.b16 %v3937
    %v4193 = vunpack.c.l.b16 %v3938
    %v4194 = vunpack.c.l.b16 %v3939
    %v4195 = vunpack.c.h.b16 %v3939
    %v4196 = vunpack.c.l.b16 %v3940
    %v4197 = vunpack.c.l.b16 %v3941
    %v4198 = vunpack.c.h.b16 %v3941
    %v4199 = vunpack.c.l.b16 %v3942
    %v4200 = vpack.c.b16 %v4059, %v4056
    %v4201 = vpack.c.b16 %v4060, %v4057
    %v4202 = vpack.c.b16 %v4061, %v4058
    %v4203 = vpack.c.b16 %v4065, %v4062
    %v4204 = vpack.c.b16 %v4066, %v4063
    %v4205 = vpack.c.b16 %v4067, %v4064
    %v4206 = vpack.c.b16 %v4071, %v4068
    %v4207 = vpack.c.b16 %v4072, %v4069
    %v4208 = vpack.c.b16 %v4073, %v4070
    %v4209 = vpack.c.b16 %v4077, %v4074
    %v4210 = vpack.c.b16 %v4078, %v4075
    %v4211 = vpack.c.b16 %v4079, %v4076
    %v4212 = vpack.c.b16 %v4083, %v4080
    %v4213 = vpack.c.b16 %v4084, %v4081
    %v4214 = vpack.c.b16 %v4085, %v4082
    %v4215 = vpack.c.b16 %v4089, %v4086
    %v4216 = vpack.c.b16 %v4090, %v4087
    %v4217 = vpack.c.b16 %v4091, %v4088
    %v4218 = vpack.c.b16 %v4095, %v4092
    %v4219 = vpack.c.b16 %v4096, %v4093
    %v4220 = vpack.c.b16 %v4097, %v4094
    %v4221 = vpack.c.b16 %v4101, %v4098
    %v4222 = vpack.c.b16 %v4102, %v4099
    %v4223 = vpack.c.b16 %v4103, %v4100
    %v4224 = vpack.c.b16 %v4107, %v4104
    %v4225 = vpack.c.b16 %v4108, %v4105
    %v4226 = vpack.c.b16 %v4109, %v4106
    %v4227 = vpack.c.b16 %v4113, %v4110
    %v4228 = vpack.c.b16 %v4114, %v4111
    %v4229 = vpack.c.b16 %v4115, %v4112
    %v4230 = vpack.c.b16 %v4119, %v4116
    %v4231 = vpack.c.b16 %v4120, %v4117
    %v4232 = vpack.c.b16 %v4121, %v4118
    %v4233 = vpack.c.b16 %v4125, %v4122
    %v4234 = vpack.c.b16 %v4126, %v4123
    %v4235 = vpack.c.b16 %v4127, %v4124
    %v4236 = vpack.c.b16 %v4131, %v4128
    %v4237 = vpack.c.b16 %v4132, %v4129
    %v4238 = vpack.c.b16 %v4133, %v4130
    %v4239 = vpack.c.b16 %v4137, %v4134
    %v4240 = vpack.c.b16 %v4138, %v4135
    %v4241 = vpack.c.b16 %v4139, %v4136
    %v4242 = vpack.c.b16 %v4143, %v4140
    %v4243 = vpack.c.b16 %v4144, %v4141
    %v4244 = vpack.c.b16 %v4145, %v4142
    %v4245 = vpack.c.b16 %v4149, %v4146
    %v4246 = vpack.c.b16 %v4150, %v4147
    %v4247 = vpack.c.b16 %v4151, %v4148
    %v4248 = vpack.c.b16 %v4155, %v4152
    %v4249 = vpack.c.b16 %v4156, %v4153
    %v4250 = vpack.c.b16 %v4157, %v4154
    %v4251 = vpack.c.b16 %v4161, %v4158
    %v4252 = vpack.c.b16 %v4162, %v4159
    %v4253 = vpack.c.b16 %v4163, %v4160
    %v4254 = vpack.c.b16 %v4167, %v4164
    %v4255 = vpack.c.b16 %v4168, %v4165
    %v4256 = vpack.c.b16 %v4169, %v4166
    %v4257 = vpack.c.b16 %v4173, %v4170
    %v4258 = vpack.c.b16 %v4174, %v4171
    %v4259 = vpack.c.b16 %v4175, %v4172
    %v4260 = vpack.c.b16 %v4179, %v4176
    %v4261 = vpack.c.b16 %v4180, %v4177
    %v4262 = vpack.c.b16 %v4181, %v4178
    %v4263 = vpack.c.b16 %v4185, %v4182
    %v4264 = vpack.c.b16 %v4186, %v4183
    %v4265 = vpack.c.b16 %v4187, %v4184
    %v4266 = vpack.c.b16 %v4191, %v4188
    %v4267 = vpack.c.b16 %v4192, %v4189
    %v4268 = vpack.c.b16 %v4193, %v4190
    %v4269 = vpack.c.b16 %v4197, %v4194
    %v4270 = vpack.c.b16 %v4198, %v4195
    %v4271 = vpack.c.b16 %v4199, %v4196
    %4344 = vmatprep.subr.bf16.mxu0 %v4201
    %4345 = vmatpush1.bf16.msra.mxu0 %v4200
    %4346 = vmatprep.subr.bf16.mxu0 %v4204
    %4347 = vmatpush1.bf16.msra.mxu0 %v4203
    %4348 = vmatprep.subr.bf16.mxu0 %v4207
    %4349 = vmatpush1.bf16.msra.mxu0 %v4206
    %4350 = vmatprep.subr.bf16.mxu0 %v4210
    %4351 = vmatpush1.bf16.msra.mxu0 %v4209
    %4352 = vmatprep.subr.bf16.mxu0 %v4213
    %4353 = vmatpush1.bf16.msra.mxu0 %v4212
    %4354 = vmatprep.subr.bf16.mxu0 %v4216
    %4355 = vmatpush1.bf16.msra.mxu0 %v4215
    %4356 = vmatprep.subr.bf16.mxu0 %v4219
    %4357 = vmatpush1.bf16.msra.mxu0 %v4218
    %4358 = vmatprep.subr.bf16.mxu0 %v4222
    %4359 = vmatpush1.bf16.msra.mxu0 %v4221
    %4360 = vmatprep.subr.bf16.mxu0 %v4225
    %4361 = vmatpush1.bf16.msra.mxu0 %v4224
    %4362 = vmatprep.subr.bf16.mxu0 %v4228
    %4363 = vmatpush1.bf16.msra.mxu0 %v4227
    %4364 = vmatprep.subr.bf16.mxu0 %v4231
    %4365 = vmatpush1.bf16.msra.mxu0 %v4230
    %4366 = vmatprep.subr.bf16.mxu0 %v4234
    %4367 = vmatpush1.bf16.msra.mxu0 %v4233
    %4368 = vmatprep.subr.bf16.mxu0 %v4237
    %4369 = vmatpush1.bf16.msra.mxu0 %v4236
    %4370 = vmatprep.subr.bf16.mxu0 %v4240
    %4371 = vmatpush1.bf16.msra.mxu0 %v4239
    %4372 = vmatprep.subr.bf16.mxu0 %v4243
    %4373 = vmatpush1.bf16.msra.mxu0 %v4242
    %4374 = vmatprep.subr.bf16.mxu0 %v4246
    %4375 = vmatpush1.bf16.msra.mxu0 %v4245
    %4376 = vmatprep.mubr.bf16.mxu0 %v3845
    %4377 = vmatmul.mubr.bf16.gmra.mrb[0].mxu0 %v3844
    %v4378 = vpop.f32.mrb[0].mxu0
    %v4379 = vadd.f32 %v3948, %v4378
    %v4380 = vpop.f32.mrb[0].mxu0
    %v4381 = vadd.f32 %v3952, %v4380
    %v4382 = vpop.f32.mrb[0].mxu0
    %v4383 = vpop.f32.mrb[0].mxu0
    %4384 = vdwg.mxu0
    %4385 = vmatprep.subr.bf16.mxu0 %v4249
    %4386 = vmatpush1.bf16.msra.mxu0 %v4248
    %4387 = vmatprep.subr.bf16.mxu0 %v4252
    %4388 = vmatpush1.bf16.msra.mxu0 %v4251
    %4389 = vmatprep.subr.bf16.mxu0 %v4255
    %4390 = vmatpush1.bf16.msra.mxu0 %v4254
    %4391 = vmatprep.subr.bf16.mxu0 %v4258
    %4392 = vmatpush1.bf16.msra.mxu0 %v4257
    %4393 = vmatprep.subr.bf16.mxu0 %v4261
    %4394 = vmatpush1.bf16.msra.mxu0 %v4260
    %4395 = vmatprep.subr.bf16.mxu0 %v4264
    %4396 = vmatpush1.bf16.msra.mxu0 %v4263
    %4397 = vmatprep.subr.bf16.mxu0 %v4267
    %4398 = vmatpush1.bf16.msra.mxu0 %v4266
    %4399 = vmatprep.subr.bf16.mxu0 %v4270
    %4400 = vmatpush1.bf16.msra.mxu0 %v4269
    %4401 = vmatprep.subr.bf16.mxu0 0
    %4402 = vmatpush1.bf16.msra.mxu0 0
    %4403 = vmatprep.subr.bf16.mxu0 0
    %4404 = vmatpush1.bf16.msra.mxu0 0
    %4405 = vmatprep.subr.bf16.mxu0 0
    %4406 = vmatpush1.bf16.msra.mxu0 0
    %4407 = vmatprep.subr.bf16.mxu0 0
    %4408 = vmatpush1.bf16.msra.mxu0 0
    %4409 = vmatprep.subr.bf16.mxu0 0
    %4410 = vmatpush1.bf16.msra.mxu0 0
    %4411 = vmatprep.subr.bf16.mxu0 0
    %4412 = vmatpush1.bf16.msra.mxu0 0
    %4413 = vmatprep.subr.bf16.mxu0 0
    %4414 = vmatpush1.bf16.msra.mxu0 0
    %4415 = vmatprep.subr.bf16.mxu0 0
    %4416 = vmatpush1.bf16.msra.mxu0 0
    %4417 = vmatprep.mubr.bf16.mxu0 0
    %4418 = vmatmul.mubr.bf16.gmra.mrb[0].mxu0 %v3846
    %v4419 = vpop.f32.mrb[0].mxu0
    %v4420 = vadd.f32 %v4379, %v4419
    %v4421 = vpop.f32.mrb[0].mxu0
    %v4422 = vadd.f32 %v4381, %v4421
    %v4423 = vpop.f32.mrb[0].mxu0
    %v4424 = vpop.f32.mrb[0].mxu0
    %4425 = vdwg.mxu0
    %4426 = vmatprep.subr.bf16.mxu0 0
    %4427 = vmatpush1.bf16.msra.mxu0 %v4202
    %4428 = vmatprep.subr.bf16.mxu0 0
    %4429 = vmatpush1.bf16.msra.mxu0 %v4205
    %4430 = vmatprep.subr.bf16.mxu0 0
    %4431 = vmatpush1.bf16.msra.mxu0 %v4208
    %4432 = vmatprep.subr.bf16.mxu0 0
    %4433 = vmatpush1.bf16.msra.mxu0 %v4211
    %4434 = vmatprep.subr.bf16.mxu0 0
    %4435 = vmatpush1.bf16.msra.mxu0 %v4214
    %4436 = vmatprep.subr.bf16.mxu0 0
    %4437 = vmatpush1.bf16.msra.mxu0 %v4217
    %4438 = vmatprep.subr.bf16.mxu0 0
    %4439 = vmatpush1.bf16.msra.mxu0 %v4220
    %4440 = vmatprep.subr.bf16.mxu0 0
    %4441 = vmatpush1.bf16.msra.mxu0 %v4223
    %4442 = vmatprep.subr.bf16.mxu0 0
    %4443 = vmatpush1.bf16.msra.mxu0 %v4226
    %4444 = vmatprep.subr.bf16.mxu0 0
    %4445 = vmatpush1.bf16.msra.mxu0 %v4229
    %4446 = vmatprep.subr.bf16.mxu0 0
    %4447 = vmatpush1.bf16.msra.mxu0 %v4232
    %4448 = vmatprep.subr.bf16.mxu0 0
    %4449 = vmatpush1.bf16.msra.mxu0 %v4235
    %4450 = vmatprep.subr.bf16.mxu0 0
    %4451 = vmatpush1.bf16.msra.mxu0 %v4238
    %4452 = vmatprep.subr.bf16.mxu0 0
    %4453 = vmatpush1.bf16.msra.mxu0 %v4241
    %4454 = vmatprep.subr.bf16.mxu0 0
    %4455 = vmatpush1.bf16.msra.mxu0 %v4244
    %4456 = vmatprep.subr.bf16.mxu0 0
    %4457 = vmatpush1.bf16.msra.mxu0 %v4247
    %4458 = vmatprep.mubr.bf16.mxu0 %v3845
    %4459 = vmatmul.mubr.bf16.gmra.mrb[0].mxu0 %v3844
    %v4460 = vpop.f32.mrb[0].mxu0
    %v4461 = vadd.f32 %v3956, %v4460
    %v4462 = vpop.f32.mrb[0].mxu0
    %v4463 = vpop.f32.mrb[0].mxu0
    %v4464 = vpop.f32.mrb[0].mxu0
    %4465 = vdwg.mxu0
    %4466 = vmatprep.subr.bf16.mxu0 0
    %4467 = vmatpush1.bf16.msra.mxu0 %v4250
    %4468 = vmatprep.subr.bf16.mxu0 0
    %4469 = vmatpush1.bf16.msra.mxu0 %v4253
    %4470 = vmatprep.subr.bf16.mxu0 0
    %4471 = vmatpush1.bf16.msra.mxu0 %v4256
    %4472 = vmatprep.subr.bf16.mxu0 0
    %4473 = vmatpush1.bf16.msra.mxu0 %v4259
    %4474 = vmatprep.subr.bf16.mxu0 0
    %4475 = vmatpush1.bf16.msra.mxu0 %v4262
    %4476 = vmatprep.subr.bf16.mxu0 0
    %4477 = vmatpush1.bf16.msra.mxu0 %v4265
    %4478 = vmatprep.subr.bf16.mxu0 0
    %4479 = vmatpush1.bf16.msra.mxu0 %v4268
    %4480 = vmatprep.subr.bf16.mxu0 0
    %4481 = vmatpush1.bf16.msra.mxu0 %v4271
    %4482 = vmatprep.subr.bf16.mxu0 0
    %4483 = vmatpush1.bf16.msra.mxu0 0
    %4484 = vmatprep.subr.bf16.mxu0 0
    %4485 = vmatpush1.bf16.msra.mxu0 0
    %4486 = vmatprep.subr.bf16.mxu0 0
    %4487 = vmatpush1.bf16.msra.mxu0 0
    %4488 = vmatprep.subr.bf16.mxu0 0
    %4489 = vmatpush1.bf16.msra.mxu0 0
    %4490 = vmatprep.subr.bf16.mxu0 0
    %4491 = vmatpush1.bf16.msra.mxu0 0
    %4492 = vmatprep.subr.bf16.mxu0 0
    %4493 = vmatpush1.bf16.msra.mxu0 0
    %4494 = vmatprep.subr.bf16.mxu0 0
    %4495 = vmatpush1.bf16.msra.mxu0 0
    %4496 = vmatprep.subr.bf16.mxu0 0
    %4497 = vmatpush1.bf16.msra.mxu0 0
    %4498 = vmatprep.mubr.bf16.mxu0 0
    %4499 = vmatmul.mubr.bf16.gmra.mrb[0].mxu0 %v3846
    %v4500 = vpop.f32.mrb[0].mxu0
    %v4501 = vadd.f32 %v4461, %v4500
    %v4502 = vpop.f32.mrb[0].mxu0
    %v4503 = vpop.f32.mrb[0].mxu0
    %v4504 = vpop.f32.mrb[0].mxu0
    %4505 = vdwg.mxu0
    %v4506 = vmax.f32 %v4420, 0.0
    %v4507 = vmax.f32 %v4422, 0.0
    %v4508 = vmax.f32 %v4501, 0.0
    %v4509 = vpack.c.bf16 %v4506, %v4506
    %v4510 = vpack.c.bf16 %v4507, %v4507
    %v4511 = vpack.c.bf16 %v4508, %v4508
    %s4512 = scalar_lea.vmem %s12, 576
    %v4513 = vld [vmem:[%s4512] sm:$0xff]
    %v4514 = vld [vmem:[%s4512 + $0x8] sm:$0xf]
    %v4515 = vld [vmem:[%s4512 + $0xc] sm:$0xff]
    %v4516 = vld [vmem:[%s4512 + $0x14] sm:$0xf]
    %v4517 = vld [vmem:[%s4512 + $0x18] sm:$0xff]
    %v4518 = vld [vmem:[%s4512 + $0x20] sm:$0xf]
    %v4519 = vld [vmem:[%s4512 + $0x24] sm:$0xff]
    %v4520 = vld [vmem:[%s4512 + $0x2c] sm:$0xf]
    %v4521 = vld [vmem:[%s4512 + $0x30] sm:$0xff]
    %v4522 = vld [vmem:[%s4512 + $0x38] sm:$0xf]
    %v4523 = vld [vmem:[%s4512 + $0x3c] sm:$0xff]
    %v4524 = vld [vmem:[%s4512 + $0x44] sm:$0xf]
    %v4525 = vld [vmem:[%s4512 + $0x48] sm:$0xff]
    %v4526 = vld [vmem:[%s4512 + $0x50] sm:$0xf]
    %v4527 = vld [vmem:[%s4512 + $0x54] sm:$0xff]
    %v4528 = vld [vmem:[%s4512 + $0x5c] sm:$0xf]
    %v4529 = vld [vmem:[%s4512 + $0x60] sm:$0xff]
    %v4530 = vld [vmem:[%s4512 + $0x68] sm:$0xf]
    %v4531 = vld [vmem:[%s4512 + $0x6c] sm:$0xff]
    %v4532 = vld [vmem:[%s4512 + $0x74] sm:$0xf]
    %v4533 = vld [vmem:[%s4512 + $0x78] sm:$0xff]
    %v4534 = vld [vmem:[%s4512 + $0x80] sm:$0xf]
    %v4535 = vld [vmem:[%s4512 + $0x84] sm:$0xff]
    %v4536 = vld [vmem:[%s4512 + $0x8c] sm:$0xf]
    %v4537 = vld [vmem:[%s4512 + $0x90] sm:$0xff]
    %v4538 = vld [vmem:[%s4512 + $0x98] sm:$0xf]
    %v4539 = vld [vmem:[%s4512 + $0x9c] sm:$0xff]
    %v4540 = vld [vmem:[%s4512 + $0xa4] sm:$0xf]
    %v4541 = vld [vmem:[%s4512 + $0xa8] sm:$0xff]
    %v4542 = vld [vmem:[%s4512 + $0xb0] sm:$0xf]
    %v4543 = vld [vmem:[%s4512 + $0xb4] sm:$0xff]
    %v4544 = vld [vmem:[%s4512 + $0xbc] sm:$0xf]
    %v4545 = vld [vmem:[%s4512 + $0xc0] sm:$0xff]
    %v4546 = vld [vmem:[%s4512 + $0xc8] sm:$0xf]
    %v4547 = vld [vmem:[%s4512 + $0xcc] sm:$0xff]
    %v4548 = vld [vmem:[%s4512 + $0xd4] sm:$0xf]
    %v4549 = vld [vmem:[%s4512 + $0xd8] sm:$0xff]
    %v4550 = vld [vmem:[%s4512 + $0xe0] sm:$0xf]
    %v4551 = vld [vmem:[%s4512 + $0xe4] sm:$0xff]
    %v4552 = vld [vmem:[%s4512 + $0xec] sm:$0xf]
    %v4553 = vld [vmem:[%s4512 + $0xf0] sm:$0xff]
    %v4554 = vld [vmem:[%s4512 + $0xf8] sm:$0xf]
    %v4555 = vld [vmem:[%s4512 + $0xfc] sm:$0xff]
    %v4556 = vld [vmem:[%s4512 + $0x104] sm:$0xf]
    %v4557 = vld [vmem:[%s4512 + $0x108] sm:$0xff]
    %v4558 = vld [vmem:[%s4512 + $0x110] sm:$0xf]
    %v4559 = vld [vmem:[%s4512 + $0x114] sm:$0xff]
    %v4560 = vld [vmem:[%s4512 + $0x11c] sm:$0xf]
    %v4561 = vld [vmem:[%s4512 + $0x120] sm:$0xff]
    %v4562 = vld [vmem:[%s4512 + $0x128] sm:$0xf]
    %v4563 = vld [vmem:[%s4512 + $0x12c] sm:$0xff]
    %v4564 = vld [vmem:[%s4512 + $0x134] sm:$0xf]
    %v4565 = vld [vmem:[%s4512 + $0x138] sm:$0xff]
    %v4566 = vld [vmem:[%s4512 + $0x140] sm:$0xf]
    %v4567 = vld [vmem:[%s4512 + $0x144] sm:$0xff]
    %v4568 = vld [vmem:[%s4512 + $0x14c] sm:$0xf]
    %v4569 = vld [vmem:[%s4512 + $0x150] sm:$0xff]
    %v4570 = vld [vmem:[%s4512 + $0x158] sm:$0xf]
    %v4571 = vld [vmem:[%s4512 + $0x15c] sm:$0xff]
    %v4572 = vld [vmem:[%s4512 + $0x164] sm:$0xf]
    %v4573 = vld [vmem:[%s4512 + $0x168] sm:$0xff]
    %v4574 = vld [vmem:[%s4512 + $0x170] sm:$0xf]
    %v4575 = vld [vmem:[%s4512 + $0x174] sm:$0xff]
    %v4576 = vld [vmem:[%s4512 + $0x17c] sm:$0xf]
    %v4577 = vld [vmem:[%s4512 + $0x180] sm:$0xff]
    %v4578 = vld [vmem:[%s4512 + $0x188] sm:$0xf]
    %v4579 = vld [vmem:[%s4512 + $0x18c] sm:$0xff]
    %v4580 = vld [vmem:[%s4512 + $0x194] sm:$0xf]
    %v4581 = vld [vmem:[%s4512 + $0x198] sm:$0xff]
    %v4582 = vld [vmem:[%s4512 + $0x1a0] sm:$0xf]
    %v4583 = vld [vmem:[%s4512 + $0x1a4] sm:$0xff]
    %v4584 = vld [vmem:[%s4512 + $0x1ac] sm:$0xf]
    %v4585 = vld [vmem:[%s4512 + $0x1b0] sm:$0xff]
    %v4586 = vld [vmem:[%s4512 + $0x1b8] sm:$0xf]
    %v4587 = vld [vmem:[%s4512 + $0x1bc] sm:$0xff]
    %v4588 = vld [vmem:[%s4512 + $0x1c4] sm:$0xf]
    %v4589 = vld [vmem:[%s4512 + $0x1c8] sm:$0xff]
    %v4590 = vld [vmem:[%s4512 + $0x1d0] sm:$0xf]
    %v4591 = vld [vmem:[%s4512 + $0x1d4] sm:$0xff]
    %v4592 = vld [vmem:[%s4512 + $0x1dc] sm:$0xf]
    %v4593 = vld [vmem:[%s4512 + $0x1e0] sm:$0xff]
    %v4594 = vld [vmem:[%s4512 + $0x1e8] sm:$0xf]
    %v4595 = vld [vmem:[%s4512 + $0x1ec] sm:$0xff]
    %v4596 = vld [vmem:[%s4512 + $0x1f4] sm:$0xf]
    %v4597 = vld [vmem:[%s4512 + $0x1f8] sm:$0xff]
    %v4598 = vld [vmem:[%s4512 + $0x200] sm:$0xf]
    %v4599 = vld [vmem:[%s4512 + $0x204] sm:$0xff]
    %v4600 = vld [vmem:[%s4512 + $0x20c] sm:$0xf]
    %v4601 = vld [vmem:[%s4512 + $0x210] sm:$0xff]
    %v4602 = vld [vmem:[%s4512 + $0x218] sm:$0xf]
    %v4603 = vld [vmem:[%s4512 + $0x21c] sm:$0xff]
    %v4604 = vld [vmem:[%s4512 + $0x224] sm:$0xf]
    %v4605 = vld [vmem:[%s4512 + $0x228] sm:$0xff]
    %v4606 = vld [vmem:[%s4512 + $0x230] sm:$0xf]
    %v4607 = vld [vmem:[%s4512 + $0x234] sm:$0xff]
    %v4608 = vld [vmem:[%s4512 + $0x23c] sm:$0xf]
    %s4609 = scalar_lea.vmem %s13, 3
    %v4610 = vld [vmem:[%s4609] sm:$0x7]
    %v4612 = vlaneseq
    %v4613 = vshrl.u32 %v4612, 7
    %v4614 = vsub.s32 0, %v4613
    %v4615 = vrot.slane %v4610, %v4614
    %v4616 = vlaneseq
    %v4617 = vshrl.u32 %v4616, 7
    %v4618 = vsub.s32 1, %v4617
    %v4619 = vrot.slane %v4610, %v4618
    %v4620 = vlaneseq
    %v4621 = vshrl.u32 %v4620, 7
    %v4622 = vsub.s32 2, %v4621
    %v4623 = vrot.slane %v4610, %v4622
    %v4723 = vunpack.c.l.b16 %v4513
    %v4724 = vunpack.c.h.b16 %v4513
    %v4725 = vunpack.c.l.b16 %v4514
    %v4726 = vunpack.c.l.b16 %v4515
    %v4727 = vunpack.c.h.b16 %v4515
    %v4728 = vunpack.c.l.b16 %v4516
    %v4729 = vunpack.c.l.b16 %v4517
    %v4730 = vunpack.c.h.b16 %v4517
    %v4731 = vunpack.c.l.b16 %v4518
    %v4732 = vunpack.c.l.b16 %v4519
    %v4733 = vunpack.c.h.b16 %v4519
    %v4734 = vunpack.c.l.b16 %v4520
    %v4735 = vunpack.c.l.b16 %v4521
    %v4736 = vunpack.c.h.b16 %v4521
    %v4737 = vunpack.c.l.b16 %v4522
    %v4738 = vunpack.c.l.b16 %v4523
    %v4739 = vunpack.c.h.b16 %v4523
    %v4740 = vunpack.c.l.b16 %v4524
    %v4741 = vunpack.c.l.b16 %v4525
    %v4742 = vunpack.c.h.b16 %v4525
    %v4743 = vunpack.c.l.b16 %v4526
    %v4744 = vunpack.c.l.b16 %v4527
    %v4745 = vunpack.c.h.b16 %v4527
    %v4746 = vunpack.c.l.b16 %v4528
    %v4747 = vunpack.c.l.b16 %v4529
    %v4748 = vunpack.c.h.b16 %v4529
    %v4749 = vunpack.c.l.b16 %v4530
    %v4750 = vunpack.c.l.b16 %v4531
    %v4751 = vunpack.c.h.b16 %v4531
    %v4752 = vunpack.c.l.b16 %v4532
    %v4753 = vunpack.c.l.b16 %v4533
    %v4754 = vunpack.c.h.b16 %v4533
    %v4755 = vunpack.c.l.b16 %v4534
    %v4756 = vunpack.c.l.b16 %v4535
    %v4757 = vunpack.c.h.b16 %v4535
    %v4758 = vunpack.c.l.b16 %v4536
    %v4759 = vunpack.c.l.b16 %v4537
    %v4760 = vunpack.c.h.b16 %v4537
    %v4761 = vunpack.c.l.b16 %v4538
    %v4762 = vunpack.c.l.b16 %v4539
    %v4763 = vunpack.c.h.b16 %v4539
    %v4764 = vunpack.c.l.b16 %v4540
    %v4765 = vunpack.c.l.b16 %v4541
    %v4766 = vunpack.c.h.b16 %v4541
    %v4767 = vunpack.c.l.b16 %v4542
    %v4768 = vunpack.c.l.b16 %v4543
    %v4769 = vunpack.c.h.b16 %v4543
    %v4770 = vunpack.c.l.b16 %v4544
    %v4771 = vunpack.c.l.b16 %v4545
    %v4772 = vunpack.c.h.b16 %v4545
    %v4773 = vunpack.c.l.b16 %v4546
    %v4774 = vunpack.c.l.b16 %v4547
    %v4775 = vunpack.c.h.b16 %v4547
    %v4776 = vunpack.c.l.b16 %v4548
    %v4777 = vunpack.c.l.b16 %v4549
    %v4778 = vunpack.c.h.b16 %v4549
    %v4779 = vunpack.c.l.b16 %v4550
    %v4780 = vunpack.c.l.b16 %v4551
    %v4781 = vunpack.c.h.b16 %v4551
    %v4782 = vunpack.c.l.b16 %v4552
    %v4783 = vunpack.c.l.b16 %v4553
    %v4784 = vunpack.c.h.b16 %v4553
    %v4785 = vunpack.c.l.b16 %v4554
    %v4786 = vunpack.c.l.b16 %v4555
    %v4787 = vunpack.c.h.b16 %v4555
    %v4788 = vunpack.c.l.b16 %v4556
    %v4789 = vunpack.c.l.b16 %v4557
    %v4790 = vunpack.c.h.b16 %v4557
    %v4791 = vunpack.c.l.b16 %v4558
    %v4792 = vunpack.c.l.b16 %v4559
    %v4793 = vunpack.c.h.b16 %v4559
    %v4794 = vunpack.c.l.b16 %v4560
    %v4795 = vunpack.c.l.b16 %v4561
    %v4796 = vunpack.c.h.b16 %v4561
    %v4797 = vunpack.c.l.b16 %v4562
    %v4798 = vunpack.c.l.b16 %v4563
    %v4799 = vunpack.c.h.b16 %v4563
    %v4800 = vunpack.c.l.b16 %v4564
    %v4801 = vunpack.c.l.b16 %v4565
    %v4802 = vunpack.c.h.b16 %v4565
    %v4803 = vunpack.c.l.b16 %v4566
    %v4804 = vunpack.c.l.b16 %v4567
    %v4805 = vunpack.c.h.b16 %v4567
    %v4806 = vunpack.c.l.b16 %v4568
    %v4807 = vunpack.c.l.b16 %v4569
    %v4808 = vunpack.c.h.b16 %v4569
    %v4809 = vunpack.c.l.b16 %v4570
    %v4810 = vunpack.c.l.b16 %v4571
    %v4811 = vunpack.c.h.b16 %v4571
    %v4812 = vunpack.c.l.b16 %v4572
    %v4813 = vunpack.c.l.b16 %v4573
    %v4814 = vunpack.c.h.b16 %v4573
    %v4815 = vunpack.c.l.b16 %v4574
    %v4816 = vunpack.c.l.b16 %v4575
    %v4817 = vunpack.c.h.b16 %v4575
    %v4818 = vunpack.c.l.b16 %v4576
    %v4819 = vunpack.c.l.b16 %v4577
    %v4820 = vunpack.c.h.b16 %v4577
    %v4821 = vunpack.c.l.b16 %v4578
    %v4822 = vunpack.c.l.b16 %v4579
    %v4823 = vunpack.c.h.b16 %v4579
    %v4824 = vunpack.c.l.b16 %v4580
    %v4825 = vunpack.c.l.b16 %v4581
    %v4826 = vunpack.c.h.b16 %v4581
    %v4827 = vunpack.c.l.b16 %v4582
    %v4828 = vunpack.c.l.b16 %v4583
    %v4829 = vunpack.c.h.b16 %v4583
    %v4830 = vunpack.c.l.b16 %v4584
    %v4831 = vunpack.c.l.b16 %v4585
    %v4832 = vunpack.c.h.b16 %v4585
    %v4833 = vunpack.c.l.b16 %v4586
    %v4834 = vunpack.c.l.b16 %v4587
    %v4835 = vunpack.c.h.b16 %v4587
    %v4836 = vunpack.c.l.b16 %v4588
    %v4837 = vunpack.c.l.b16 %v4589
    %v4838 = vunpack.c.h.b16 %v4589
    %v4839 = vunpack.c.l.b16 %v4590
    %v4840 = vunpack.c.l.b16 %v4591
    %v4841 = vunpack.c.h.b16 %v4591
    %v4842 = vunpack.c.l.b16 %v4592
    %v4843 = vunpack.c.l.b16 %v4593
    %v4844 = vunpack.c.h.b16 %v4593
    %v4845 = vunpack.c.l.b16 %v4594
    %v4846 = vunpack.c.l.b16 %v4595
    %v4847 = vunpack.c.h.b16 %v4595
    %v4848 = vunpack.c.l.b16 %v4596
    %v4849 = vunpack.c.l.b16 %v4597
    %v4850 = vunpack.c.h.b16 %v4597
    %v4851 = vunpack.c.l.b16 %v4598
    %v4852 = vunpack.c.l.b16 %v4599
    %v4853 = vunpack.c.h.b16 %v4599
    %v4854 = vunpack.c.l.b16 %v4600
    %v4855 = vunpack.c.l.b16 %v4601
    %v4856 = vunpack.c.h.b16 %v4601
    %v4857 = vunpack.c.l.b16 %v4602
    %v4858 = vunpack.c.l.b16 %v4603
    %v4859 = vunpack.c.h.b16 %v4603
    %v4860 = vunpack.c.l.b16 %v4604
    %v4861 = vunpack.c.l.b16 %v4605
    %v4862 = vunpack.c.h.b16 %v4605
    %v4863 = vunpack.c.l.b16 %v4606
    %v4864 = vunpack.c.l.b16 %v4607
    %v4865 = vunpack.c.h.b16 %v4607
    %v4866 = vunpack.c.l.b16 %v4608
    %v4867 = vpack.c.b16 %v4726, %v4723
    %v4868 = vpack.c.b16 %v4727, %v4724
    %v4869 = vpack.c.b16 %v4728, %v4725
    %v4870 = vpack.c.b16 %v4732, %v4729
    %v4871 = vpack.c.b16 %v4733, %v4730
    %v4872 = vpack.c.b16 %v4734, %v4731
    %v4873 = vpack.c.b16 %v4738, %v4735
    %v4874 = vpack.c.b16 %v4739, %v4736
    %v4875 = vpack.c.b16 %v4740, %v4737
    %v4876 = vpack.c.b16 %v4744, %v4741
    %v4877 = vpack.c.b16 %v4745, %v4742
    %v4878 = vpack.c.b16 %v4746, %v4743
    %v4879 = vpack.c.b16 %v4750, %v4747
    %v4880 = vpack.c.b16 %v4751, %v4748
    %v4881 = vpack.c.b16 %v4752, %v4749
    %v4882 = vpack.c.b16 %v4756, %v4753
    %v4883 = vpack.c.b16 %v4757, %v4754
    %v4884 = vpack.c.b16 %v4758, %v4755
    %v4885 = vpack.c.b16 %v4762, %v4759
    %v4886 = vpack.c.b16 %v4763, %v4760
    %v4887 = vpack.c.b16 %v4764, %v4761
    %v4888 = vpack.c.b16 %v4768, %v4765
    %v4889 = vpack.c.b16 %v4769, %v4766
    %v4890 = vpack.c.b16 %v4770, %v4767
    %v4891 = vpack.c.b16 %v4774, %v4771
    %v4892 = vpack.c.b16 %v4775, %v4772
    %v4893 = vpack.c.b16 %v4776, %v4773
    %v4894 = vpack.c.b16 %v4780, %v4777
    %v4895 = vpack.c.b16 %v4781, %v4778
    %v4896 = vpack.c.b16 %v4782, %v4779
    %v4897 = vpack.c.b16 %v4786, %v4783
    %v4898 = vpack.c.b16 %v4787, %v4784
    %v4899 = vpack.c.b16 %v4788, %v4785
    %v4900 = vpack.c.b16 %v4792, %v4789
    %v4901 = vpack.c.b16 %v4793, %v4790
    %v4902 = vpack.c.b16 %v4794, %v4791
    %v4903 = vpack.c.b16 %v4798, %v4795
    %v4904 = vpack.c.b16 %v4799, %v4796
    %v4905 = vpack.c.b16 %v4800, %v4797
    %v4906 = vpack.c.b16 %v4804, %v4801
    %v4907 = vpack.c.b16 %v4805, %v4802
    %v4908 = vpack.c.b16 %v4806, %v4803
    %v4909 = vpack.c.b16 %v4810, %v4807
    %v4910 = vpack.c.b16 %v4811, %v4808
    %v4911 = vpack.c.b16 %v4812, %v4809
    %v4912 = vpack.c.b16 %v4816, %v4813
    %v4913 = vpack.c.b16 %v4817, %v4814
    %v4914 = vpack.c.b16 %v4818, %v4815
    %v4915 = vpack.c.b16 %v4822, %v4819
    %v4916 = vpack.c.b16 %v4823, %v4820
    %v4917 = vpack.c.b16 %v4824, %v4821
    %v4918 = vpack.c.b16 %v4828, %v4825
    %v4919 = vpack.c.b16 %v4829, %v4826
    %v4920 = vpack.c.b16 %v4830, %v4827
    %v4921 = vpack.c.b16 %v4834, %v4831
    %v4922 = vpack.c.b16 %v4835, %v4832
    %v4923 = vpack.c.b16 %v4836, %v4833
    %v4924 = vpack.c.b16 %v4840, %v4837
    %v4925 = vpack.c.b16 %v4841, %v4838
    %v4926 = vpack.c.b16 %v4842, %v4839
    %v4927 = vpack.c.b16 %v4846, %v4843
    %v4928 = vpack.c.b16 %v4847, %v4844
    %v4929 = vpack.c.b16 %v4848, %v4845
    %v4930 = vpack.c.b16 %v4852, %v4849
    %v4931 = vpack.c.b16 %v4853, %v4850
    %v4932 = vpack.c.b16 %v4854, %v4851
    %v4933 = vpack.c.b16 %v4858, %v4855
    %v4934 = vpack.c.b16 %v4859, %v4856
    %v4935 = vpack.c.b16 %v4860, %v4857
    %v4936 = vpack.c.b16 %v4864, %v4861
    %v4937 = vpack.c.b16 %v4865, %v4862
    %v4938 = vpack.c.b16 %v4866, %v4863
    %5011 = vmatprep.subr.bf16.mxu0 %v4868
    %5012 = vmatpush1.bf16.msra.mxu0 %v4867
    %5013 = vmatprep.subr.bf16.mxu0 %v4871
    %5014 = vmatpush1.bf16.msra.mxu0 %v4870
    %5015 = vmatprep.subr.bf16.mxu0 %v4874
    %5016 = vmatpush1.bf16.msra.mxu0 %v4873
    %5017 = vmatprep.subr.bf16.mxu0 %v4877
    %5018 = vmatpush1.bf16.msra.mxu0 %v4876
    %5019 = vmatprep.subr.bf16.mxu0 %v4880
    %5020 = vmatpush1.bf16.msra.mxu0 %v4879
    %5021 = vmatprep.subr.bf16.mxu0 %v4883
    %5022 = vmatpush1.bf16.msra.mxu0 %v4882
    %5023 = vmatprep.subr.bf16.mxu0 %v4886
    %5024 = vmatpush1.bf16.msra.mxu0 %v4885
    %5025 = vmatprep.subr.bf16.mxu0 %v4889
    %5026 = vmatpush1.bf16.msra.mxu0 %v4888
    %5027 = vmatprep.subr.bf16.mxu0 %v4892
    %5028 = vmatpush1.bf16.msra.mxu0 %v4891
    %5029 = vmatprep.subr.bf16.mxu0 %v4895
    %5030 = vmatpush1.bf16.msra.mxu0 %v4894
    %5031 = vmatprep.subr.bf16.mxu0 %v4898
    %5032 = vmatpush1.bf16.msra.mxu0 %v4897
    %5033 = vmatprep.subr.bf16.mxu0 %v4901
    %5034 = vmatpush1.bf16.msra.mxu0 %v4900
    %5035 = vmatprep.subr.bf16.mxu0 %v4904
    %5036 = vmatpush1.bf16.msra.mxu0 %v4903
    %5037 = vmatprep.subr.bf16.mxu0 %v4907
    %5038 = vmatpush1.bf16.msra.mxu0 %v4906
    %5039 = vmatprep.subr.bf16.mxu0 %v4910
    %5040 = vmatpush1.bf16.msra.mxu0 %v4909
    %5041 = vmatprep.subr.bf16.mxu0 %v4913
    %5042 = vmatpush1.bf16.msra.mxu0 %v4912
    %5043 = vmatprep.mubr.bf16.mxu0 %v4510
    %5044 = vmatmul.mubr.bf16.gmra.mrb[0].mxu0 %v4509
    %v5045 = vpop.f32.mrb[0].mxu0
    %v5046 = vadd.f32 %v4615, %v5045
    %v5047 = vpop.f32.mrb[0].mxu0
    %v5048 = vadd.f32 %v4619, %v5047
    %v5049 = vpop.f32.mrb[0].mxu0
    %v5050 = vpop.f32.mrb[0].mxu0
    %5051 = vdwg.mxu0
    %5052 = vmatprep.subr.bf16.mxu0 %v4916
    %5053 = vmatpush1.bf16.msra.mxu0 %v4915
    %5054 = vmatprep.subr.bf16.mxu0 %v4919
    %5055 = vmatpush1.bf16.msra.mxu0 %v4918
    %5056 = vmatprep.subr.bf16.mxu0 %v4922
    %5057 = vmatpush1.bf16.msra.mxu0 %v4921
    %5058 = vmatprep.subr.bf16.mxu0 %v4925
    %5059 = vmatpush1.bf16.msra.mxu0 %v4924
    %5060 = vmatprep.subr.bf16.mxu0 %v4928
    %5061 = vmatpush1.bf16.msra.mxu0 %v4927
    %5062 = vmatprep.subr.bf16.mxu0 %v4931
    %5063 = vmatpush1.bf16.msra.mxu0 %v4930
    %5064 = vmatprep.subr.bf16.mxu0 %v4934
    %5065 = vmatpush1.bf16.msra.mxu0 %v4933
    %5066 = vmatprep.subr.bf16.mxu0 %v4937
    %5067 = vmatpush1.bf16.msra.mxu0 %v4936
    %5068 = vmatprep.subr.bf16.mxu0 0
    %5069 = vmatpush1.bf16.msra.mxu0 0
    %5070 = vmatprep.subr.bf16.mxu0 0
    %5071 = vmatpush1.bf16.msra.mxu0 0
    %5072 = vmatprep.subr.bf16.mxu0 0
    %5073 = vmatpush1.bf16.msra.mxu0 0
    %5074 = vmatprep.subr.bf16.mxu0 0
    %5075 = vmatpush1.bf16.msra.mxu0 0
    %5076 = vmatprep.subr.bf16.mxu0 0
    %5077 = vmatpush1.bf16.msra.mxu0 0
    %5078 = vmatprep.subr.bf16.mxu0 0
    %5079 = vmatpush1.bf16.msra.mxu0 0
    %5080 = vmatprep.subr.bf16.mxu0 0
    %5081 = vmatpush1.bf16.msra.mxu0 0
    %5082 = vmatprep.subr.bf16.mxu0 0
    %5083 = vmatpush1.bf16.msra.mxu0 0
    %5084 = vmatprep.mubr.bf16.mxu0 0
    %5085 = vmatmul.mubr.bf16.gmra.mrb[0].mxu0 %v4511
    %v5086 = vpop.f32.mrb[0].mxu0
    %v5087 = vadd.f32 %v5046, %v5086
    %v5088 = vpop.f32.mrb[0].mxu0
    %v5089 = vadd.f32 %v5048, %v5088
    %v5090 = vpop.f32.mrb[0].mxu0
    %v5091 = vpop.f32.mrb[0].mxu0
    %5092 = vdwg.mxu0
    %5093 = vmatprep.subr.bf16.mxu0 0
    %5094 = vmatpush1.bf16.msra.mxu0 %v4869
    %5095 = vmatprep.subr.bf16.mxu0 0
    %5096 = vmatpush1.bf16.msra.mxu0 %v4872
    %5097 = vmatprep.subr.bf16.mxu0 0
    %5098 = vmatpush1.bf16.msra.mxu0 %v4875
    %5099 = vmatprep.subr.bf16.mxu0 0
    %5100 = vmatpush1.bf16.msra.mxu0 %v4878
    %5101 = vmatprep.subr.bf16.mxu0 0
    %5102 = vmatpush1.bf16.msra.mxu0 %v4881
    %5103 = vmatprep.subr.bf16.mxu0 0
    %5104 = vmatpush1.bf16.msra.mxu0 %v4884
    %5105 = vmatprep.subr.bf16.mxu0 0
    %5106 = vmatpush1.bf16.msra.mxu0 %v4887
    %5107 = vmatprep.subr.bf16.mxu0 0
    %5108 = vmatpush1.bf16.msra.mxu0 %v4890
    %5109 = vmatprep.subr.bf16.mxu0 0
    %5110 = vmatpush1.bf16.msra.mxu0 %v4893
    %5111 = vmatprep.subr.bf16.mxu0 0
    %5112 = vmatpush1.bf16.msra.mxu0 %v4896
    %5113 = vmatprep.subr.bf16.mxu0 0
    %5114 = vmatpush1.bf16.msra.mxu0 %v4899
    %5115 = vmatprep.subr.bf16.mxu0 0
    %5116 = vmatpush1.bf16.msra.mxu0 %v4902
    %5117 = vmatprep.subr.bf16.mxu0 0
    %5118 = vmatpush1.bf16.msra.mxu0 %v4905
    %5119 = vmatprep.subr.bf16.mxu0 0
    %5120 = vmatpush1.bf16.msra.mxu0 %v4908
    %5121 = vmatprep.subr.bf16.mxu0 0
    %5122 = vmatpush1.bf16.msra.mxu0 %v4911
    %5123 = vmatprep.subr.bf16.mxu0 0
    %5124 = vmatpush1.bf16.msra.mxu0 %v4914
    %5125 = vmatprep.mubr.bf16.mxu0 %v4510
    %5126 = vmatmul.mubr.bf16.gmra.mrb[0].mxu0 %v4509
    %v5127 = vpop.f32.mrb[0].mxu0
    %v5128 = vadd.f32 %v4623, %v5127
    %v5129 = vpop.f32.mrb[0].mxu0
    %v5130 = vpop.f32.mrb[0].mxu0
    %v5131 = vpop.f32.mrb[0].mxu0
    %5132 = vdwg.mxu0
    %5133 = vmatprep.subr.bf16.mxu0 0
    %5134 = vmatpush1.bf16.msra.mxu0 %v4917
    %5135 = vmatprep.subr.bf16.mxu0 0
    %5136 = vmatpush1.bf16.msra.mxu0 %v4920
    %5137 = vmatprep.subr.bf16.mxu0 0
    %5138 = vmatpush1.bf16.msra.mxu0 %v4923
    %5139 = vmatprep.subr.bf16.mxu0 0
    %5140 = vmatpush1.bf16.msra.mxu0 %v4926
    %5141 = vmatprep.subr.bf16.mxu0 0
    %5142 = vmatpush1.bf16.msra.mxu0 %v4929
    %5143 = vmatprep.subr.bf16.mxu0 0
    %5144 = vmatpush1.bf16.msra.mxu0 %v4932
    %5145 = vmatprep.subr.bf16.mxu0 0
    %5146 = vmatpush1.bf16.msra.mxu0 %v4935
    %5147 = vmatprep.subr.bf16.mxu0 0
    %5148 = vmatpush1.bf16.msra.mxu0 %v4938
    %5149 = vmatprep.subr.bf16.mxu0 0
    %5150 = vmatpush1.bf16.msra.mxu0 0
    %5151 = vmatprep.subr.bf16.mxu0 0
    %5152 = vmatpush1.bf16.msra.mxu0 0
    %5153 = vmatprep.subr.bf16.mxu0 0
    %5154 = vmatpush1.bf16.msra.mxu0 0
    %5155 = vmatprep.subr.bf16.mxu0 0
    %5156 = vmatpush1.bf16.msra.mxu0 0
    %5157 = vmatprep.subr.bf16.mxu0 0
    %5158 = vmatpush1.bf16.msra.mxu0 0
    %5159 = vmatprep.subr.bf16.mxu0 0
    %5160 = vmatpush1.bf16.msra.mxu0 0
    %5161 = vmatprep.subr.bf16.mxu0 0
    %5162 = vmatpush1.bf16.msra.mxu0 0
    %5163 = vmatprep.subr.bf16.mxu0 0
    %5164 = vmatpush1.bf16.msra.mxu0 0
    %5165 = vmatprep.mubr.bf16.mxu0 0
    %5166 = vmatmul.mubr.bf16.gmra.mrb[0].mxu0 %v4511
    %v5167 = vpop.f32.mrb[0].mxu0
    %v5168 = vadd.f32 %v5128, %v5167
    %v5169 = vpop.f32.mrb[0].mxu0
    %v5170 = vpop.f32.mrb[0].mxu0
    %v5171 = vpop.f32.mrb[0].mxu0
    %5172 = vdwg.mxu0
    %v5173 = vmax.f32 %v5087, 0.0
    %v5174 = vmax.f32 %v5089, 0.0
    %v5175 = vmax.f32 %v5168, 0.0
    %v5176 = vpack.c.bf16 %v5173, %v5173
    %v5177 = vpack.c.bf16 %v5174, %v5174
    %v5178 = vpack.c.bf16 %v5175, %v5175
    %s5179 = scalar_lea.vmem %s12, 1152
    %v5180 = vld [vmem:[%s5179] sm:$0xff]
    %v5181 = vld [vmem:[%s5179 + $0x8] sm:$0xf]
    %v5182 = vld [vmem:[%s5179 + $0xc] sm:$0xff]
    %v5183 = vld [vmem:[%s5179 + $0x14] sm:$0xf]
    %v5184 = vld [vmem:[%s5179 + $0x18] sm:$0xff]
    %v5185 = vld [vmem:[%s5179 + $0x20] sm:$0xf]
    %v5186 = vld [vmem:[%s5179 + $0x24] sm:$0xff]
    %v5187 = vld [vmem:[%s5179 + $0x2c] sm:$0xf]
    %v5188 = vld [vmem:[%s5179 + $0x30] sm:$0xff]
    %v5189 = vld [vmem:[%s5179 + $0x38] sm:$0xf]
    %v5190 = vld [vmem:[%s5179 + $0x3c] sm:$0xff]
    %v5191 = vld [vmem:[%s5179 + $0x44] sm:$0xf]
    %v5192 = vld [vmem:[%s5179 + $0x48] sm:$0xff]
    %v5193 = vld [vmem:[%s5179 + $0x50] sm:$0xf]
    %v5194 = vld [vmem:[%s5179 + $0x54] sm:$0xff]
    %v5195 = vld [vmem:[%s5179 + $0x5c] sm:$0xf]
    %v5196 = vld [vmem:[%s5179 + $0x60] sm:$0xff]
    %v5197 = vld [vmem:[%s5179 + $0x68] sm:$0xf]
    %v5198 = vld [vmem:[%s5179 + $0x6c] sm:$0xff]
    %v5199 = vld [vmem:[%s5179 + $0x74] sm:$0xf]
    %v5200 = vld [vmem:[%s5179 + $0x78] sm:$0xff]
    %v5201 = vld [vmem:[%s5179 + $0x80] sm:$0xf]
    %v5202 = vld [vmem:[%s5179 + $0x84] sm:$0xff]
    %v5203 = vld [vmem:[%s5179 + $0x8c] sm:$0xf]
    %v5204 = vld [vmem:[%s5179 + $0x90] sm:$0xff]
    %v5205 = vld [vmem:[%s5179 + $0x98] sm:$0xf]
    %v5206 = vld [vmem:[%s5179 + $0x9c] sm:$0xff]
    %v5207 = vld [vmem:[%s5179 + $0xa4] sm:$0xf]
    %v5208 = vld [vmem:[%s5179 + $0xa8] sm:$0xff]
    %v5209 = vld [vmem:[%s5179 + $0xb0] sm:$0xf]
    %v5210 = vld [vmem:[%s5179 + $0xb4] sm:$0xff]
    %v5211 = vld [vmem:[%s5179 + $0xbc] sm:$0xf]
    %v5212 = vld [vmem:[%s5179 + $0xc0] sm:$0xff]
    %v5213 = vld [vmem:[%s5179 + $0xc8] sm:$0xf]
    %v5214 = vld [vmem:[%s5179 + $0xcc] sm:$0xff]
    %v5215 = vld [vmem:[%s5179 + $0xd4] sm:$0xf]
    %v5216 = vld [vmem:[%s5179 + $0xd8] sm:$0xff]
    %v5217 = vld [vmem:[%s5179 + $0xe0] sm:$0xf]
    %v5218 = vld [vmem:[%s5179 + $0xe4] sm:$0xff]
    %v5219 = vld [vmem:[%s5179 + $0xec] sm:$0xf]
    %v5220 = vld [vmem:[%s5179 + $0xf0] sm:$0xff]
    %v5221 = vld [vmem:[%s5179 + $0xf8] sm:$0xf]
    %v5222 = vld [vmem:[%s5179 + $0xfc] sm:$0xff]
    %v5223 = vld [vmem:[%s5179 + $0x104] sm:$0xf]
    %v5224 = vld [vmem:[%s5179 + $0x108] sm:$0xff]
    %v5225 = vld [vmem:[%s5179 + $0x110] sm:$0xf]
    %v5226 = vld [vmem:[%s5179 + $0x114] sm:$0xff]
    %v5227 = vld [vmem:[%s5179 + $0x11c] sm:$0xf]
    %v5228 = vld [vmem:[%s5179 + $0x120] sm:$0xff]
    %v5229 = vld [vmem:[%s5179 + $0x128] sm:$0xf]
    %v5230 = vld [vmem:[%s5179 + $0x12c] sm:$0xff]
    %v5231 = vld [vmem:[%s5179 + $0x134] sm:$0xf]
    %v5232 = vld [vmem:[%s5179 + $0x138] sm:$0xff]
    %v5233 = vld [vmem:[%s5179 + $0x140] sm:$0xf]
    %v5234 = vld [vmem:[%s5179 + $0x144] sm:$0xff]
    %v5235 = vld [vmem:[%s5179 + $0x14c] sm:$0xf]
    %v5236 = vld [vmem:[%s5179 + $0x150] sm:$0xff]
    %v5237 = vld [vmem:[%s5179 + $0x158] sm:$0xf]
    %v5238 = vld [vmem:[%s5179 + $0x15c] sm:$0xff]
    %v5239 = vld [vmem:[%s5179 + $0x164] sm:$0xf]
    %v5240 = vld [vmem:[%s5179 + $0x168] sm:$0xff]
    %v5241 = vld [vmem:[%s5179 + $0x170] sm:$0xf]
    %v5242 = vld [vmem:[%s5179 + $0x174] sm:$0xff]
    %v5243 = vld [vmem:[%s5179 + $0x17c] sm:$0xf]
    %v5244 = vld [vmem:[%s5179 + $0x180] sm:$0xff]
    %v5245 = vld [vmem:[%s5179 + $0x188] sm:$0xf]
    %v5246 = vld [vmem:[%s5179 + $0x18c] sm:$0xff]
    %v5247 = vld [vmem:[%s5179 + $0x194] sm:$0xf]
    %v5248 = vld [vmem:[%s5179 + $0x198] sm:$0xff]
    %v5249 = vld [vmem:[%s5179 + $0x1a0] sm:$0xf]
    %v5250 = vld [vmem:[%s5179 + $0x1a4] sm:$0xff]
    %v5251 = vld [vmem:[%s5179 + $0x1ac] sm:$0xf]
    %v5252 = vld [vmem:[%s5179 + $0x1b0] sm:$0xff]
    %v5253 = vld [vmem:[%s5179 + $0x1b8] sm:$0xf]
    %v5254 = vld [vmem:[%s5179 + $0x1bc] sm:$0xff]
    %v5255 = vld [vmem:[%s5179 + $0x1c4] sm:$0xf]
    %v5256 = vld [vmem:[%s5179 + $0x1c8] sm:$0xff]
    %v5257 = vld [vmem:[%s5179 + $0x1d0] sm:$0xf]
    %v5258 = vld [vmem:[%s5179 + $0x1d4] sm:$0xff]
    %v5259 = vld [vmem:[%s5179 + $0x1dc] sm:$0xf]
    %v5260 = vld [vmem:[%s5179 + $0x1e0] sm:$0xff]
    %v5261 = vld [vmem:[%s5179 + $0x1e8] sm:$0xf]
    %v5262 = vld [vmem:[%s5179 + $0x1ec] sm:$0xff]
    %v5263 = vld [vmem:[%s5179 + $0x1f4] sm:$0xf]
    %v5264 = vld [vmem:[%s5179 + $0x1f8] sm:$0xff]
    %v5265 = vld [vmem:[%s5179 + $0x200] sm:$0xf]
    %v5266 = vld [vmem:[%s5179 + $0x204] sm:$0xff]
    %v5267 = vld [vmem:[%s5179 + $0x20c] sm:$0xf]
    %v5268 = vld [vmem:[%s5179 + $0x210] sm:$0xff]
    %v5269 = vld [vmem:[%s5179 + $0x218] sm:$0xf]
    %v5270 = vld [vmem:[%s5179 + $0x21c] sm:$0xff]
    %v5271 = vld [vmem:[%s5179 + $0x224] sm:$0xf]
    %v5272 = vld [vmem:[%s5179 + $0x228] sm:$0xff]
    %v5273 = vld [vmem:[%s5179 + $0x230] sm:$0xf]
    %v5274 = vld [vmem:[%s5179 + $0x234] sm:$0xff]
    %v5275 = vld [vmem:[%s5179 + $0x23c] sm:$0xf]
    %s5276 = scalar_lea.vmem %s13, 6
    %v5277 = vld [vmem:[%s5276] sm:$0x7]
    %v5279 = vlaneseq
    %v5280 = vshrl.u32 %v5279, 7
    %v5281 = vsub.s32 0, %v5280
    %v5282 = vrot.slane %v5277, %v5281
    %v5283 = vlaneseq
    %v5284 = vshrl.u32 %v5283, 7
    %v5285 = vsub.s32 1, %v5284
    %v5286 = vrot.slane %v5277, %v5285
    %v5287 = vlaneseq
    %v5288 = vshrl.u32 %v5287, 7
    %v5289 = vsub.s32 2, %v5288
    %v5290 = vrot.slane %v5277, %v5289
    %v5390 = vunpack.c.l.b16 %v5180
    %v5391 = vunpack.c.h.b16 %v5180
    %v5392 = vunpack.c.l.b16 %v5181
    %v5393 = vunpack.c.l.b16 %v5182
    %v5394 = vunpack.c.h.b16 %v5182
    %v5395 = vunpack.c.l.b16 %v5183
    %v5396 = vunpack.c.l.b16 %v5184
    %v5397 = vunpack.c.h.b16 %v5184
    %v5398 = vunpack.c.l.b16 %v5185
    %v5399 = vunpack.c.l.b16 %v5186
    %v5400 = vunpack.c.h.b16 %v5186
    %v5401 = vunpack.c.l.b16 %v5187
    %v5402 = vunpack.c.l.b16 %v5188
    %v5403 = vunpack.c.h.b16 %v5188
    %v5404 = vunpack.c.l.b16 %v5189
    %v5405 = vunpack.c.l.b16 %v5190
    %v5406 = vunpack.c.h.b16 %v5190
    %v5407 = vunpack.c.l.b16 %v5191
    %v5408 = vunpack.c.l.b16 %v5192
    %v5409 = vunpack.c.h.b16 %v5192
    %v5410 = vunpack.c.l.b16 %v5193
    %v5411 = vunpack.c.l.b16 %v5194
    %v5412 = vunpack.c.h.b16 %v5194
    %v5413 = vunpack.c.l.b16 %v5195
    %v5414 = vunpack.c.l.b16 %v5196
    %v5415 = vunpack.c.h.b16 %v5196
    %v5416 = vunpack.c.l.b16 %v5197
    %v5417 = vunpack.c.l.b16 %v5198
    %v5418 = vunpack.c.h.b16 %v5198
    %v5419 = vunpack.c.l.b16 %v5199
    %v5420 = vunpack.c.l.b16 %v5200
    %v5421 = vunpack.c.h.b16 %v5200
    %v5422 = vunpack.c.l.b16 %v5201
    %v5423 = vunpack.c.l.b16 %v5202
    %v5424 = vunpack.c.h.b16 %v5202
    %v5425 = vunpack.c.l.b16 %v5203
    %v5426 = vunpack.c.l.b16 %v5204
    %v5427 = vunpack.c.h.b16 %v5204
    %v5428 = vunpack.c.l.b16 %v5205
    %v5429 = vunpack.c.l.b16 %v5206
    %v5430 = vunpack.c.h.b16 %v5206
    %v5431 = vunpack.c.l.b16 %v5207
    %v5432 = vunpack.c.l.b16 %v5208
    %v5433 = vunpack.c.h.b16 %v5208
    %v5434 = vunpack.c.l.b16 %v5209
    %v5435 = vunpack.c.l.b16 %v5210
    %v5436 = vunpack.c.h.b16 %v5210
    %v5437 = vunpack.c.l.b16 %v5211
    %v5438 = vunpack.c.l.b16 %v5212
    %v5439 = vunpack.c.h.b16 %v5212
    %v5440 = vunpack.c.l.b16 %v5213
    %v5441 = vunpack.c.l.b16 %v5214
    %v5442 = vunpack.c.h.b16 %v5214
    %v5443 = vunpack.c.l.b16 %v5215
    %v5444 = vunpack.c.l.b16 %v5216
    %v5445 = vunpack.c.h.b16 %v5216
    %v5446 = vunpack.c.l.b16 %v5217
    %v5447 = vunpack.c.l.b16 %v5218
    %v5448 = vunpack.c.h.b16 %v5218
    %v5449 = vunpack.c.l.b16 %v5219
    %v5450 = vunpack.c.l.b16 %v5220
    %v5451 = vunpack.c.h.b16 %v5220
    %v5452 = vunpack.c.l.b16 %v5221
    %v5453 = vunpack.c.l.b16 %v5222
    %v5454 = vunpack.c.h.b16 %v5222
    %v5455 = vunpack.c.l.b16 %v5223
    %v5456 = vunpack.c.l.b16 %v5224
    %v5457 = vunpack.c.h.b16 %v5224
    %v5458 = vunpack.c.l.b16 %v5225
    %v5459 = vunpack.c.l.b16 %v5226
    %v5460 = vunpack.c.h.b16 %v5226
    %v5461 = vunpack.c.l.b16 %v5227
    %v5462 = vunpack.c.l.b16 %v5228
    %v5463 = vunpack.c.h.b16 %v5228
    %v5464 = vunpack.c.l.b16 %v5229
    %v5465 = vunpack.c.l.b16 %v5230
    %v5466 = vunpack.c.h.b16 %v5230
    %v5467 = vunpack.c.l.b16 %v5231
    %v5468 = vunpack.c.l.b16 %v5232
    %v5469 = vunpack.c.h.b16 %v5232
    %v5470 = vunpack.c.l.b16 %v5233
    %v5471 = vunpack.c.l.b16 %v5234
    %v5472 = vunpack.c.h.b16 %v5234
    %v5473 = vunpack.c.l.b16 %v5235
    %v5474 = vunpack.c.l.b16 %v5236
    %v5475 = vunpack.c.h.b16 %v5236
    %v5476 = vunpack.c.l.b16 %v5237
    %v5477 = vunpack.c.l.b16 %v5238
    %v5478 = vunpack.c.h.b16 %v5238
    %v5479 = vunpack.c.l.b16 %v5239
    %v5480 = vunpack.c.l.b16 %v5240
    %v5481 = vunpack.c.h.b16 %v5240
    %v5482 = vunpack.c.l.b16 %v5241
    %v5483 = vunpack.c.l.b16 %v5242
    %v5484 = vunpack.c.h.b16 %v5242
    %v5485 = vunpack.c.l.b16 %v5243
    %v5486 = vunpack.c.l.b16 %v5244
    %v5487 = vunpack.c.h.b16 %v5244
    %v5488 = vunpack.c.l.b16 %v5245
    %v5489 = vunpack.c.l.b16 %v5246
    %v5490 = vunpack.c.h.b16 %v5246
    %v5491 = vunpack.c.l.b16 %v5247
    %v5492 = vunpack.c.l.b16 %v5248
    %v5493 = vunpack.c.h.b16 %v5248
    %v5494 = vunpack.c.l.b16 %v5249
    %v5495 = vunpack.c.l.b16 %v5250
    %v5496 = vunpack.c.h.b16 %v5250
    %v5497 = vunpack.c.l.b16 %v5251
    %v5498 = vunpack.c.l.b16 %v5252
    %v5499 = vunpack.c.h.b16 %v5252
    %v5500 = vunpack.c.l.b16 %v5253
    %v5501 = vunpack.c.l.b16 %v5254
    %v5502 = vunpack.c.h.b16 %v5254
    %v5503 = vunpack.c.l.b16 %v5255
    %v5504 = vunpack.c.l.b16 %v5256
    %v5505 = vunpack.c.h.b16 %v5256
    %v5506 = vunpack.c.l.b16 %v5257
    %v5507 = vunpack.c.l.b16 %v5258
    %v5508 = vunpack.c.h.b16 %v5258
    %v5509 = vunpack.c.l.b16 %v5259
    %v5510 = vunpack.c.l.b16 %v5260
    %v5511 = vunpack.c.h.b16 %v5260
    %v5512 = vunpack.c.l.b16 %v5261
    %v5513 = vunpack.c.l.b16 %v5262
    %v5514 = vunpack.c.h.b16 %v5262
    %v5515 = vunpack.c.l.b16 %v5263
    %v5516 = vunpack.c.l.b16 %v5264
    %v5517 = vunpack.c.h.b16 %v5264
    %v5518 = vunpack.c.l.b16 %v5265
    %v5519 = vunpack.c.l.b16 %v5266
    %v5520 = vunpack.c.h.b16 %v5266
    %v5521 = vunpack.c.l.b16 %v5267
    %v5522 = vunpack.c.l.b16 %v5268
    %v5523 = vunpack.c.h.b16 %v5268
    %v5524 = vunpack.c.l.b16 %v5269
    %v5525 = vunpack.c.l.b16 %v5270
    %v5526 = vunpack.c.h.b16 %v5270
    %v5527 = vunpack.c.l.b16 %v5271
    %v5528 = vunpack.c.l.b16 %v5272
    %v5529 = vunpack.c.h.b16 %v5272
    %v5530 = vunpack.c.l.b16 %v5273
    %v5531 = vunpack.c.l.b16 %v5274
    %v5532 = vunpack.c.h.b16 %v5274
    %v5533 = vunpack.c.l.b16 %v5275
    %v5534 = vpack.c.b16 %v5393, %v5390
    %v5535 = vpack.c.b16 %v5394, %v5391
    %v5536 = vpack.c.b16 %v5395, %v5392
    %v5537 = vpack.c.b16 %v5399, %v5396
    %v5538 = vpack.c.b16 %v5400, %v5397
    %v5539 = vpack.c.b16 %v5401, %v5398
    %v5540 = vpack.c.b16 %v5405, %v5402
    %v5541 = vpack.c.b16 %v5406, %v5403
    %v5542 = vpack.c.b16 %v5407, %v5404
    %v5543 = vpack.c.b16 %v5411, %v5408
    %v5544 = vpack.c.b16 %v5412, %v5409
    %v5545 = vpack.c.b16 %v5413, %v5410
    %v5546 = vpack.c.b16 %v5417, %v5414
    %v5547 = vpack.c.b16 %v5418, %v5415
    %v5548 = vpack.c.b16 %v5419, %v5416
    %v5549 = vpack.c.b16 %v5423, %v5420
    %v5550 = vpack.c.b16 %v5424, %v5421
    %v5551 = vpack.c.b16 %v5425, %v5422
    %v5552 = vpack.c.b16 %v5429, %v5426
    %v5553 = vpack.c.b16 %v5430, %v5427
    %v5554 = vpack.c.b16 %v5431, %v5428
    %v5555 = vpack.c.b16 %v5435, %v5432
    %v5556 = vpack.c.b16 %v5436, %v5433
    %v5557 = vpack.c.b16 %v5437, %v5434
    %v5558 = vpack.c.b16 %v5441, %v5438
    %v5559 = vpack.c.b16 %v5442, %v5439
    %v5560 = vpack.c.b16 %v5443, %v5440
    %v5561 = vpack.c.b16 %v5447, %v5444
    %v5562 = vpack.c.b16 %v5448, %v5445
    %v5563 = vpack.c.b16 %v5449, %v5446
    %v5564 = vpack.c.b16 %v5453, %v5450
    %v5565 = vpack.c.b16 %v5454, %v5451
    %v5566 = vpack.c.b16 %v5455, %v5452
    %v5567 = vpack.c.b16 %v5459, %v5456
    %v5568 = vpack.c.b16 %v5460, %v5457
    %v5569 = vpack.c.b16 %v5461, %v5458
    %v5570 = vpack.c.b16 %v5465, %v5462
    %v5571 = vpack.c.b16 %v5466, %v5463
    %v5572 = vpack.c.b16 %v5467, %v5464
    %v5573 = vpack.c.b16 %v5471, %v5468
    %v5574 = vpack.c.b16 %v5472, %v5469
    %v5575 = vpack.c.b16 %v5473, %v5470
    %v5576 = vpack.c.b16 %v5477, %v5474
    %v5577 = vpack.c.b16 %v5478, %v5475
    %v5578 = vpack.c.b16 %v5479, %v5476
    %v5579 = vpack.c.b16 %v5483, %v5480
    %v5580 = vpack.c.b16 %v5484, %v5481
    %v5581 = vpack.c.b16 %v5485, %v5482
    %v5582 = vpack.c.b16 %v5489, %v5486
    %v5583 = vpack.c.b16 %v5490, %v5487
    %v5584 = vpack.c.b16 %v5491, %v5488
    %v5585 = vpack.c.b16 %v5495, %v5492
    %v5586 = vpack.c.b16 %v5496, %v5493
    %v5587 = vpack.c.b16 %v5497, %v5494
    %v5588 = vpack.c.b16 %v5501, %v5498
    %v5589 = vpack.c.b16 %v5502, %v5499
    %v5590 = vpack.c.b16 %v5503, %v5500
    %v5591 = vpack.c.b16 %v5507, %v5504
    %v5592 = vpack.c.b16 %v5508, %v5505
    %v5593 = vpack.c.b16 %v5509, %v5506
    %v5594 = vpack.c.b16 %v5513, %v5510
    %v5595 = vpack.c.b16 %v5514, %v5511
    %v5596 = vpack.c.b16 %v5515, %v5512
    %v5597 = vpack.c.b16 %v5519, %v5516
    %v5598 = vpack.c.b16 %v5520, %v5517
    %v5599 = vpack.c.b16 %v5521, %v5518
    %v5600 = vpack.c.b16 %v5525, %v5522
    %v5601 = vpack.c.b16 %v5526, %v5523
    %v5602 = vpack.c.b16 %v5527, %v5524
    %v5603 = vpack.c.b16 %v5531, %v5528
    %v5604 = vpack.c.b16 %v5532, %v5529
    %v5605 = vpack.c.b16 %v5533, %v5530
    %5678 = vmatprep.subr.bf16.mxu0 %v5535
    %5679 = vmatpush1.bf16.msra.mxu0 %v5534
    %5680 = vmatprep.subr.bf16.mxu0 %v5538
    %5681 = vmatpush1.bf16.msra.mxu0 %v5537
    %5682 = vmatprep.subr.bf16.mxu0 %v5541
    %5683 = vmatpush1.bf16.msra.mxu0 %v5540
    %5684 = vmatprep.subr.bf16.mxu0 %v5544
    %5685 = vmatpush1.bf16.msra.mxu0 %v5543
    %5686 = vmatprep.subr.bf16.mxu0 %v5547
    %5687 = vmatpush1.bf16.msra.mxu0 %v5546
    %5688 = vmatprep.subr.bf16.mxu0 %v5550
    %5689 = vmatpush1.bf16.msra.mxu0 %v5549
    %5690 = vmatprep.subr.bf16.mxu0 %v5553
    %5691 = vmatpush1.bf16.msra.mxu0 %v5552
    %5692 = vmatprep.subr.bf16.mxu0 %v5556
    %5693 = vmatpush1.bf16.msra.mxu0 %v5555
    %5694 = vmatprep.subr.bf16.mxu0 %v5559
    %5695 = vmatpush1.bf16.msra.mxu0 %v5558
    %5696 = vmatprep.subr.bf16.mxu0 %v5562
    %5697 = vmatpush1.bf16.msra.mxu0 %v5561
    %5698 = vmatprep.subr.bf16.mxu0 %v5565
    %5699 = vmatpush1.bf16.msra.mxu0 %v5564
    %5700 = vmatprep.subr.bf16.mxu0 %v5568
    %5701 = vmatpush1.bf16.msra.mxu0 %v5567
    %5702 = vmatprep.subr.bf16.mxu0 %v5571
    %5703 = vmatpush1.bf16.msra.mxu0 %v5570
    %5704 = vmatprep.subr.bf16.mxu0 %v5574
    %5705 = vmatpush1.bf16.msra.mxu0 %v5573
    %5706 = vmatprep.subr.bf16.mxu0 %v5577
    %5707 = vmatpush1.bf16.msra.mxu0 %v5576
    %5708 = vmatprep.subr.bf16.mxu0 %v5580
    %5709 = vmatpush1.bf16.msra.mxu0 %v5579
    %5710 = vmatprep.mubr.bf16.mxu0 %v5177
    %5711 = vmatmul.mubr.bf16.gmra.mrb[0].mxu0 %v5176
    %v5712 = vpop.f32.mrb[0].mxu0
    %v5713 = vadd.f32 %v5282, %v5712
    %v5714 = vpop.f32.mrb[0].mxu0
    %v5715 = vadd.f32 %v5286, %v5714
    %v5716 = vpop.f32.mrb[0].mxu0
    %v5717 = vpop.f32.mrb[0].mxu0
    %5718 = vdwg.mxu0
    %5719 = vmatprep.subr.bf16.mxu0 %v5583
    %5720 = vmatpush1.bf16.msra.mxu0 %v5582
    %5721 = vmatprep.subr.bf16.mxu0 %v5586
    %5722 = vmatpush1.bf16.msra.mxu0 %v5585
    %5723 = vmatprep.subr.bf16.mxu0 %v5589
    %5724 = vmatpush1.bf16.msra.mxu0 %v5588
    %5725 = vmatprep.subr.bf16.mxu0 %v5592
    %5726 = vmatpush1.bf16.msra.mxu0 %v5591
    %5727 = vmatprep.subr.bf16.mxu0 %v5595
    %5728 = vmatpush1.bf16.msra.mxu0 %v5594
    %5729 = vmatprep.subr.bf16.mxu0 %v5598
    %5730 = vmatpush1.bf16.msra.mxu0 %v5597
    %5731 = vmatprep.subr.bf16.mxu0 %v5601
    %5732 = vmatpush1.bf16.msra.mxu0 %v5600
    %5733 = vmatprep.subr.bf16.mxu0 %v5604
    %5734 = vmatpush1.bf16.msra.mxu0 %v5603
    %5735 = vmatprep.subr.bf16.mxu0 0
    %5736 = vmatpush1.bf16.msra.mxu0 0
    %5737 = vmatprep.subr.bf16.mxu0 0
    %5738 = vmatpush1.bf16.msra.mxu0 0
    %5739 = vmatprep.subr.bf16.mxu0 0
    %5740 = vmatpush1.bf16.msra.mxu0 0
    %5741 = vmatprep.subr.bf16.mxu0 0
    %5742 = vmatpush1.bf16.msra.mxu0 0
    %5743 = vmatprep.subr.bf16.mxu0 0
    %5744 = vmatpush1.bf16.msra.mxu0 0
    %5745 = vmatprep.subr.bf16.mxu0 0
    %5746 = vmatpush1.bf16.msra.mxu0 0
    %5747 = vmatprep.subr.bf16.mxu0 0
    %5748 = vmatpush1.bf16.msra.mxu0 0
    %5749 = vmatprep.subr.bf16.mxu0 0
    %5750 = vmatpush1.bf16.msra.mxu0 0
    %5751 = vmatprep.mubr.bf16.mxu0 0
    %5752 = vmatmul.mubr.bf16.gmra.mrb[0].mxu0 %v5178
    %v5753 = vpop.f32.mrb[0].mxu0
    %v5754 = vadd.f32 %v5713, %v5753
    %v5755 = vpop.f32.mrb[0].mxu0
    %v5756 = vadd.f32 %v5715, %v5755
    %v5757 = vpop.f32.mrb[0].mxu0
    %v5758 = vpop.f32.mrb[0].mxu0
    %5759 = vdwg.mxu0
    %5760 = vmatprep.subr.bf16.mxu0 0
    %5761 = vmatpush1.bf16.msra.mxu0 %v5536
    %5762 = vmatprep.subr.bf16.mxu0 0
    %5763 = vmatpush1.bf16.msra.mxu0 %v5539
    %5764 = vmatprep.subr.bf16.mxu0 0
    %5765 = vmatpush1.bf16.msra.mxu0 %v5542
    %5766 = vmatprep.subr.bf16.mxu0 0
    %5767 = vmatpush1.bf16.msra.mxu0 %v5545
    %5768 = vmatprep.subr.bf16.mxu0 0
    %5769 = vmatpush1.bf16.msra.mxu0 %v5548
    %5770 = vmatprep.subr.bf16.mxu0 0
    %5771 = vmatpush1.bf16.msra.mxu0 %v5551
    %5772 = vmatprep.subr.bf16.mxu0 0
    %5773 = vmatpush1.bf16.msra.mxu0 %v5554
    %5774 = vmatprep.subr.bf16.mxu0 0
    %5775 = vmatpush1.bf16.msra.mxu0 %v5557
    %5776 = vmatprep.subr.bf16.mxu0 0
    %5777 = vmatpush1.bf16.msra.mxu0 %v5560
    %5778 = vmatprep.subr.bf16.mxu0 0
    %5779 = vmatpush1.bf16.msra.mxu0 %v5563
    %5780 = vmatprep.subr.bf16.mxu0 0
    %5781 = vmatpush1.bf16.msra.mxu0 %v5566
    %5782 = vmatprep.subr.bf16.mxu0 0
    %5783 = vmatpush1.bf16.msra.mxu0 %v5569
    %5784 = vmatprep.subr.bf16.mxu0 0
    %5785 = vmatpush1.bf16.msra.mxu0 %v5572
    %5786 = vmatprep.subr.bf16.mxu0 0
    %5787 = vmatpush1.bf16.msra.mxu0 %v5575
    %5788 = vmatprep.subr.bf16.mxu0 0
    %5789 = vmatpush1.bf16.msra.mxu0 %v5578
    %5790 = vmatprep.subr.bf16.mxu0 0
    %5791 = vmatpush1.bf16.msra.mxu0 %v5581
    %5792 = vmatprep.mubr.bf16.mxu0 %v5177
    %5793 = vmatmul.mubr.bf16.gmra.mrb[0].mxu0 %v5176
    %v5794 = vpop.f32.mrb[0].mxu0
    %v5795 = vadd.f32 %v5290, %v5794
    %v5796 = vpop.f32.mrb[0].mxu0
    %v5797 = vpop.f32.mrb[0].mxu0
    %v5798 = vpop.f32.mrb[0].mxu0
    %5799 = vdwg.mxu0
    %5800 = vmatprep.subr.bf16.mxu0 0
    %5801 = vmatpush1.bf16.msra.mxu0 %v5584
    %5802 = vmatprep.subr.bf16.mxu0 0
    %5803 = vmatpush1.bf16.msra.mxu0 %v5587
    %5804 = vmatprep.subr.bf16.mxu0 0
    %5805 = vmatpush1.bf16.msra.mxu0 %v5590
    %5806 = vmatprep.subr.bf16.mxu0 0
    %5807 = vmatpush1.bf16.msra.mxu0 %v5593
    %5808 = vmatprep.subr.bf16.mxu0 0
    %5809 = vmatpush1.bf16.msra.mxu0 %v5596
    %5810 = vmatprep.subr.bf16.mxu0 0
    %5811 = vmatpush1.bf16.msra.mxu0 %v5599
    %5812 = vmatprep.subr.bf16.mxu0 0
    %5813 = vmatpush1.bf16.msra.mxu0 %v5602
    %5814 = vmatprep.subr.bf16.mxu0 0
    %5815 = vmatpush1.bf16.msra.mxu0 %v5605
    %5816 = vmatprep.subr.bf16.mxu0 0
    %5817 = vmatpush1.bf16.msra.mxu0 0
    %5818 = vmatprep.subr.bf16.mxu0 0
    %5819 = vmatpush1.bf16.msra.mxu0 0
    %5820 = vmatprep.subr.bf16.mxu0 0
    %5821 = vmatpush1.bf16.msra.mxu0 0
    %5822 = vmatprep.subr.bf16.mxu0 0
    %5823 = vmatpush1.bf16.msra.mxu0 0
    %5824 = vmatprep.subr.bf16.mxu0 0
    %5825 = vmatpush1.bf16.msra.mxu0 0
    %5826 = vmatprep.subr.bf16.mxu0 0
    %5827 = vmatpush1.bf16.msra.mxu0 0
    %5828 = vmatprep.subr.bf16.mxu0 0
    %5829 = vmatpush1.bf16.msra.mxu0 0
    %5830 = vmatprep.subr.bf16.mxu0 0
    %5831 = vmatpush1.bf16.msra.mxu0 0
    %5832 = vmatprep.mubr.bf16.mxu0 0
    %5833 = vmatmul.mubr.bf16.gmra.mrb[0].mxu0 %v5178
    %v5834 = vpop.f32.mrb[0].mxu0
    %v5835 = vadd.f32 %v5795, %v5834
    %v5836 = vpop.f32.mrb[0].mxu0
    %v5837 = vpop.f32.mrb[0].mxu0
    %v5838 = vpop.f32.mrb[0].mxu0
    %5839 = vdwg.mxu0
    %v5840 = vmax.f32 %v5754, 0.0
    %v5841 = vmax.f32 %v5756, 0.0
    %v5842 = vmax.f32 %v5835, 0.0
    %s5843 = scalar_lea.vmem %s12, 1728
    %v5844 = vld [vmem:[%s5843] sm:$0xff]
    %v5845 = vld [vmem:[%s5843 + $0x8] sm:$0xf]
    %v5846 = vld [vmem:[%s5843 + $0xc] sm:$0xff]
    %v5847 = vld [vmem:[%s5843 + $0x14] sm:$0xf]
    %v5848 = vld [vmem:[%s5843 + $0x18] sm:$0xff]
    %v5849 = vld [vmem:[%s5843 + $0x20] sm:$0xf]
    %v5850 = vld [vmem:[%s5843 + $0x24] sm:$0xff]
    %v5851 = vld [vmem:[%s5843 + $0x2c] sm:$0xf]
    %v5852 = vld [vmem:[%s5843 + $0x30] sm:$0xff]
    %v5853 = vld [vmem:[%s5843 + $0x38] sm:$0xf]
    %v5854 = vld [vmem:[%s5843 + $0x3c] sm:$0xff]
    %v5855 = vld [vmem:[%s5843 + $0x44] sm:$0xf]
    %v5856 = vld [vmem:[%s5843 + $0x48] sm:$0xff]
    %v5857 = vld [vmem:[%s5843 + $0x50] sm:$0xf]
    %v5858 = vld [vmem:[%s5843 + $0x54] sm:$0xff]
    %v5859 = vld [vmem:[%s5843 + $0x5c] sm:$0xf]
    %v5860 = vld [vmem:[%s5843 + $0x60] sm:$0xff]
    %v5861 = vld [vmem:[%s5843 + $0x68] sm:$0xf]
    %v5862 = vld [vmem:[%s5843 + $0x6c] sm:$0xff]
    %v5863 = vld [vmem:[%s5843 + $0x74] sm:$0xf]
    %v5864 = vld [vmem:[%s5843 + $0x78] sm:$0xff]
    %v5865 = vld [vmem:[%s5843 + $0x80] sm:$0xf]
    %v5866 = vld [vmem:[%s5843 + $0x84] sm:$0xff]
    %v5867 = vld [vmem:[%s5843 + $0x8c] sm:$0xf]
    %v5868 = vld [vmem:[%s5843 + $0x90] sm:$0xff]
    %v5869 = vld [vmem:[%s5843 + $0x98] sm:$0xf]
    %v5870 = vld [vmem:[%s5843 + $0x9c] sm:$0xff]
    %v5871 = vld [vmem:[%s5843 + $0xa4] sm:$0xf]
    %v5872 = vld [vmem:[%s5843 + $0xa8] sm:$0xff]
    %v5873 = vld [vmem:[%s5843 + $0xb0] sm:$0xf]
    %v5874 = vld [vmem:[%s5843 + $0xb4] sm:$0xff]
    %v5875 = vld [vmem:[%s5843 + $0xbc] sm:$0xf]
    %v5876 = vld [vmem:[%s5843 + $0xc0] sm:$0xff]
    %v5877 = vld [vmem:[%s5843 + $0xc8] sm:$0xf]
    %v5878 = vld [vmem:[%s5843 + $0xcc] sm:$0xff]
    %v5879 = vld [vmem:[%s5843 + $0xd4] sm:$0xf]
    %v5880 = vld [vmem:[%s5843 + $0xd8] sm:$0xff]
    %v5881 = vld [vmem:[%s5843 + $0xe0] sm:$0xf]
    %v5882 = vld [vmem:[%s5843 + $0xe4] sm:$0xff]
    %v5883 = vld [vmem:[%s5843 + $0xec] sm:$0xf]
    %v5884 = vld [vmem:[%s5843 + $0xf0] sm:$0xff]
    %v5885 = vld [vmem:[%s5843 + $0xf8] sm:$0xf]
    %v5886 = vld [vmem:[%s5843 + $0xfc] sm:$0xff]
    %v5887 = vld [vmem:[%s5843 + $0x104] sm:$0xf]
    %v5888 = vld [vmem:[%s5843 + $0x108] sm:$0xff]
    %v5889 = vld [vmem:[%s5843 + $0x110] sm:$0xf]
    %v5890 = vld [vmem:[%s5843 + $0x114] sm:$0xff]
    %v5891 = vld [vmem:[%s5843 + $0x11c] sm:$0xf]
    %v5892 = vld [vmem:[%s5843 + $0x120] sm:$0xff]
    %v5893 = vld [vmem:[%s5843 + $0x128] sm:$0xf]
    %v5894 = vld [vmem:[%s5843 + $0x12c] sm:$0xff]
    %v5895 = vld [vmem:[%s5843 + $0x134] sm:$0xf]
    %v5896 = vld [vmem:[%s5843 + $0x138] sm:$0xff]
    %v5897 = vld [vmem:[%s5843 + $0x140] sm:$0xf]
    %v5898 = vld [vmem:[%s5843 + $0x144] sm:$0xff]
    %v5899 = vld [vmem:[%s5843 + $0x14c] sm:$0xf]
    %v5900 = vld [vmem:[%s5843 + $0x150] sm:$0xff]
    %v5901 = vld [vmem:[%s5843 + $0x158] sm:$0xf]
    %v5902 = vld [vmem:[%s5843 + $0x15c] sm:$0xff]
    %v5903 = vld [vmem:[%s5843 + $0x164] sm:$0xf]
    %v5904 = vld [vmem:[%s5843 + $0x168] sm:$0xff]
    %v5905 = vld [vmem:[%s5843 + $0x170] sm:$0xf]
    %v5906 = vld [vmem:[%s5843 + $0x174] sm:$0xff]
    %v5907 = vld [vmem:[%s5843 + $0x17c] sm:$0xf]
    %v5908 = vld [vmem:[%s5843 + $0x180] sm:$0xff]
    %v5909 = vld [vmem:[%s5843 + $0x188] sm:$0xf]
    %v5910 = vld [vmem:[%s5843 + $0x18c] sm:$0xff]
    %v5911 = vld [vmem:[%s5843 + $0x194] sm:$0xf]
    %v5912 = vld [vmem:[%s5843 + $0x198] sm:$0xff]
    %v5913 = vld [vmem:[%s5843 + $0x1a0] sm:$0xf]
    %v5914 = vld [vmem:[%s5843 + $0x1a4] sm:$0xff]
    %v5915 = vld [vmem:[%s5843 + $0x1ac] sm:$0xf]
    %v5916 = vld [vmem:[%s5843 + $0x1b0] sm:$0xff]
    %v5917 = vld [vmem:[%s5843 + $0x1b8] sm:$0xf]
    %v5918 = vld [vmem:[%s5843 + $0x1bc] sm:$0xff]
    %v5919 = vld [vmem:[%s5843 + $0x1c4] sm:$0xf]
    %v5920 = vld [vmem:[%s5843 + $0x1c8] sm:$0xff]
    %v5921 = vld [vmem:[%s5843 + $0x1d0] sm:$0xf]
    %v5922 = vld [vmem:[%s5843 + $0x1d4] sm:$0xff]
    %v5923 = vld [vmem:[%s5843 + $0x1dc] sm:$0xf]
    %v5924 = vld [vmem:[%s5843 + $0x1e0] sm:$0xff]
    %v5925 = vld [vmem:[%s5843 + $0x1e8] sm:$0xf]
    %v5926 = vld [vmem:[%s5843 + $0x1ec] sm:$0xff]
    %v5927 = vld [vmem:[%s5843 + $0x1f4] sm:$0xf]
    %v5928 = vld [vmem:[%s5843 + $0x1f8] sm:$0xff]
    %v5929 = vld [vmem:[%s5843 + $0x200] sm:$0xf]
    %v5930 = vld [vmem:[%s5843 + $0x204] sm:$0xff]
    %v5931 = vld [vmem:[%s5843 + $0x20c] sm:$0xf]
    %v5932 = vld [vmem:[%s5843 + $0x210] sm:$0xff]
    %v5933 = vld [vmem:[%s5843 + $0x218] sm:$0xf]
    %v5934 = vld [vmem:[%s5843 + $0x21c] sm:$0xff]
    %v5935 = vld [vmem:[%s5843 + $0x224] sm:$0xf]
    %v5936 = vld [vmem:[%s5843 + $0x228] sm:$0xff]
    %v5937 = vld [vmem:[%s5843 + $0x230] sm:$0xf]
    %v5938 = vld [vmem:[%s5843 + $0x234] sm:$0xff]
    %v5939 = vld [vmem:[%s5843 + $0x23c] sm:$0xf]
    %s5940 = scalar_lea.vmem %s13, 9
    %v5941 = vld [vmem:[%s5940] sm:$0x7]
    %v5943 = vlaneseq
    %v5944 = vshrl.u32 %v5943, 7
    %v5945 = vsub.s32 0, %v5944
    %v5946 = vrot.slane %v5941, %v5945
    %v5947 = vlaneseq
    %v5948 = vshrl.u32 %v5947, 7
    %v5949 = vsub.s32 1, %v5948
    %v5950 = vrot.slane %v5941, %v5949
    %v5951 = vlaneseq
    %v5952 = vshrl.u32 %v5951, 7
    %v5953 = vsub.s32 2, %v5952
    %v5954 = vrot.slane %v5941, %v5953
    %v6054 = vunpack.c.l.b16 %v5844
    %v6055 = vunpack.c.h.b16 %v5844
    %v6056 = vunpack.c.l.b16 %v5845
    %v6057 = vunpack.c.l.b16 %v5846
    %v6058 = vunpack.c.h.b16 %v5846
    %v6059 = vunpack.c.l.b16 %v5847
    %v6060 = vunpack.c.l.b16 %v5848
    %v6061 = vunpack.c.h.b16 %v5848
    %v6062 = vunpack.c.l.b16 %v5849
    %v6063 = vunpack.c.l.b16 %v5850
    %v6064 = vunpack.c.h.b16 %v5850
    %v6065 = vunpack.c.l.b16 %v5851
    %v6066 = vunpack.c.l.b16 %v5852
    %v6067 = vunpack.c.h.b16 %v5852
    %v6068 = vunpack.c.l.b16 %v5853
    %v6069 = vunpack.c.l.b16 %v5854
    %v6070 = vunpack.c.h.b16 %v5854
    %v6071 = vunpack.c.l.b16 %v5855
    %v6072 = vunpack.c.l.b16 %v5856
    %v6073 = vunpack.c.h.b16 %v5856
    %v6074 = vunpack.c.l.b16 %v5857
    %v6075 = vunpack.c.l.b16 %v5858
    %v6076 = vunpack.c.h.b16 %v5858
    %v6077 = vunpack.c.l.b16 %v5859
    %v6078 = vunpack.c.l.b16 %v5860
    %v6079 = vunpack.c.h.b16 %v5860
    %v6080 = vunpack.c.l.b16 %v5861
    %v6081 = vunpack.c.l.b16 %v5862
    %v6082 = vunpack.c.h.b16 %v5862
    %v6083 = vunpack.c.l.b16 %v5863
    %v6084 = vunpack.c.l.b16 %v5864
    %v6085 = vunpack.c.h.b16 %v5864
    %v6086 = vunpack.c.l.b16 %v5865
    %v6087 = vunpack.c.l.b16 %v5866
    %v6088 = vunpack.c.h.b16 %v5866
    %v6089 = vunpack.c.l.b16 %v5867
    %v6090 = vunpack.c.l.b16 %v5868
    %v6091 = vunpack.c.h.b16 %v5868
    %v6092 = vunpack.c.l.b16 %v5869
    %v6093 = vunpack.c.l.b16 %v5870
    %v6094 = vunpack.c.h.b16 %v5870
    %v6095 = vunpack.c.l.b16 %v5871
    %v6096 = vunpack.c.l.b16 %v5872
    %v6097 = vunpack.c.h.b16 %v5872
    %v6098 = vunpack.c.l.b16 %v5873
    %v6099 = vunpack.c.l.b16 %v5874
    %v6100 = vunpack.c.h.b16 %v5874
    %v6101 = vunpack.c.l.b16 %v5875
    %v6102 = vunpack.c.l.b16 %v5876
    %v6103 = vunpack.c.h.b16 %v5876
    %v6104 = vunpack.c.l.b16 %v5877
    %v6105 = vunpack.c.l.b16 %v5878
    %v6106 = vunpack.c.h.b16 %v5878
    %v6107 = vunpack.c.l.b16 %v5879
    %v6108 = vunpack.c.l.b16 %v5880
    %v6109 = vunpack.c.h.b16 %v5880
    %v6110 = vunpack.c.l.b16 %v5881
    %v6111 = vunpack.c.l.b16 %v5882
    %v6112 = vunpack.c.h.b16 %v5882
    %v6113 = vunpack.c.l.b16 %v5883
    %v6114 = vunpack.c.l.b16 %v5884
    %v6115 = vunpack.c.h.b16 %v5884
    %v6116 = vunpack.c.l.b16 %v5885
    %v6117 = vunpack.c.l.b16 %v5886
    %v6118 = vunpack.c.h.b16 %v5886
    %v6119 = vunpack.c.l.b16 %v5887
    %v6120 = vunpack.c.l.b16 %v5888
    %v6121 = vunpack.c.h.b16 %v5888
    %v6122 = vunpack.c.l.b16 %v5889
    %v6123 = vunpack.c.l.b16 %v5890
    %v6124 = vunpack.c.h.b16 %v5890
    %v6125 = vunpack.c.l.b16 %v5891
    %v6126 = vunpack.c.l.b16 %v5892
    %v6127 = vunpack.c.h.b16 %v5892
    %v6128 = vunpack.c.l.b16 %v5893
    %v6129 = vunpack.c.l.b16 %v5894
    %v6130 = vunpack.c.h.b16 %v5894
    %v6131 = vunpack.c.l.b16 %v5895
    %v6132 = vunpack.c.l.b16 %v5896
    %v6133 = vunpack.c.h.b16 %v5896
    %v6134 = vunpack.c.l.b16 %v5897
    %v6135 = vunpack.c.l.b16 %v5898
    %v6136 = vunpack.c.h.b16 %v5898
    %v6137 = vunpack.c.l.b16 %v5899
    %v6138 = vunpack.c.l.b16 %v5900
    %v6139 = vunpack.c.h.b16 %v5900
    %v6140 = vunpack.c.l.b16 %v5901
    %v6141 = vunpack.c.l.b16 %v5902
    %v6142 = vunpack.c.h.b16 %v5902
    %v6143 = vunpack.c.l.b16 %v5903
    %v6144 = vunpack.c.l.b16 %v5904
    %v6145 = vunpack.c.h.b16 %v5904
    %v6146 = vunpack.c.l.b16 %v5905
    %v6147 = vunpack.c.l.b16 %v5906
    %v6148 = vunpack.c.h.b16 %v5906
    %v6149 = vunpack.c.l.b16 %v5907
    %v6150 = vunpack.c.l.b16 %v5908
    %v6151 = vunpack.c.h.b16 %v5908
    %v6152 = vunpack.c.l.b16 %v5909
    %v6153 = vunpack.c.l.b16 %v5910
    %v6154 = vunpack.c.h.b16 %v5910
    %v6155 = vunpack.c.l.b16 %v5911
    %v6156 = vunpack.c.l.b16 %v5912
    %v6157 = vunpack.c.h.b16 %v5912
    %v6158 = vunpack.c.l.b16 %v5913
    %v6159 = vunpack.c.l.b16 %v5914
    %v6160 = vunpack.c.h.b16 %v5914
    %v6161 = vunpack.c.l.b16 %v5915
    %v6162 = vunpack.c.l.b16 %v5916
    %v6163 = vunpack.c.h.b16 %v5916
    %v6164 = vunpack.c.l.b16 %v5917
    %v6165 = vunpack.c.l.b16 %v5918
    %v6166 = vunpack.c.h.b16 %v5918
    %v6167 = vunpack.c.l.b16 %v5919
    %v6168 = vunpack.c.l.b16 %v5920
    %v6169 = vunpack.c.h.b16 %v5920
    %v6170 = vunpack.c.l.b16 %v5921
    %v6171 = vunpack.c.l.b16 %v5922
    %v6172 = vunpack.c.h.b16 %v5922
    %v6173 = vunpack.c.l.b16 %v5923
    %v6174 = vunpack.c.l.b16 %v5924
    %v6175 = vunpack.c.h.b16 %v5924
    %v6176 = vunpack.c.l.b16 %v5925
    %v6177 = vunpack.c.l.b16 %v5926
    %v6178 = vunpack.c.h.b16 %v5926
    %v6179 = vunpack.c.l.b16 %v5927
    %v6180 = vunpack.c.l.b16 %v5928
    %v6181 = vunpack.c.h.b16 %v5928
    %v6182 = vunpack.c.l.b16 %v5929
    %v6183 = vunpack.c.l.b16 %v5930
    %v6184 = vunpack.c.h.b16 %v5930
    %v6185 = vunpack.c.l.b16 %v5931
    %v6186 = vunpack.c.l.b16 %v5932
    %v6187 = vunpack.c.h.b16 %v5932
    %v6188 = vunpack.c.l.b16 %v5933
    %v6189 = vunpack.c.l.b16 %v5934
    %v6190 = vunpack.c.h.b16 %v5934
    %v6191 = vunpack.c.l.b16 %v5935
    %v6192 = vunpack.c.l.b16 %v5936
    %v6193 = vunpack.c.h.b16 %v5936
    %v6194 = vunpack.c.l.b16 %v5937
    %v6195 = vunpack.c.l.b16 %v5938
    %v6196 = vunpack.c.h.b16 %v5938
    %v6197 = vunpack.c.l.b16 %v5939
    %v6198 = vpack.c.b16 %v6057, %v6054
    %v6199 = vpack.c.b16 %v6058, %v6055
    %v6200 = vpack.c.b16 %v6059, %v6056
    %v6201 = vpack.c.b16 %v6063, %v6060
    %v6202 = vpack.c.b16 %v6064, %v6061
    %v6203 = vpack.c.b16 %v6065, %v6062
    %v6204 = vpack.c.b16 %v6069, %v6066
    %v6205 = vpack.c.b16 %v6070, %v6067
    %v6206 = vpack.c.b16 %v6071, %v6068
    %v6207 = vpack.c.b16 %v6075, %v6072
    %v6208 = vpack.c.b16 %v6076, %v6073
    %v6209 = vpack.c.b16 %v6077, %v6074
    %v6210 = vpack.c.b16 %v6081, %v6078
    %v6211 = vpack.c.b16 %v6082, %v6079
    %v6212 = vpack.c.b16 %v6083, %v6080
    %v6213 = vpack.c.b16 %v6087, %v6084
    %v6214 = vpack.c.b16 %v6088, %v6085
    %v6215 = vpack.c.b16 %v6089, %v6086
    %v6216 = vpack.c.b16 %v6093, %v6090
    %v6217 = vpack.c.b16 %v6094, %v6091
    %v6218 = vpack.c.b16 %v6095, %v6092
    %v6219 = vpack.c.b16 %v6099, %v6096
    %v6220 = vpack.c.b16 %v6100, %v6097
    %v6221 = vpack.c.b16 %v6101, %v6098
    %v6222 = vpack.c.b16 %v6105, %v6102
    %v6223 = vpack.c.b16 %v6106, %v6103
    %v6224 = vpack.c.b16 %v6107, %v6104
    %v6225 = vpack.c.b16 %v6111, %v6108
    %v6226 = vpack.c.b16 %v6112, %v6109
    %v6227 = vpack.c.b16 %v6113, %v6110
    %v6228 = vpack.c.b16 %v6117, %v6114
    %v6229 = vpack.c.b16 %v6118, %v6115
    %v6230 = vpack.c.b16 %v6119, %v6116
    %v6231 = vpack.c.b16 %v6123, %v6120
    %v6232 = vpack.c.b16 %v6124, %v6121
    %v6233 = vpack.c.b16 %v6125, %v6122
    %v6234 = vpack.c.b16 %v6129, %v6126
    %v6235 = vpack.c.b16 %v6130, %v6127
    %v6236 = vpack.c.b16 %v6131, %v6128
    %v6237 = vpack.c.b16 %v6135, %v6132
    %v6238 = vpack.c.b16 %v6136, %v6133
    %v6239 = vpack.c.b16 %v6137, %v6134
    %v6240 = vpack.c.b16 %v6141, %v6138
    %v6241 = vpack.c.b16 %v6142, %v6139
    %v6242 = vpack.c.b16 %v6143, %v6140
    %v6243 = vpack.c.b16 %v6147, %v6144
    %v6244 = vpack.c.b16 %v6148, %v6145
    %v6245 = vpack.c.b16 %v6149, %v6146
    %v6246 = vpack.c.b16 %v6153, %v6150
    %v6247 = vpack.c.b16 %v6154, %v6151
    %v6248 = vpack.c.b16 %v6155, %v6152
    %v6249 = vpack.c.b16 %v6159, %v6156
    %v6250 = vpack.c.b16 %v6160, %v6157
    %v6251 = vpack.c.b16 %v6161, %v6158
    %v6252 = vpack.c.b16 %v6165, %v6162
    %v6253 = vpack.c.b16 %v6166, %v6163
    %v6254 = vpack.c.b16 %v6167, %v6164
    %v6255 = vpack.c.b16 %v6171, %v6168
    %v6256 = vpack.c.b16 %v6172, %v6169
    %v6257 = vpack.c.b16 %v6173, %v6170
    %v6258 = vpack.c.b16 %v6177, %v6174
    %v6259 = vpack.c.b16 %v6178, %v6175
    %v6260 = vpack.c.b16 %v6179, %v6176
    %v6261 = vpack.c.b16 %v6183, %v6180
    %v6262 = vpack.c.b16 %v6184, %v6181
    %v6263 = vpack.c.b16 %v6185, %v6182
    %v6264 = vpack.c.b16 %v6189, %v6186
    %v6265 = vpack.c.b16 %v6190, %v6187
    %v6266 = vpack.c.b16 %v6191, %v6188
    %v6267 = vpack.c.b16 %v6195, %v6192
    %v6268 = vpack.c.b16 %v6196, %v6193
    %v6269 = vpack.c.b16 %v6197, %v6194
    %6342 = vmatprep.subr.bf16.mxu0 %v6199
    %6343 = vmatpush1.bf16.msra.mxu0 %v6198
    %6344 = vmatprep.subr.bf16.mxu0 %v6202
    %6345 = vmatpush1.bf16.msra.mxu0 %v6201
    %6346 = vmatprep.subr.bf16.mxu0 %v6205
    %6347 = vmatpush1.bf16.msra.mxu0 %v6204
    %6348 = vmatprep.subr.bf16.mxu0 %v6208
    %6349 = vmatpush1.bf16.msra.mxu0 %v6207
    %6350 = vmatprep.subr.bf16.mxu0 %v6211
    %6351 = vmatpush1.bf16.msra.mxu0 %v6210
    %6352 = vmatprep.subr.bf16.mxu0 %v6214
    %6353 = vmatpush1.bf16.msra.mxu0 %v6213
    %6354 = vmatprep.subr.bf16.mxu0 %v6217
    %6355 = vmatpush1.bf16.msra.mxu0 %v6216
    %6356 = vmatprep.subr.bf16.mxu0 %v6220
    %6357 = vmatpush1.bf16.msra.mxu0 %v6219
    %6358 = vmatprep.subr.bf16.mxu0 %v6223
    %6359 = vmatpush1.bf16.msra.mxu0 %v6222
    %6360 = vmatprep.subr.bf16.mxu0 %v6226
    %6361 = vmatpush1.bf16.msra.mxu0 %v6225
    %6362 = vmatprep.subr.bf16.mxu0 %v6229
    %6363 = vmatpush1.bf16.msra.mxu0 %v6228
    %6364 = vmatprep.subr.bf16.mxu0 %v6232
    %6365 = vmatpush1.bf16.msra.mxu0 %v6231
    %6366 = vmatprep.subr.bf16.mxu0 %v6235
    %6367 = vmatpush1.bf16.msra.mxu0 %v6234
    %6368 = vmatprep.subr.bf16.mxu0 %v6238
    %6369 = vmatpush1.bf16.msra.mxu0 %v6237
    %6370 = vmatprep.subr.bf16.mxu0 %v6241
    %6371 = vmatpush1.bf16.msra.mxu0 %v6240
    %6372 = vmatprep.subr.bf16.mxu0 %v6244
    %6373 = vmatpush1.bf16.msra.mxu0 %v6243
    %6374 = vmatprep.mubr.bf16.mxu0 %v3845
    %6375 = vmatmul.mubr.bf16.gmra.mrb[0].mxu0 %v3844
    %v6376 = vpop.f32.mrb[0].mxu0
    %v6377 = vadd.f32 %v5946, %v6376
    %v6378 = vpop.f32.mrb[0].mxu0
    %v6379 = vadd.f32 %v5950, %v6378
    %v6380 = vpop.f32.mrb[0].mxu0
    %v6381 = vpop.f32.mrb[0].mxu0
    %6382 = vdwg.mxu0
    %6383 = vmatprep.subr.bf16.mxu0 %v6247
    %6384 = vmatpush1.bf16.msra.mxu0 %v6246
    %6385 = vmatprep.subr.bf16.mxu0 %v6250
    %6386 = vmatpush1.bf16.msra.mxu0 %v6249
    %6387 = vmatprep.subr.bf16.mxu0 %v6253
    %6388 = vmatpush1.bf16.msra.mxu0 %v6252
    %6389 = vmatprep.subr.bf16.mxu0 %v6256
    %6390 = vmatpush1.bf16.msra.mxu0 %v6255
    %6391 = vmatprep.subr.bf16.mxu0 %v6259
    %6392 = vmatpush1.bf16.msra.mxu0 %v6258
    %6393 = vmatprep.subr.bf16.mxu0 %v6262
    %6394 = vmatpush1.bf16.msra.mxu0 %v6261
    %6395 = vmatprep.subr.bf16.mxu0 %v6265
    %6396 = vmatpush1.bf16.msra.mxu0 %v6264
    %6397 = vmatprep.subr.bf16.mxu0 %v6268
    %6398 = vmatpush1.bf16.msra.mxu0 %v6267
    %6399 = vmatprep.subr.bf16.mxu0 0
    %6400 = vmatpush1.bf16.msra.mxu0 0
    %6401 = vmatprep.subr.bf16.mxu0 0
    %6402 = vmatpush1.bf16.msra.mxu0 0
    %6403 = vmatprep.subr.bf16.mxu0 0
    %6404 = vmatpush1.bf16.msra.mxu0 0
    %6405 = vmatprep.subr.bf16.mxu0 0
    %6406 = vmatpush1.bf16.msra.mxu0 0
    %6407 = vmatprep.subr.bf16.mxu0 0
    %6408 = vmatpush1.bf16.msra.mxu0 0
    %6409 = vmatprep.subr.bf16.mxu0 0
    %6410 = vmatpush1.bf16.msra.mxu0 0
    %6411 = vmatprep.subr.bf16.mxu0 0
    %6412 = vmatpush1.bf16.msra.mxu0 0
    %6413 = vmatprep.subr.bf16.mxu0 0
    %6414 = vmatpush1.bf16.msra.mxu0 0
    %6415 = vmatprep.mubr.bf16.mxu0 0
    %6416 = vmatmul.mubr.bf16.gmra.mrb[0].mxu0 %v3846
    %v6417 = vpop.f32.mrb[0].mxu0
    %v6418 = vadd.f32 %v6377, %v6417
    %v6419 = vpop.f32.mrb[0].mxu0
    %v6420 = vadd.f32 %v6379, %v6419
    %v6421 = vpop.f32.mrb[0].mxu0
    %v6422 = vpop.f32.mrb[0].mxu0
    %6423 = vdwg.mxu0
    %6424 = vmatprep.subr.bf16.mxu0 0
    %6425 = vmatpush1.bf16.msra.mxu0 %v6200
    %6426 = vmatprep.subr.bf16.mxu0 0
    %6427 = vmatpush1.bf16.msra.mxu0 %v6203
    %6428 = vmatprep.subr.bf16.mxu0 0
    %6429 = vmatpush1.bf16.msra.mxu0 %v6206
    %6430 = vmatprep.subr.bf16.mxu0 0
    %6431 = vmatpush1.bf16.msra.mxu0 %v6209
    %6432 = vmatprep.subr.bf16.mxu0 0
    %6433 = vmatpush1.bf16.msra.mxu0 %v6212
    %6434 = vmatprep.subr.bf16.mxu0 0
    %6435 = vmatpush1.bf16.msra.mxu0 %v6215
    %6436 = vmatprep.subr.bf16.mxu0 0
    %6437 = vmatpush1.bf16.msra.mxu0 %v6218
    %6438 = vmatprep.subr.bf16.mxu0 0
    %6439 = vmatpush1.bf16.msra.mxu0 %v6221
    %6440 = vmatprep.subr.bf16.mxu0 0
    %6441 = vmatpush1.bf16.msra.mxu0 %v6224
    %6442 = vmatprep.subr.bf16.mxu0 0
    %6443 = vmatpush1.bf16.msra.mxu0 %v6227
    %6444 = vmatprep.subr.bf16.mxu0 0
    %6445 = vmatpush1.bf16.msra.mxu0 %v6230
    %6446 = vmatprep.subr.bf16.mxu0 0
    %6447 = vmatpush1.bf16.msra.mxu0 %v6233
    %6448 = vmatprep.subr.bf16.mxu0 0
    %6449 = vmatpush1.bf16.msra.mxu0 %v6236
    %6450 = vmatprep.subr.bf16.mxu0 0
    %6451 = vmatpush1.bf16.msra.mxu0 %v6239
    %6452 = vmatprep.subr.bf16.mxu0 0
    %6453 = vmatpush1.bf16.msra.mxu0 %v6242
    %6454 = vmatprep.subr.bf16.mxu0 0
    %6455 = vmatpush1.bf16.msra.mxu0 %v6245
    %6456 = vmatprep.mubr.bf16.mxu0 %v3845
    %6457 = vmatmul.mubr.bf16.gmra.mrb[0].mxu0 %v3844
    %v6458 = vpop.f32.mrb[0].mxu0
    %v6459 = vadd.f32 %v5954, %v6458
    %v6460 = vpop.f32.mrb[0].mxu0
    %v6461 = vpop.f32.mrb[0].mxu0
    %v6462 = vpop.f32.mrb[0].mxu0
    %6463 = vdwg.mxu0
    %6464 = vmatprep.subr.bf16.mxu0 0
    %6465 = vmatpush1.bf16.msra.mxu0 %v6248
    %6466 = vmatprep.subr.bf16.mxu0 0
    %6467 = vmatpush1.bf16.msra.mxu0 %v6251
    %6468 = vmatprep.subr.bf16.mxu0 0
    %6469 = vmatpush1.bf16.msra.mxu0 %v6254
    %6470 = vmatprep.subr.bf16.mxu0 0
    %6471 = vmatpush1.bf16.msra.mxu0 %v6257
    %6472 = vmatprep.subr.bf16.mxu0 0
    %6473 = vmatpush1.bf16.msra.mxu0 %v6260
    %6474 = vmatprep.subr.bf16.mxu0 0
    %6475 = vmatpush1.bf16.msra.mxu0 %v6263
    %6476 = vmatprep.subr.bf16.mxu0 0
    %6477 = vmatpush1.bf16.msra.mxu0 %v6266
    %6478 = vmatprep.subr.bf16.mxu0 0
    %6479 = vmatpush1.bf16.msra.mxu0 %v6269
    %6480 = vmatprep.subr.bf16.mxu0 0
    %6481 = vmatpush1.bf16.msra.mxu0 0
    %6482 = vmatprep.subr.bf16.mxu0 0
    %6483 = vmatpush1.bf16.msra.mxu0 0
    %6484 = vmatprep.subr.bf16.mxu0 0
    %6485 = vmatpush1.bf16.msra.mxu0 0
    %6486 = vmatprep.subr.bf16.mxu0 0
    %6487 = vmatpush1.bf16.msra.mxu0 0
    %6488 = vmatprep.subr.bf16.mxu0 0
    %6489 = vmatpush1.bf16.msra.mxu0 0
    %6490 = vmatprep.subr.bf16.mxu0 0
    %6491 = vmatpush1.bf16.msra.mxu0 0
    %6492 = vmatprep.subr.bf16.mxu0 0
    %6493 = vmatpush1.bf16.msra.mxu0 0
    %6494 = vmatprep.subr.bf16.mxu0 0
    %6495 = vmatpush1.bf16.msra.mxu0 0
    %6496 = vmatprep.mubr.bf16.mxu0 0
    %6497 = vmatmul.mubr.bf16.gmra.mrb[0].mxu0 %v3846
    %v6498 = vpop.f32.mrb[0].mxu0
    %v6499 = vadd.f32 %v6459, %v6498
    %v6500 = vpop.f32.mrb[0].mxu0
    %v6501 = vpop.f32.mrb[0].mxu0
    %v6502 = vpop.f32.mrb[0].mxu0
    %6503 = vdwg.mxu0
    %v6504 = vadd.f32 %v5840, %v6418
    %v6505 = vadd.f32 %v5841, %v6420
    %v6506 = vadd.f32 %v5842, %v6499
    %v6507 = vpack.c.bf16 %v6504, %v6504
    %v6508 = vpack.c.bf16 %v6505, %v6505
    %v6509 = vpack.c.bf16 %v6506, %v6506
    %v6510 = vpack.c.bf16 %v3841, %v3838
    %v6511 = vpack.c.bf16 %v3842, %v3839
    %v6512 = vpack.c.bf16 %v3843, %v3840
    %6513 = vmatprep.subr.bf16.mxu0 %v6511
    %6514 = vmatpush1.bf16.xpose.msra.mxu0 %v6510
    %6515 = vmatprep.subr.bf16.mxu0 0
    %6516 = vmatpush1.bf16.xpose.msra.mxu0 0
    %6517 = vmatprep.subr.bf16.mxu0 0
    %6518 = vmatpush1.bf16.xpose.msra.mxu0 0
    %6519 = vmatprep.subr.bf16.mxu0 0
    %6520 = vmatpush1.bf16.xpose.msra.mxu0 0
    %6521 = vmatprep.subr.bf16.mxu0 0
    %6522 = vmatpush1.bf16.xpose.msra.mxu0 0
    %6523 = vmatprep.subr.bf16.mxu0 0
    %6524 = vmatpush1.bf16.xpose.msra.mxu0 0
    %6525 = vmatprep.subr.bf16.mxu0 0
    %6526 = vmatpush1.bf16.xpose.msra.mxu0 0
    %6527 = vmatprep.subr.bf16.mxu0 0
    %6528 = vmatpush1.bf16.xpose.msra.mxu0 0
    %6529 = vmatprep.subr.bf16.mxu0 0
    %6530 = vmatpush1.bf16.xpose.msra.mxu0 0
    %6531 = vmatprep.subr.bf16.mxu0 0
    %6532 = vmatpush1.bf16.xpose.msra.mxu0 0
    %6533 = vmatprep.subr.bf16.mxu0 0
    %6534 = vmatpush1.bf16.xpose.msra.mxu0 0
    %6535 = vmatprep.subr.bf16.mxu0 0
    %6536 = vmatpush1.bf16.xpose.msra.mxu0 0
    %6537 = vmatprep.subr.bf16.mxu0 0
    %6538 = vmatpush1.bf16.xpose.msra.mxu0 0
    %6539 = vmatprep.subr.bf16.mxu0 0
    %6540 = vmatpush1.bf16.xpose.msra.mxu0 0
    %6541 = vmatprep.subr.bf16.mxu0 0
    %6542 = vmatpush1.bf16.xpose.msra.mxu0 0
    %6543 = vmatprep.subr.bf16.mxu0 0
    %6544 = vmatpush1.bf16.xpose.msra.mxu0 0
    %6545 = vmatprep.mubr.bf16.mxu0 %v6508
    %6546 = vmatmul.mubr.bf16.gmra.mrb[0].mxu0 %v6507
    %v6547 = vpop.f32.mrb[0].mxu0
    %v6548 = vadd.f32 0.0, %v6547
    %v6549 = vpop.f32.mrb[0].mxu0
    %v6550 = vpop.f32.mrb[0].mxu0
    %v6551 = vpop.f32.mrb[0].mxu0
    %6552 = vdwg.mxu0
    %6553 = vmatprep.subr.bf16.mxu0 0
    %6554 = vmatpush1.bf16.xpose.msra.mxu0 %v6512
    %6555 = vmatprep.subr.bf16.mxu0 0
    %6556 = vmatpush1.bf16.xpose.msra.mxu0 0
    %6557 = vmatprep.subr.bf16.mxu0 0
    %6558 = vmatpush1.bf16.xpose.msra.mxu0 0
    %6559 = vmatprep.subr.bf16.mxu0 0
    %6560 = vmatpush1.bf16.xpose.msra.mxu0 0
    %6561 = vmatprep.subr.bf16.mxu0 0
    %6562 = vmatpush1.bf16.xpose.msra.mxu0 0
    %6563 = vmatprep.subr.bf16.mxu0 0
    %6564 = vmatpush1.bf16.xpose.msra.mxu0 0
    %6565 = vmatprep.subr.bf16.mxu0 0
    %6566 = vmatpush1.bf16.xpose.msra.mxu0 0
    %6567 = vmatprep.subr.bf16.mxu0 0
    %6568 = vmatpush1.bf16.xpose.msra.mxu0 0
    %6569 = vmatprep.subr.bf16.mxu0 0
    %6570 = vmatpush1.bf16.xpose.msra.mxu0 0
    %6571 = vmatprep.subr.bf16.mxu0 0
    %6572 = vmatpush1.bf16.xpose.msra.mxu0 0
    %6573 = vmatprep.subr.bf16.mxu0 0
    %6574 = vmatpush1.bf16.xpose.msra.mxu0 0
    %6575 = vmatprep.subr.bf16.mxu0 0
    %6576 = vmatpush1.bf16.xpose.msra.mxu0 0
    %6577 = vmatprep.subr.bf16.mxu0 0
    %6578 = vmatpush1.bf16.xpose.msra.mxu0 0
    %6579 = vmatprep.subr.bf16.mxu0 0
    %6580 = vmatpush1.bf16.xpose.msra.mxu0 0
    %6581 = vmatprep.subr.bf16.mxu0 0
    %6582 = vmatpush1.bf16.xpose.msra.mxu0 0
    %6583 = vmatprep.subr.bf16.mxu0 0
    %6584 = vmatpush1.bf16.xpose.msra.mxu0 0
    %6585 = vmatprep.mubr.bf16.mxu0 0
    %6586 = vmatmul.mubr.bf16.gmra.mrb[0].mxu0 %v6509
    %v6587 = vpop.f32.mrb[0].mxu0
    %v6588 = vadd.f32 %v6548, %v6587
    %v6589 = vpop.f32.mrb[0].mxu0
    %v6590 = vpop.f32.mrb[0].mxu0
    %v6591 = vpop.f32.mrb[0].mxu0
    %6592 = vdwg.mxu0
    %v6593 = vld [vmem:[%s3] sm:$0x3]
    %v6594 = vmul.f32 %v6588, %v6593
    %v6595 = vsub.f32 1.0, %v6593
    %v6596 = vmul.f32 %v6588, %v6595
    %v6597 = vsub.f32 0.0, %v6594
    %v6598 = vmax.f32 %v6597, 0.0
    %vm6599 = vcmp.ne.f32.partialorder %v6597, %v6597
    %v6600 = vadd.f32 %v6597, 0.0
    %v6601 = vand.u32 2147483647, %v6597
    %v6602 = vsub.f32 0.0, %v6601
    %v6603 = vmul.f32 %v6602, 1.442695
    %v6604 = vpow.pop %v6603
    %v6605 = vadd.f32 %v6604, 1.0
    %v6606 = vlog2.pop %v6605
    %v6607 = vmul.f32 %v6606, 0.6931472
    %v6608 = vmul.f32 -0.5, %v6604
    %v6609 = vadd.f32 %v6608, 1.0
    %v6610 = vmul.f32 %v6609, %v6604
    %v6611 = vand.u32 2147483647, %v6604
    %vm6612 = vcmp.lt.f32.partialorder %v6611, 0.0004427343
    %v6613 = vsel %vm6612, %v6610, %v6607
    %v6614 = vadd.f32 %v6598, %v6613
    %v6615 = vsel %vm6599, %v6600, %v6614
    %v6616 = vsub.f32 0.6931472, %v6615
    %vm6617 = vcmask 123904
    %v6618 = vsel %vm6617, %v6616, 0.0
    %6619 = vadd.xlane.f32.xlu0 %v6618
    %v6620 = vpop.xlane.xlu0 %6619
    %v6621 = vrot.slane %v6620, 4
    %v6622 = vadd.f32 %v6620, %v6621
    %v6623 = vrot.slane %v6622, 2
    %v6624 = vadd.f32 %v6622, %v6623
    %v6625 = vrot.slane %v6624, 1
    %v6626 = vadd.f32 %v6624, %v6625
    %s6627 = vtos %v6626
    %v6628 = vstv %s6627
    %v6629 = vsub.f32 0.0, %v6596
    %v6630 = vmax.f32 %v6629, 0.0
    %vm6631 = vcmp.ne.f32.partialorder %v6629, %v6629
    %v6632 = vadd.f32 %v6629, 0.0
    %v6633 = vand.u32 2147483647, %v6629
    %v6634 = vsub.f32 0.0, %v6633
    %v6635 = vmul.f32 %v6634, 1.442695
    %v6636 = vpow.pop %v6635
    %v6637 = vadd.f32 %v6636, 1.0
    %v6638 = vlog2.pop %v6637
    %v6639 = vmul.f32 %v6638, 0.6931472
    %v6640 = vmul.f32 -0.5, %v6636
    %v6641 = vadd.f32 %v6640, 1.0
    %v6642 = vmul.f32 %v6641, %v6636
    %v6643 = vand.u32 2147483647, %v6636
    %vm6644 = vcmp.lt.f32.partialorder %v6643, 0.0004427343
    %v6645 = vsel %vm6644, %v6642, %v6639
    %v6646 = vadd.f32 %v6630, %v6645
    %v6647 = vsel %vm6631, %v6632, %v6646
    %v6648 = vadd.f32 %v6647, %v6596
    %v6649 = vsub.f32 %v6648, 0.6931472
    %v6650 = vsel %vm6617, %v6649, 0.0
    %6651 = vadd.xlane.f32.xlu0 %v6650
    %v6652 = vpop.xlane.xlu0 %6651
    %v6653 = vrot.slane %v6652, 4
    %v6654 = vadd.f32 %v6652, %v6653
    %v6655 = vrot.slane %v6654, 2
    %v6656 = vadd.f32 %v6654, %v6655
    %v6657 = vrot.slane %v6656, 1
    %v6658 = vadd.f32 %v6656, %v6657
    %s6659 = vtos %v6658
    %v6660 = vstv %s6659
    %v6661 = vmul.f32 %v6660, %v346
    %v6662 = vmul.f32 %v6628, %v346
    %v6663 = vsub.f32 %v6661, %v6662
    %vm6664 = vcmask 0
    %6665 = vst.msk [vmem:[#allocation2] sm:$0x1] %vm6664, %v6663
    // Predicated region
    $region58: #{gcn_infomax_forward.1} parent=1 // pred_check
      _
    $region59: #{gcn_infomax_forward.1} parent=1 // pred_check_branch
      %6667 = sbr.rel (0) target = $region61
    $region60: #{gcn_infomax_forward.1} parent=1 // pred_region
      %s6669 = ssub.s32 16, 16
      %6670 = vsyncadd [#allocation3], %s6669
      %s6672 = sshll.u32 [#allocation2], 4
      %s6673 = int_to_ptr.vmem [resolvable:$true] %s6672
      %6675 = dma.vmem_to_hbm [thread:$0]  %s6673, 16, %s14, [#allocation3]
    $region61: #{gcn_infomax_forward.1} parent=1 // pred_fallthru
      _
    // Predicated region
    $region62: #{gcn_infomax_forward.1} parent=1 // pred_check
      _
    $region63: #{gcn_infomax_forward.1} parent=1 // pred_check_branch
      %6677 = sbr.rel (0) target = $region65
    $region64: #{gcn_infomax_forward.1} parent=1 // pred_region
      %6678 = dma.done [#allocation3], 16
    $region65: #{gcn_infomax_forward.1} parent=1 // pred_fallthru
      _
    %6679 = vsyncpa [#allocation3], 1

</llo_original>
